<compile_context>
chip_gen: v5e
topology: v5e:2x2
jax: 0.10.0
libtpu: 0.0.40
codegen_flags: <defaults>
</compile_context>

<pallas_src>
import functools

import numpy as np
import jax
import jax.numpy as jnp
from jax.experimental import pallas as pl
from jax.experimental.pallas import tpu as pltpu

PATCH = 8
NUM_HEADS = 2
NCLS_PAD = 256      # 171 classes padded to a lane-dense 256 columns
POOL_ROWS = 8       # sublane-padded batch dim for pooled / logits slab


def _ru(x, m):
    return (x + m - 1) // m * m


# ----------------------------------------------------------------------------
# Fully fused BEiT forward kernel (single invocation, everything in VMEM)
# ----------------------------------------------------------------------------
def _beit_fused_kernel(patches_ref, pw_ref, pb_ref, cls_ref,
                       ln1g_ref, ln1b_ref, qkvw_ref, qkvb_ref, bias_ref,
                       projw_ref, projb_ref, g1_ref,
                       ln2g_ref, ln2b_ref, fc1w_ref, fc1b_ref,
                       fc2w_ref, fc2b_ref, g2_ref,
                       poolmat_ref, plng_ref, plnb_ref, clsw_ref, clsb_ref,
                       out_ref, *, B, Sp, N, D, H, Dh, depth, scale, eps):
    f32 = jnp.float32
    bf16 = jnp.bfloat16
    BSp = B * Sp

    def ln(x, g, b):
        mu = jnp.mean(x, axis=-1, keepdims=True)
        xc = x - mu
        var = jnp.mean(xc * xc, axis=-1, keepdims=True)
        return (xc * jax.lax.rsqrt(var + eps)) * g + b

    # ---- patch embedding (Conv2d k=stride=patch == GEMM) -> token slab -------
    pe = jnp.dot(patches_ref[...].astype(bf16), pw_ref[...],
                 preferred_element_type=f32) + pb_ref[...]            # (BSp, D)
    s_pos = jax.lax.broadcasted_iota(jnp.int32, (BSp, 1), 0) % Sp
    is_cls = (s_pos == 0).astype(f32)
    is_patch = ((s_pos >= 1) & (s_pos <= N)).astype(f32)
    cls_tok = jnp.broadcast_to(cls_ref[...], (BSp, D))
    x = pe * is_patch + cls_tok * is_cls                              # padding rows = 0

    # ---- transformer layers (weights resident in VMEM, slab stays on-chip) ---
    for l in range(depth):
        # --- attention block ---
        h = ln(x, ln1g_ref[l], ln1b_ref[l])
        qkv = jnp.dot(h.astype(bf16), qkvw_ref[l],
                      preferred_element_type=f32) + qkvb_ref[l]       # (BSp, 3D)
        q, k, v = qkv[:, 0:D], qkv[:, D:2 * D], qkv[:, 2 * D:3 * D]
        batch_out = []
        for b in range(B):
            rows = slice(b * Sp, (b + 1) * Sp)
            head_out = []
            for hh in range(H):
                cols = slice(hh * Dh, (hh + 1) * Dh)
                qh, kh, vh = q[rows, cols], k[rows, cols], v[rows, cols]
                # q . k^T contracted on Dh (no materialized transpose); f32 scores.
                sc = jax.lax.dot_general(
                    qh, kh, (((1,), (1,)), ((), ())),
                    preferred_element_type=f32) * scale + bias_ref[l * H + hh]
                m = jnp.max(sc, axis=-1, keepdims=True)
                p = jnp.exp(sc - m)
                p = p / jnp.sum(p, axis=-1, keepdims=True)
                head_out.append(jnp.dot(p, vh, preferred_element_type=f32))
            batch_out.append(jnp.concatenate(head_out, axis=-1))      # (Sp, D)
        attn = jnp.concatenate(batch_out, axis=0)                     # (BSp, D)
        attn = jnp.dot(attn.astype(bf16), projw_ref[l],
                       preferred_element_type=f32) + projb_ref[l]
        x = x + g1_ref[l] * attn                                      # layer scale residual

        # --- MLP block ---
        h = ln(x, ln2g_ref[l], ln2b_ref[l])
        h = jnp.dot(h.astype(bf16), fc1w_ref[l],
                    preferred_element_type=f32) + fc1b_ref[l]
        h = jax.nn.gelu(h, approximate=True)
        h = jnp.dot(h.astype(bf16), fc2w_ref[l],
                    preferred_element_type=f32) + fc2b_ref[l]
        x = x + g2_ref[l] * h

    # ---- mean-pool patch tokens (selection matmul), pooler LN, classifier ----
    pooled = jnp.dot(poolmat_ref[...], x, preferred_element_type=f32)  # (8, D)
    pooled = ln(pooled, plng_ref[...], plnb_ref[...])
    out_ref[...] = jnp.dot(pooled.astype(bf16), clsw_ref[...],
                           preferred_element_type=f32) + clsb_ref[...]


# ----------------------------------------------------------------------------
# One-time weight preparation (pre-pad, pre-cast to bf16, pre-reshape biases)
# ----------------------------------------------------------------------------
def prepare_params(p):
    D = p["cls"].shape[-1]
    depth = len(p["layers"])
    H, seq, _ = p["layers"][0]["rel_bias"].shape
    Sp = _ru(seq, 8)
    Kraw = p["patch_w"].shape[0]
    Kp = _ru(Kraw, 128)
    num_classes = p["cls_w"].shape[-1]
    bf = jnp.bfloat16

    def stack(name):
        return jnp.stack([lp[name] for lp in p["layers"]])

    prep = dict(
        patch_w=jnp.pad(p["patch_w"], ((0, Kp - Kraw), (0, 0))).astype(bf),
        patch_b=p["patch_b"].reshape(1, D),
        cls=p["cls"].reshape(1, D),
        ln1_g=stack("ln1_g").reshape(depth, 1, D),
        ln1_b=stack("ln1_b").reshape(depth, 1, D),
        qkv_w=stack("qkv_w").astype(bf),
        qkv_b=stack("qkv_b").reshape(depth, 1, 3 * D),
        proj_w=stack("proj_w").astype(bf),
        proj_b=stack("proj_b").reshape(depth, 1, D),
        gamma1=stack("gamma1").reshape(depth, 1, D),
        ln2_g=stack("ln2_g").reshape(depth, 1, D),
        ln2_b=stack("ln2_b").reshape(depth, 1, D),
        fc1_w=stack("fc1_w").astype(bf),
        fc1_b=stack("fc1_b").reshape(depth, 1, -1),
        fc2_w=stack("fc2_w").astype(bf),
        fc2_b=stack("fc2_b").reshape(depth, 1, D),
        gamma2=stack("gamma2").reshape(depth, 1, D),
        pool_ln_g=p["pool_ln_g"].reshape(1, D),
        pool_ln_b=p["pool_ln_b"].reshape(1, D),
        cls_w=jnp.pad(p["cls_w"], ((0, 0), (0, NCLS_PAD - num_classes))).astype(bf),
        cls_b=jnp.pad(p["cls_b"], (0, NCLS_PAD - num_classes)).reshape(1, NCLS_PAD),
    )
    # Relative-position bias: pad (H,seq,seq)->(H,Sp,Sp), mask padded keys, keep f32.
    rb = stack("rel_bias")                                      # (depth, H, seq, seq)
    rb = jnp.pad(rb, ((0, 0), (0, 0), (0, Sp - seq), (0, Sp - seq)))
    key_ok = jnp.arange(Sp) < seq
    rb = jnp.where(key_ok[None, None, None, :], rb, -1e30)
    prep["rel_bias"] = rb.reshape(depth * H, Sp, Sp).astype(jnp.float32)
    return prep


# ----------------------------------------------------------------------------
# Forward wrapper: one pallas_call for the whole model
# ----------------------------------------------------------------------------
def beit_forward(img, prep, *, patch=PATCH, num_heads=NUM_HEADS, num_classes=171):
    B, C, Himg, Wimg = img.shape
    nh, nw = Himg // patch, Wimg // patch
    N = nh * nw
    S = N + 1
    Sp = _ru(S, 8)
    D = prep["patch_b"].shape[-1]
    Dh = D // num_heads
    depth = prep["qkv_w"].shape[0]
    mlp = prep["fc1_w"].shape[-1]
    Kraw = C * patch * patch
    Kp = prep["patch_w"].shape[0]
    BSp = B * Sp

    # Non-overlapping patches laid out directly at their token-slab rows
    # (row 0 of each batch is the cls slot, rows > N are zero padding).
    patches = img.reshape(B, C, nh, patch, nw, patch)
    patches = patches.transpose(0, 2, 4, 1, 3, 5).reshape(B, N, Kraw)
    patches = jnp.pad(patches, ((0, 0), (1, Sp - 1 - N), (0, Kp - Kraw)))
    patches_slab = patches.reshape(BSp, Kp)

    # Mean-pool selection matrix: pooled[b] = mean over patch-token rows of batch b.
    pool_np = np.zeros((POOL_ROWS, BSp), np.float32)
    for b in range(B):
        pool_np[b, b * Sp + 1: b * Sp + 1 + N] = 1.0 / N
    pool_mat = jnp.asarray(pool_np)

    args = (patches_slab, prep["patch_w"], prep["patch_b"], prep["cls"],
            prep["ln1_g"], prep["ln1_b"], prep["qkv_w"], prep["qkv_b"],
            prep["rel_bias"], prep["proj_w"], prep["proj_b"], prep["gamma1"],
            prep["ln2_g"], prep["ln2_b"], prep["fc1_w"], prep["fc1_b"],
            prep["fc2_w"], prep["fc2_b"], prep["gamma2"],
            pool_mat, prep["pool_ln_g"], prep["pool_ln_b"],
            prep["cls_w"], prep["cls_b"])

    def full_spec(a):
        nd = a.ndim
        return pl.BlockSpec(tuple(a.shape), lambda i, nd=nd: (0,) * nd)

    flops = 2 * BSp * Kp * D
    flops += depth * (2 * BSp * D * 3 * D + 2 * BSp * D * D + 4 * BSp * D * mlp
                      + 4 * B * num_heads * Sp * Sp * Dh)
    flops += 2 * POOL_ROWS * BSp * D + 2 * POOL_ROWS * D * NCLS_PAD
    transc = depth * (B * num_heads * Sp * Sp + BSp * mlp)
    bytes_acc = sum(int(a.size) * a.dtype.itemsize for a in args) + POOL_ROWS * NCLS_PAD * 4

    out = pl.pallas_call(
        functools.partial(_beit_fused_kernel, B=B, Sp=Sp, N=N, D=D,
                          H=num_heads, Dh=Dh, depth=depth,
                          scale=1.0 / float(np.sqrt(Dh)), eps=1e-6),
        out_shape=jax.ShapeDtypeStruct((POOL_ROWS, NCLS_PAD), jnp.float32),
        grid=(1,),
        in_specs=[full_spec(a) for a in args],
        out_specs=pl.BlockSpec((POOL_ROWS, NCLS_PAD), lambda i: (0, 0)),
        compiler_params=pltpu.CompilerParams(
            dimension_semantics=("arbitrary",),
            vmem_limit_bytes=32 * 1024 * 1024,
        ),
        cost_estimate=pl.CostEstimate(flops=int(flops),
                                      transcendentals=int(transc),
                                      bytes_accessed=int(bytes_acc)),
    )(*args)
    return out[:B, :num_classes]


# ----------------------------------------------------------------------------
# Deterministic synthetic parameters + pure-JAX reference
# ----------------------------------------------------------------------------
def init_params(key, *, img_size=16, patch=PATCH, dim=128, depth=2,
                heads=NUM_HEADS, mlp=512, num_classes=171):
    seq = (img_size // patch) ** 2 + 1
    keys = iter(jax.random.split(key, 7 + 13 * depth + 8))

    def nrm(shape, scale):
        return scale * jax.random.normal(next(keys), shape, jnp.float32)

    p = dict(
        patch_w=nrm((3 * patch * patch, dim), (3 * patch * patch) ** -0.5),
        patch_b=nrm((dim,), 0.02),
        cls=nrm((1, 1, dim), 0.02),
        pool_ln_g=1.0 + nrm((dim,), 0.02),
        pool_ln_b=nrm((dim,), 0.02),
        cls_w=nrm((dim, num_classes), dim ** -0.5),
        cls_b=nrm((num_classes,), 0.02),
        layers=[],
    )
    for _ in range(depth):
        qkv_b = nrm((3 * dim,), 0.02)
        qkv_b = qkv_b.at[dim:2 * dim].set(0.0)        # BEiT: key projection has no bias
        p["layers"].append(dict(
            ln1_g=1.0 + nrm((dim,), 0.02), ln1_b=nrm((dim,), 0.02),
            qkv_w=nrm((dim, 3 * dim), dim ** -0.5), qkv_b=qkv_b,
            rel_bias=nrm((heads, seq, seq), 0.1),
            proj_w=nrm((dim, dim), dim ** -0.5), proj_b=nrm((dim,), 0.02),
            gamma1=0.1 * jnp.ones((dim,), jnp.float32),
            ln2_g=1.0 + nrm((dim,), 0.02), ln2_b=nrm((dim,), 0.02),
            fc1_w=nrm((dim, mlp), dim ** -0.5), fc1_b=nrm((mlp,), 0.02),
            fc2_w=nrm((mlp, dim), mlp ** -0.5), fc2_b=nrm((dim,), 0.02),
            gamma2=0.1 * jnp.ones((dim,), jnp.float32),
        ))
    return p


def reference_forward(img, p, *, patch=PATCH, num_heads=NUM_HEADS):
    B, C, H, W = img.shape
    nh, nw = H // patch, W // patch
    D = p["cls"].shape[-1]
    Dh = D // num_heads

    def ln(x, g, b, eps=1e-6):
        mu = x.mean(-1, keepdims=True)
        xc = x - mu
        var = (xc * xc).mean(-1, keepdims=True)
        return xc * jax.lax.rsqrt(var + eps) * g + b

    patches = img.reshape(B, C, nh, patch, nw, patch)
    patches = patches.transpose(0, 2, 4, 1, 3, 5).reshape(B * nh * nw, C * patch * patch)
    x = (patches @ p["patch_w"] + p["patch_b"]).reshape(B, nh * nw, D)
    x = jnp.concatenate([jnp.broadcast_to(p["cls"], (B, 1, D)), x], axis=1)
    S = x.shape[1]
    for lp in p["layers"]:
        h = ln(x, lp["ln1_g"], lp["ln1_b"])
        qkv = (h @ lp["qkv_w"] + lp["qkv_b"]).reshape(B, S, 3, num_heads, Dh)
        qkv = qkv.transpose(2, 0, 3, 1, 4)
        q, k, v = qkv[0], qkv[1], qkv[2]
        s = jnp.einsum("bhqd,bhkd->bhqk", q, k) / np.sqrt(Dh) + lp["rel_bias"][None]
        a = jax.nn.softmax(s, axis=-1)
        attn = jnp.einsum("bhqk,bhkd->bhqd", a, v).transpose(0, 2, 1, 3).reshape(B, S, D)
        attn = attn @ lp["proj_w"] + lp["proj_b"]
        x = x + lp["gamma1"] * attn
        h = ln(x, lp["ln2_g"], lp["ln2_b"])
        h = jax.nn.gelu(h @ lp["fc1_w"] + lp["fc1_b"], approximate=True)
        h = h @ lp["fc2_w"] + lp["fc2_b"]
        x = x + lp["gamma2"] * h
    pooled = ln(x[:, 1:, :].mean(1), p["pool_ln_g"], p["pool_ln_b"])
    return pooled @ p["cls_w"] + p["cls_b"]


if __name__ == "__main__":
    key = jax.random.PRNGKey(0)
    k_img, k_par = jax.random.split(key)
    img = jax.random.normal(k_img, (2, 3, 16, 16), jnp.float32)     # NCHW like PyTorch
    params = init_params(k_par)
    prep = prepare_params(params)        # pre-pad / pre-cast weights once, outside jit

    fwd = jax.jit(beit_forward)
    out = jax.block_until_ready(fwd(img, prep))
    assert out.shape == (2, 171)

    ref = reference_forward(img, params)
    np.testing.assert_allclose(np.asarray(out), np.asarray(ref), rtol=5e-2, atol=5e-2)

    print("KERNEL_OK")
</pallas_src>

<mosaic_0001>
module attributes {stable_mosaic.version = 11 : i64} {
  func.func @_beit_fused_kernel(%arg0: i32, %arg1: memref<16x256xf32, #tpu.memory_space<vmem>>, %arg2: memref<256x128xbf16, #tpu.memory_space<vmem>>, %arg3: memref<1x128xf32, #tpu.memory_space<vmem>>, %arg4: memref<1x128xf32, #tpu.memory_space<vmem>>, %arg5: memref<2x1x128xf32, #tpu.memory_space<vmem>>, %arg6: memref<2x1x128xf32, #tpu.memory_space<vmem>>, %arg7: memref<2x128x384xbf16, #tpu.memory_space<vmem>>, %arg8: memref<2x1x384xf32, #tpu.memory_space<vmem>>, %arg9: memref<4x8x8xf32, #tpu.memory_space<vmem>>, %arg10: memref<2x128x128xbf16, #tpu.memory_space<vmem>>, %arg11: memref<2x1x128xf32, #tpu.memory_space<vmem>>, %arg12: memref<2x1x128xf32, #tpu.memory_space<vmem>>, %arg13: memref<2x1x128xf32, #tpu.memory_space<vmem>>, %arg14: memref<2x1x128xf32, #tpu.memory_space<vmem>>, %arg15: memref<2x128x512xbf16, #tpu.memory_space<vmem>>, %arg16: memref<2x1x512xf32, #tpu.memory_space<vmem>>, %arg17: memref<2x512x128xbf16, #tpu.memory_space<vmem>>, %arg18: memref<2x1x128xf32, #tpu.memory_space<vmem>>, %arg19: memref<2x1x128xf32, #tpu.memory_space<vmem>>, %arg20: memref<8x16xf32, #tpu.memory_space<vmem>>, %arg21: memref<1x128xf32, #tpu.memory_space<vmem>>, %arg22: memref<1x128xf32, #tpu.memory_space<vmem>>, %arg23: memref<128x256xbf16, #tpu.memory_space<vmem>>, %arg24: memref<1x256xf32, #tpu.memory_space<vmem>>, %arg25: memref<8x256xf32, #tpu.memory_space<vmem>>) attributes {dimension_semantics = [#tpu.dimension_semantics<arbitrary>], iteration_bounds = array<i64: 1>, scalar_prefetch = 0 : i64, scratch_operands = 0 : i64, tpu.core_type = #tpu.core_type<tc>, window_params = [{pipeline_mode = #tpu.pipeline_mode<synchronous>, transform_indices = @transform_0, window_bounds = array<i64: 16, 256>}, {pipeline_mode = #tpu.pipeline_mode<synchronous>, transform_indices = @transform_1, window_bounds = array<i64: 256, 128>}, {pipeline_mode = #tpu.pipeline_mode<synchronous>, transform_indices = @transform_2, window_bounds = array<i64: 1, 128>}, {pipeline_mode = #tpu.pipeline_mode<synchronous>, transform_indices = @transform_3, window_bounds = array<i64: 1, 128>}, {pipeline_mode = #tpu.pipeline_mode<synchronous>, transform_indices = @transform_4, window_bounds = array<i64: 2, 1, 128>}, {pipeline_mode = #tpu.pipeline_mode<synchronous>, transform_indices = @transform_5, window_bounds = array<i64: 2, 1, 128>}, {pipeline_mode = #tpu.pipeline_mode<synchronous>, transform_indices = @transform_6, window_bounds = array<i64: 2, 128, 384>}, {pipeline_mode = #tpu.pipeline_mode<synchronous>, transform_indices = @transform_7, window_bounds = array<i64: 2, 1, 384>}, {pipeline_mode = #tpu.pipeline_mode<synchronous>, transform_indices = @transform_8, window_bounds = array<i64: 4, 8, 8>}, {pipeline_mode = #tpu.pipeline_mode<synchronous>, transform_indices = @transform_9, window_bounds = array<i64: 2, 128, 128>}, {pipeline_mode = #tpu.pipeline_mode<synchronous>, transform_indices = @transform_10, window_bounds = array<i64: 2, 1, 128>}, {pipeline_mode = #tpu.pipeline_mode<synchronous>, transform_indices = @transform_11, window_bounds = array<i64: 2, 1, 128>}, {pipeline_mode = #tpu.pipeline_mode<synchronous>, transform_indices = @transform_12, window_bounds = array<i64: 2, 1, 128>}, {pipeline_mode = #tpu.pipeline_mode<synchronous>, transform_indices = @transform_13, window_bounds = array<i64: 2, 1, 128>}, {pipeline_mode = #tpu.pipeline_mode<synchronous>, transform_indices = @transform_14, window_bounds = array<i64: 2, 128, 512>}, {pipeline_mode = #tpu.pipeline_mode<synchronous>, transform_indices = @transform_15, window_bounds = array<i64: 2, 1, 512>}, {pipeline_mode = #tpu.pipeline_mode<synchronous>, transform_indices = @transform_16, window_bounds = array<i64: 2, 512, 128>}, {pipeline_mode = #tpu.pipeline_mode<synchronous>, transform_indices = @transform_17, window_bounds = array<i64: 2, 1, 128>}, {pipeline_mode = #tpu.pipeline_mode<synchronous>, transform_indices = @transform_18, window_bounds = array<i64: 2, 1, 128>}, {pipeline_mode = #tpu.pipeline_mode<synchronous>, transform_indices = @transform_19, window_bounds = array<i64: 8, 16>}, {pipeline_mode = #tpu.pipeline_mode<synchronous>, transform_indices = @transform_20, window_bounds = array<i64: 1, 128>}, {pipeline_mode = #tpu.pipeline_mode<synchronous>, transform_indices = @transform_21, window_bounds = array<i64: 1, 128>}, {pipeline_mode = #tpu.pipeline_mode<synchronous>, transform_indices = @transform_22, window_bounds = array<i64: 128, 256>}, {pipeline_mode = #tpu.pipeline_mode<synchronous>, transform_indices = @transform_23, window_bounds = array<i64: 1, 256>}, {pipeline_mode = #tpu.pipeline_mode<synchronous>, transform_indices = @transform_24, window_bounds = array<i64: 8, 256>}]} {
    %c0 = arith.constant 0 : index
    %c0_0 = arith.constant 0 : index
    %0 = vector.load %arg1[%c0, %c0_0] : memref<16x256xf32, #tpu.memory_space<vmem>>, vector<16x256xf32>
    %1 = arith.truncf %0 : vector<16x256xf32> to vector<16x256xbf16>
    %c0_1 = arith.constant 0 : index
    %c0_2 = arith.constant 0 : index
    %2 = vector.load %arg2[%c0_1, %c0_2] : memref<256x128xbf16, #tpu.memory_space<vmem>>, vector<256x128xbf16>
    %cst = arith.constant dense<0.000000e+00> : vector<16x128xf32>
    %3 = tpu.matmul %1, %2, %cst {dimension_numbers = #tpu.dot_dimension_numbers<[1], [0], [0], [1], [0, 0, 1, 1], [], []>} : vector<16x256xbf16>, vector<256x128xbf16>, vector<16x128xf32> -> vector<16x128xf32>
    %c0_3 = arith.constant 0 : index
    %c0_4 = arith.constant 0 : index
    %4 = vector.load %arg3[%c0_3, %c0_4] : memref<1x128xf32, #tpu.memory_space<vmem>>, vector<1x128xf32>
    %5 = vector.broadcast %4 : vector<1x128xf32> to vector<16x128xf32>
    %6 = arith.addf %3, %5 : vector<16x128xf32>
    %7 = tpu.iota {dimensions = array<i32: 0>} : vector<16x1xi32>
    %c8_i32 = arith.constant 8 : i32
    %c0_i32 = arith.constant 0 : i32
    %8 = arith.cmpi eq, %c8_i32, %c0_i32 : i32
    %c1_i32 = arith.constant 1 : i32
    %9 = arith.select %8, %c1_i32, %c8_i32 : i32
    %10 = vector.broadcast %9 : i32 to vector<16x1xi32>
    %11 = arith.remsi %7, %10 : vector<16x1xi32>
    %c0_i32_5 = arith.constant 0 : i32
    %12 = vector.broadcast %c0_i32_5 : i32 to vector<16x1xi32>
    %13 = arith.cmpi ne, %11, %12 : vector<16x1xi32>
    %c0_i32_6 = arith.constant 0 : i32
    %14 = vector.broadcast %c0_i32_6 : i32 to vector<16x1xi32>
    %15 = arith.cmpi slt, %11, %14 : vector<16x1xi32>
    %c0_i32_7 = arith.constant 0 : i32
    %16 = arith.cmpi slt, %9, %c0_i32_7 : i32
    %17 = vector.broadcast %16 : i1 to vector<16x1xi1>
    %18 = vector.broadcast %17 : vector<16x1xi1> to vector<16x1xi1>
    %19 = arith.xori %15, %18 : vector<16x1xi1>
    %20 = arith.andi %19, %13 : vector<16x1xi1>
    %21 = vector.broadcast %9 : i32 to vector<16x1xi32>
    %22 = arith.addi %11, %21 : vector<16x1xi32>
    %23 = arith.select %20, %22, %11 : vector<16x1xi1>, vector<16x1xi32>
    %c0_i32_8 = arith.constant 0 : i32
    %24 = vector.broadcast %c0_i32_8 : i32 to vector<16x1xi32>
    %25 = arith.cmpi eq, %23, %24 : vector<16x1xi32>
    %26 = arith.extui %25 : vector<16x1xi1> to vector<16x1xi32>
    %27 = arith.sitofp %26 : vector<16x1xi32> to vector<16x1xf32>
    %c1_i32_9 = arith.constant 1 : i32
    %28 = vector.broadcast %c1_i32_9 : i32 to vector<16x1xi32>
    %29 = arith.cmpi sge, %23, %28 : vector<16x1xi32>
    %c4_i32 = arith.constant 4 : i32
    %30 = vector.broadcast %c4_i32 : i32 to vector<16x1xi32>
    %31 = arith.cmpi sle, %23, %30 : vector<16x1xi32>
    %32 = arith.andi %29, %31 : vector<16x1xi1>
    %33 = arith.extui %32 : vector<16x1xi1> to vector<16x1xi32>
    %34 = arith.sitofp %33 : vector<16x1xi32> to vector<16x1xf32>
    %c0_10 = arith.constant 0 : index
    %c0_11 = arith.constant 0 : index
    %35 = vector.load %arg4[%c0_10, %c0_11] : memref<1x128xf32, #tpu.memory_space<vmem>>, vector<1x128xf32>
    %36 = vector.shape_cast %35 : vector<1x128xf32> to vector<1x128xf32>
    %37 = vector.broadcast %36 : vector<1x128xf32> to vector<16x128xf32>
    %38 = vector.broadcast %34 : vector<16x1xf32> to vector<16x128xf32>
    %39 = arith.mulf %6, %38 : vector<16x128xf32>
    %40 = vector.broadcast %27 : vector<16x1xf32> to vector<16x128xf32>
    %41 = arith.mulf %37, %40 : vector<16x128xf32>
    %42 = arith.addf %39, %41 : vector<16x128xf32>
    %c0_12 = arith.constant 0 : index
    %c0_13 = arith.constant 0 : index
    %c0_14 = arith.constant 0 : index
    %43 = vector.load %arg5[%c0_12, %c0_13, %c0_14] : memref<2x1x128xf32, #tpu.memory_space<vmem>>, vector<1x1x128xf32>
    %44 = vector.shape_cast %43 : vector<1x1x128xf32> to vector<1x128xf32>
    %c0_15 = arith.constant 0 : index
    %c0_16 = arith.constant 0 : index
    %c0_17 = arith.constant 0 : index
    %45 = vector.load %arg6[%c0_15, %c0_16, %c0_17] : memref<2x1x128xf32, #tpu.memory_space<vmem>>, vector<1x1x128xf32>
    %46 = vector.shape_cast %45 : vector<1x1x128xf32> to vector<1x128xf32>
    %cst_18 = arith.constant dense<0.000000e+00> : vector<16xf32>
    %47 = vector.multi_reduction <add>, %42, %cst_18 [1] : vector<16x128xf32> to vector<16xf32>
    %48 = vector.shape_cast %47 : vector<16xf32> to vector<16x1xf32>
    %cst_19 = arith.constant 1.280000e+02 : f32
    %49 = vector.broadcast %cst_19 : f32 to vector<16x1xf32>
    %50 = arith.divf %48, %49 : vector<16x1xf32>
    %51 = vector.broadcast %50 : vector<16x1xf32> to vector<16x128xf32>
    %52 = arith.subf %42, %51 : vector<16x128xf32>
    %53 = arith.mulf %52, %52 : vector<16x128xf32>
    %cst_20 = arith.constant dense<0.000000e+00> : vector<16xf32>
    %54 = vector.multi_reduction <add>, %53, %cst_20 [1] : vector<16x128xf32> to vector<16xf32>
    %55 = vector.shape_cast %54 : vector<16xf32> to vector<16x1xf32>
    %cst_21 = arith.constant 1.280000e+02 : f32
    %56 = vector.broadcast %cst_21 : f32 to vector<16x1xf32>
    %57 = arith.divf %55, %56 : vector<16x1xf32>
    %cst_22 = arith.constant 9.99999997E-7 : f32
    %58 = vector.broadcast %cst_22 : f32 to vector<16x1xf32>
    %59 = arith.addf %57, %58 : vector<16x1xf32>
    %60 = math.rsqrt %59 : vector<16x1xf32>
    %61 = vector.broadcast %60 : vector<16x1xf32> to vector<16x128xf32>
    %62 = arith.mulf %52, %61 : vector<16x128xf32>
    %63 = vector.broadcast %44 : vector<1x128xf32> to vector<16x128xf32>
    %64 = arith.mulf %62, %63 : vector<16x128xf32>
    %65 = vector.broadcast %46 : vector<1x128xf32> to vector<16x128xf32>
    %66 = arith.addf %64, %65 : vector<16x128xf32>
    %67 = arith.truncf %66 : vector<16x128xf32> to vector<16x128xbf16>
    %c0_23 = arith.constant 0 : index
    %c0_24 = arith.constant 0 : index
    %c0_25 = arith.constant 0 : index
    %68 = vector.load %arg7[%c0_23, %c0_24, %c0_25] : memref<2x128x384xbf16, #tpu.memory_space<vmem>>, vector<1x128x384xbf16>
    %69 = vector.shape_cast %68 : vector<1x128x384xbf16> to vector<128x384xbf16>
    %cst_26 = arith.constant dense<0.000000e+00> : vector<16x384xf32>
    %70 = tpu.matmul %67, %69, %cst_26 {dimension_numbers = #tpu.dot_dimension_numbers<[1], [0], [0], [1], [0, 0, 1, 1], [], []>} : vector<16x128xbf16>, vector<128x384xbf16>, vector<16x384xf32> -> vector<16x384xf32>
    %c0_27 = arith.constant 0 : index
    %c0_28 = arith.constant 0 : index
    %c0_29 = arith.constant 0 : index
    %71 = vector.load %arg8[%c0_27, %c0_28, %c0_29] : memref<2x1x384xf32, #tpu.memory_space<vmem>>, vector<1x1x384xf32>
    %72 = vector.shape_cast %71 : vector<1x1x384xf32> to vector<1x384xf32>
    %73 = vector.broadcast %72 : vector<1x384xf32> to vector<16x384xf32>
    %74 = arith.addf %70, %73 : vector<16x384xf32>
    %75 = vector.extract_strided_slice %74 {offsets = [0, 0], sizes = [16, 128], strides = [1, 1]} : vector<16x384xf32> to vector<16x128xf32>
    %76 = vector.extract_strided_slice %74 {offsets = [0, 128], sizes = [16, 128], strides = [1, 1]} : vector<16x384xf32> to vector<16x128xf32>
    %77 = vector.extract_strided_slice %74 {offsets = [0, 256], sizes = [16, 128], strides = [1, 1]} : vector<16x384xf32> to vector<16x128xf32>
    %78 = vector.extract_strided_slice %75 {offsets = [0, 0], sizes = [8, 64], strides = [1, 1]} : vector<16x128xf32> to vector<8x64xf32>
    %79 = vector.extract_strided_slice %76 {offsets = [0, 0], sizes = [8, 64], strides = [1, 1]} : vector<16x128xf32> to vector<8x64xf32>
    %80 = vector.extract_strided_slice %77 {offsets = [0, 0], sizes = [8, 64], strides = [1, 1]} : vector<16x128xf32> to vector<8x64xf32>
    %cst_30 = arith.constant dense<0.000000e+00> : vector<8x8xf32>
    %81 = tpu.matmul %78, %79, %cst_30 {dimension_numbers = #tpu.dot_dimension_numbers<[1], [1], [0], [0], [0, 0, 1, 0], [], []>} : vector<8x64xf32>, vector<8x64xf32>, vector<8x8xf32> -> vector<8x8xf32>
    %cst_31 = arith.constant 1.250000e-01 : f32
    %82 = vector.broadcast %cst_31 : f32 to vector<8x8xf32>
    %83 = arith.mulf %81, %82 : vector<8x8xf32>
    %c0_32 = arith.constant 0 : index
    %c0_33 = arith.constant 0 : index
    %c0_34 = arith.constant 0 : index
    %84 = vector.load %arg9[%c0_32, %c0_33, %c0_34] : memref<4x8x8xf32, #tpu.memory_space<vmem>>, vector<1x8x8xf32>
    %85 = vector.shape_cast %84 : vector<1x8x8xf32> to vector<8x8xf32>
    %86 = arith.addf %83, %85 : vector<8x8xf32>
    %cst_35 = arith.constant dense<0xFF800000> : vector<8xf32>
    %87 = vector.multi_reduction <maximumf>, %86, %cst_35 [1] : vector<8x8xf32> to vector<8xf32>
    %88 = vector.shape_cast %87 : vector<8xf32> to vector<8x1xf32>
    %89 = vector.broadcast %88 : vector<8x1xf32> to vector<8x8xf32>
    %90 = arith.subf %86, %89 : vector<8x8xf32>
    %91 = math.exp %90 : vector<8x8xf32>
    %cst_36 = arith.constant dense<0.000000e+00> : vector<8xf32>
    %92 = vector.multi_reduction <add>, %91, %cst_36 [1] : vector<8x8xf32> to vector<8xf32>
    %93 = vector.shape_cast %92 : vector<8xf32> to vector<8x1xf32>
    %94 = vector.broadcast %93 : vector<8x1xf32> to vector<8x8xf32>
    %95 = arith.divf %91, %94 : vector<8x8xf32>
    %cst_37 = arith.constant dense<0.000000e+00> : vector<8x64xf32>
    %96 = tpu.matmul %95, %80, %cst_37 {dimension_numbers = #tpu.dot_dimension_numbers<[1], [0], [0], [1], [0, 0, 1, 1], [], []>} : vector<8x8xf32>, vector<8x64xf32>, vector<8x64xf32> -> vector<8x64xf32>
    %97 = vector.extract_strided_slice %75 {offsets = [0, 64], sizes = [8, 64], strides = [1, 1]} : vector<16x128xf32> to vector<8x64xf32>
    %98 = vector.extract_strided_slice %76 {offsets = [0, 64], sizes = [8, 64], strides = [1, 1]} : vector<16x128xf32> to vector<8x64xf32>
    %99 = vector.extract_strided_slice %77 {offsets = [0, 64], sizes = [8, 64], strides = [1, 1]} : vector<16x128xf32> to vector<8x64xf32>
    %cst_38 = arith.constant dense<0.000000e+00> : vector<8x8xf32>
    %100 = tpu.matmul %97, %98, %cst_38 {dimension_numbers = #tpu.dot_dimension_numbers<[1], [1], [0], [0], [0, 0, 1, 0], [], []>} : vector<8x64xf32>, vector<8x64xf32>, vector<8x8xf32> -> vector<8x8xf32>
    %cst_39 = arith.constant 1.250000e-01 : f32
    %101 = vector.broadcast %cst_39 : f32 to vector<8x8xf32>
    %102 = arith.mulf %100, %101 : vector<8x8xf32>
    %c1 = arith.constant 1 : index
    %c0_40 = arith.constant 0 : index
    %c0_41 = arith.constant 0 : index
    %103 = vector.load %arg9[%c1, %c0_40, %c0_41] : memref<4x8x8xf32, #tpu.memory_space<vmem>>, vector<1x8x8xf32>
    %104 = vector.shape_cast %103 : vector<1x8x8xf32> to vector<8x8xf32>
    %105 = arith.addf %102, %104 : vector<8x8xf32>
    %cst_42 = arith.constant dense<0xFF800000> : vector<8xf32>
    %106 = vector.multi_reduction <maximumf>, %105, %cst_42 [1] : vector<8x8xf32> to vector<8xf32>
    %107 = vector.shape_cast %106 : vector<8xf32> to vector<8x1xf32>
    %108 = vector.broadcast %107 : vector<8x1xf32> to vector<8x8xf32>
    %109 = arith.subf %105, %108 : vector<8x8xf32>
    %110 = math.exp %109 : vector<8x8xf32>
    %cst_43 = arith.constant dense<0.000000e+00> : vector<8xf32>
    %111 = vector.multi_reduction <add>, %110, %cst_43 [1] : vector<8x8xf32> to vector<8xf32>
    %112 = vector.shape_cast %111 : vector<8xf32> to vector<8x1xf32>
    %113 = vector.broadcast %112 : vector<8x1xf32> to vector<8x8xf32>
    %114 = arith.divf %110, %113 : vector<8x8xf32>
    %cst_44 = arith.constant dense<0.000000e+00> : vector<8x64xf32>
    %115 = tpu.matmul %114, %99, %cst_44 {dimension_numbers = #tpu.dot_dimension_numbers<[1], [0], [0], [1], [0, 0, 1, 1], [], []>} : vector<8x8xf32>, vector<8x64xf32>, vector<8x64xf32> -> vector<8x64xf32>
    %116 = tpu.concatenate %96, %115 in 1 : vector<8x64xf32>, vector<8x64xf32> -> vector<8x128xf32>
    %117 = vector.extract_strided_slice %75 {offsets = [8, 0], sizes = [8, 64], strides = [1, 1]} : vector<16x128xf32> to vector<8x64xf32>
    %118 = vector.extract_strided_slice %76 {offsets = [8, 0], sizes = [8, 64], strides = [1, 1]} : vector<16x128xf32> to vector<8x64xf32>
    %119 = vector.extract_strided_slice %77 {offsets = [8, 0], sizes = [8, 64], strides = [1, 1]} : vector<16x128xf32> to vector<8x64xf32>
    %cst_45 = arith.constant dense<0.000000e+00> : vector<8x8xf32>
    %120 = tpu.matmul %117, %118, %cst_45 {dimension_numbers = #tpu.dot_dimension_numbers<[1], [1], [0], [0], [0, 0, 1, 0], [], []>} : vector<8x64xf32>, vector<8x64xf32>, vector<8x8xf32> -> vector<8x8xf32>
    %cst_46 = arith.constant 1.250000e-01 : f32
    %121 = vector.broadcast %cst_46 : f32 to vector<8x8xf32>
    %122 = arith.mulf %120, %121 : vector<8x8xf32>
    %c0_47 = arith.constant 0 : index
    %c0_48 = arith.constant 0 : index
    %c0_49 = arith.constant 0 : index
    %123 = vector.load %arg9[%c0_47, %c0_48, %c0_49] : memref<4x8x8xf32, #tpu.memory_space<vmem>>, vector<1x8x8xf32>
    %124 = vector.shape_cast %123 : vector<1x8x8xf32> to vector<8x8xf32>
    %125 = arith.addf %122, %124 : vector<8x8xf32>
    %cst_50 = arith.constant dense<0xFF800000> : vector<8xf32>
    %126 = vector.multi_reduction <maximumf>, %125, %cst_50 [1] : vector<8x8xf32> to vector<8xf32>
    %127 = vector.shape_cast %126 : vector<8xf32> to vector<8x1xf32>
    %128 = vector.broadcast %127 : vector<8x1xf32> to vector<8x8xf32>
    %129 = arith.subf %125, %128 : vector<8x8xf32>
    %130 = math.exp %129 : vector<8x8xf32>
    %cst_51 = arith.constant dense<0.000000e+00> : vector<8xf32>
    %131 = vector.multi_reduction <add>, %130, %cst_51 [1] : vector<8x8xf32> to vector<8xf32>
    %132 = vector.shape_cast %131 : vector<8xf32> to vector<8x1xf32>
    %133 = vector.broadcast %132 : vector<8x1xf32> to vector<8x8xf32>
    %134 = arith.divf %130, %133 : vector<8x8xf32>
    %cst_52 = arith.constant dense<0.000000e+00> : vector<8x64xf32>
    %135 = tpu.matmul %134, %119, %cst_52 {dimension_numbers = #tpu.dot_dimension_numbers<[1], [0], [0], [1], [0, 0, 1, 1], [], []>} : vector<8x8xf32>, vector<8x64xf32>, vector<8x64xf32> -> vector<8x64xf32>
    %136 = vector.extract_strided_slice %75 {offsets = [8, 64], sizes = [8, 64], strides = [1, 1]} : vector<16x128xf32> to vector<8x64xf32>
    %137 = vector.extract_strided_slice %76 {offsets = [8, 64], sizes = [8, 64], strides = [1, 1]} : vector<16x128xf32> to vector<8x64xf32>
    %138 = vector.extract_strided_slice %77 {offsets = [8, 64], sizes = [8, 64], strides = [1, 1]} : vector<16x128xf32> to vector<8x64xf32>
    %cst_53 = arith.constant dense<0.000000e+00> : vector<8x8xf32>
    %139 = tpu.matmul %136, %137, %cst_53 {dimension_numbers = #tpu.dot_dimension_numbers<[1], [1], [0], [0], [0, 0, 1, 0], [], []>} : vector<8x64xf32>, vector<8x64xf32>, vector<8x8xf32> -> vector<8x8xf32>
    %cst_54 = arith.constant 1.250000e-01 : f32
    %140 = vector.broadcast %cst_54 : f32 to vector<8x8xf32>
    %141 = arith.mulf %139, %140 : vector<8x8xf32>
    %c1_55 = arith.constant 1 : index
    %c0_56 = arith.constant 0 : index
    %c0_57 = arith.constant 0 : index
    %142 = vector.load %arg9[%c1_55, %c0_56, %c0_57] : memref<4x8x8xf32, #tpu.memory_space<vmem>>, vector<1x8x8xf32>
    %143 = vector.shape_cast %142 : vector<1x8x8xf32> to vector<8x8xf32>
    %144 = arith.addf %141, %143 : vector<8x8xf32>
    %cst_58 = arith.constant dense<0xFF800000> : vector<8xf32>
    %145 = vector.multi_reduction <maximumf>, %144, %cst_58 [1] : vector<8x8xf32> to vector<8xf32>
    %146 = vector.shape_cast %145 : vector<8xf32> to vector<8x1xf32>
    %147 = vector.broadcast %146 : vector<8x1xf32> to vector<8x8xf32>
    %148 = arith.subf %144, %147 : vector<8x8xf32>
    %149 = math.exp %148 : vector<8x8xf32>
    %cst_59 = arith.constant dense<0.000000e+00> : vector<8xf32>
    %150 = vector.multi_reduction <add>, %149, %cst_59 [1] : vector<8x8xf32> to vector<8xf32>
    %151 = vector.shape_cast %150 : vector<8xf32> to vector<8x1xf32>
    %152 = vector.broadcast %151 : vector<8x1xf32> to vector<8x8xf32>
    %153 = arith.divf %149, %152 : vector<8x8xf32>
    %cst_60 = arith.constant dense<0.000000e+00> : vector<8x64xf32>
    %154 = tpu.matmul %153, %138, %cst_60 {dimension_numbers = #tpu.dot_dimension_numbers<[1], [0], [0], [1], [0, 0, 1, 1], [], []>} : vector<8x8xf32>, vector<8x64xf32>, vector<8x64xf32> -> vector<8x64xf32>
    %155 = tpu.concatenate %135, %154 in 1 : vector<8x64xf32>, vector<8x64xf32> -> vector<8x128xf32>
    %156 = tpu.concatenate %116, %155 in 0 : vector<8x128xf32>, vector<8x128xf32> -> vector<16x128xf32>
    %157 = arith.truncf %156 : vector<16x128xf32> to vector<16x128xbf16>
    %c0_61 = arith.constant 0 : index
    %c0_62 = arith.constant 0 : index
    %c0_63 = arith.constant 0 : index
    %158 = vector.load %arg10[%c0_61, %c0_62, %c0_63] : memref<2x128x128xbf16, #tpu.memory_space<vmem>>, vector<1x128x128xbf16>
    %159 = vector.shape_cast %158 : vector<1x128x128xbf16> to vector<128x128xbf16>
    %cst_64 = arith.constant dense<0.000000e+00> : vector<16x128xf32>
    %160 = tpu.matmul %157, %159, %cst_64 {dimension_numbers = #tpu.dot_dimension_numbers<[1], [0], [0], [1], [0, 0, 1, 1], [], []>} : vector<16x128xbf16>, vector<128x128xbf16>, vector<16x128xf32> -> vector<16x128xf32>
    %c0_65 = arith.constant 0 : index
    %c0_66 = arith.constant 0 : index
    %c0_67 = arith.constant 0 : index
    %161 = vector.load %arg11[%c0_65, %c0_66, %c0_67] : memref<2x1x128xf32, #tpu.memory_space<vmem>>, vector<1x1x128xf32>
    %162 = vector.shape_cast %161 : vector<1x1x128xf32> to vector<1x128xf32>
    %163 = vector.broadcast %162 : vector<1x128xf32> to vector<16x128xf32>
    %164 = arith.addf %160, %163 : vector<16x128xf32>
    %c0_68 = arith.constant 0 : index
    %c0_69 = arith.constant 0 : index
    %c0_70 = arith.constant 0 : index
    %165 = vector.load %arg12[%c0_68, %c0_69, %c0_70] : memref<2x1x128xf32, #tpu.memory_space<vmem>>, vector<1x1x128xf32>
    %166 = vector.shape_cast %165 : vector<1x1x128xf32> to vector<1x128xf32>
    %167 = vector.broadcast %166 : vector<1x128xf32> to vector<16x128xf32>
    %168 = arith.mulf %167, %164 : vector<16x128xf32>
    %169 = arith.addf %42, %168 : vector<16x128xf32>
    %c0_71 = arith.constant 0 : index
    %c0_72 = arith.constant 0 : index
    %c0_73 = arith.constant 0 : index
    %170 = vector.load %arg13[%c0_71, %c0_72, %c0_73] : memref<2x1x128xf32, #tpu.memory_space<vmem>>, vector<1x1x128xf32>
    %171 = vector.shape_cast %170 : vector<1x1x128xf32> to vector<1x128xf32>
    %c0_74 = arith.constant 0 : index
    %c0_75 = arith.constant 0 : index
    %c0_76 = arith.constant 0 : index
    %172 = vector.load %arg14[%c0_74, %c0_75, %c0_76] : memref<2x1x128xf32, #tpu.memory_space<vmem>>, vector<1x1x128xf32>
    %173 = vector.shape_cast %172 : vector<1x1x128xf32> to vector<1x128xf32>
    %cst_77 = arith.constant dense<0.000000e+00> : vector<16xf32>
    %174 = vector.multi_reduction <add>, %169, %cst_77 [1] : vector<16x128xf32> to vector<16xf32>
    %175 = vector.shape_cast %174 : vector<16xf32> to vector<16x1xf32>
    %cst_78 = arith.constant 1.280000e+02 : f32
    %176 = vector.broadcast %cst_78 : f32 to vector<16x1xf32>
    %177 = arith.divf %175, %176 : vector<16x1xf32>
    %178 = vector.broadcast %177 : vector<16x1xf32> to vector<16x128xf32>
    %179 = arith.subf %169, %178 : vector<16x128xf32>
    %180 = arith.mulf %179, %179 : vector<16x128xf32>
    %cst_79 = arith.constant dense<0.000000e+00> : vector<16xf32>
    %181 = vector.multi_reduction <add>, %180, %cst_79 [1] : vector<16x128xf32> to vector<16xf32>
    %182 = vector.shape_cast %181 : vector<16xf32> to vector<16x1xf32>
    %cst_80 = arith.constant 1.280000e+02 : f32
    %183 = vector.broadcast %cst_80 : f32 to vector<16x1xf32>
    %184 = arith.divf %182, %183 : vector<16x1xf32>
    %cst_81 = arith.constant 9.99999997E-7 : f32
    %185 = vector.broadcast %cst_81 : f32 to vector<16x1xf32>
    %186 = arith.addf %184, %185 : vector<16x1xf32>
    %187 = math.rsqrt %186 : vector<16x1xf32>
    %188 = vector.broadcast %187 : vector<16x1xf32> to vector<16x128xf32>
    %189 = arith.mulf %179, %188 : vector<16x128xf32>
    %190 = vector.broadcast %171 : vector<1x128xf32> to vector<16x128xf32>
    %191 = arith.mulf %189, %190 : vector<16x128xf32>
    %192 = vector.broadcast %173 : vector<1x128xf32> to vector<16x128xf32>
    %193 = arith.addf %191, %192 : vector<16x128xf32>
    %194 = arith.truncf %193 : vector<16x128xf32> to vector<16x128xbf16>
    %c0_82 = arith.constant 0 : index
    %c0_83 = arith.constant 0 : index
    %c0_84 = arith.constant 0 : index
    %195 = vector.load %arg15[%c0_82, %c0_83, %c0_84] : memref<2x128x512xbf16, #tpu.memory_space<vmem>>, vector<1x128x512xbf16>
    %196 = vector.shape_cast %195 : vector<1x128x512xbf16> to vector<128x512xbf16>
    %cst_85 = arith.constant dense<0.000000e+00> : vector<16x512xf32>
    %197 = tpu.matmul %194, %196, %cst_85 {dimension_numbers = #tpu.dot_dimension_numbers<[1], [0], [0], [1], [0, 0, 1, 1], [], []>} : vector<16x128xbf16>, vector<128x512xbf16>, vector<16x512xf32> -> vector<16x512xf32>
    %c0_86 = arith.constant 0 : index
    %c0_87 = arith.constant 0 : index
    %c0_88 = arith.constant 0 : index
    %198 = vector.load %arg16[%c0_86, %c0_87, %c0_88] : memref<2x1x512xf32, #tpu.memory_space<vmem>>, vector<1x1x512xf32>
    %199 = vector.shape_cast %198 : vector<1x1x512xf32> to vector<1x512xf32>
    %200 = vector.broadcast %199 : vector<1x512xf32> to vector<16x512xf32>
    %201 = arith.addf %197, %200 : vector<16x512xf32>
    %202 = arith.mulf %201, %201 : vector<16x512xf32>
    %203 = arith.mulf %201, %202 : vector<16x512xf32>
    %cst_89 = arith.constant 4.471500e-02 : f32
    %204 = vector.broadcast %cst_89 : f32 to vector<16x512xf32>
    %205 = arith.mulf %204, %203 : vector<16x512xf32>
    %206 = arith.addf %201, %205 : vector<16x512xf32>
    %cst_90 = arith.constant 0.797884583 : f32
    %207 = vector.broadcast %cst_90 : f32 to vector<16x512xf32>
    %208 = arith.mulf %207, %206 : vector<16x512xf32>
    %209 = math.tanh %208 : vector<16x512xf32>
    %cst_91 = arith.constant 1.000000e+00 : f32
    %210 = vector.broadcast %cst_91 : f32 to vector<16x512xf32>
    %211 = arith.addf %210, %209 : vector<16x512xf32>
    %cst_92 = arith.constant 5.000000e-01 : f32
    %212 = vector.broadcast %cst_92 : f32 to vector<16x512xf32>
    %213 = arith.mulf %212, %211 : vector<16x512xf32>
    %214 = arith.mulf %201, %213 : vector<16x512xf32>
    %215 = arith.truncf %214 : vector<16x512xf32> to vector<16x512xbf16>
    %c0_93 = arith.constant 0 : index
    %c0_94 = arith.constant 0 : index
    %c0_95 = arith.constant 0 : index
    %216 = vector.load %arg17[%c0_93, %c0_94, %c0_95] : memref<2x512x128xbf16, #tpu.memory_space<vmem>>, vector<1x512x128xbf16>
    %217 = vector.shape_cast %216 : vector<1x512x128xbf16> to vector<512x128xbf16>
    %cst_96 = arith.constant dense<0.000000e+00> : vector<16x128xf32>
    %218 = tpu.matmul %215, %217, %cst_96 {dimension_numbers = #tpu.dot_dimension_numbers<[1], [0], [0], [1], [0, 0, 1, 1], [], []>} : vector<16x512xbf16>, vector<512x128xbf16>, vector<16x128xf32> -> vector<16x128xf32>
    %c0_97 = arith.constant 0 : index
    %c0_98 = arith.constant 0 : index
    %c0_99 = arith.constant 0 : index
    %219 = vector.load %arg18[%c0_97, %c0_98, %c0_99] : memref<2x1x128xf32, #tpu.memory_space<vmem>>, vector<1x1x128xf32>
    %220 = vector.shape_cast %219 : vector<1x1x128xf32> to vector<1x128xf32>
    %221 = vector.broadcast %220 : vector<1x128xf32> to vector<16x128xf32>
    %222 = arith.addf %218, %221 : vector<16x128xf32>
    %c0_100 = arith.constant 0 : index
    %c0_101 = arith.constant 0 : index
    %c0_102 = arith.constant 0 : index
    %223 = vector.load %arg19[%c0_100, %c0_101, %c0_102] : memref<2x1x128xf32, #tpu.memory_space<vmem>>, vector<1x1x128xf32>
    %224 = vector.shape_cast %223 : vector<1x1x128xf32> to vector<1x128xf32>
    %225 = vector.broadcast %224 : vector<1x128xf32> to vector<16x128xf32>
    %226 = arith.mulf %225, %222 : vector<16x128xf32>
    %227 = arith.addf %169, %226 : vector<16x128xf32>
    %c1_103 = arith.constant 1 : index
    %c0_104 = arith.constant 0 : index
    %c0_105 = arith.constant 0 : index
    %228 = vector.load %arg5[%c1_103, %c0_104, %c0_105] : memref<2x1x128xf32, #tpu.memory_space<vmem>>, vector<1x1x128xf32>
    %229 = vector.shape_cast %228 : vector<1x1x128xf32> to vector<1x128xf32>
    %c1_106 = arith.constant 1 : index
    %c0_107 = arith.constant 0 : index
    %c0_108 = arith.constant 0 : index
    %230 = vector.load %arg6[%c1_106, %c0_107, %c0_108] : memref<2x1x128xf32, #tpu.memory_space<vmem>>, vector<1x1x128xf32>
    %231 = vector.shape_cast %230 : vector<1x1x128xf32> to vector<1x128xf32>
    %cst_109 = arith.constant dense<0.000000e+00> : vector<16xf32>
    %232 = vector.multi_reduction <add>, %227, %cst_109 [1] : vector<16x128xf32> to vector<16xf32>
    %233 = vector.shape_cast %232 : vector<16xf32> to vector<16x1xf32>
    %cst_110 = arith.constant 1.280000e+02 : f32
    %234 = vector.broadcast %cst_110 : f32 to vector<16x1xf32>
    %235 = arith.divf %233, %234 : vector<16x1xf32>
    %236 = vector.broadcast %235 : vector<16x1xf32> to vector<16x128xf32>
    %237 = arith.subf %227, %236 : vector<16x128xf32>
    %238 = arith.mulf %237, %237 : vector<16x128xf32>
    %cst_111 = arith.constant dense<0.000000e+00> : vector<16xf32>
    %239 = vector.multi_reduction <add>, %238, %cst_111 [1] : vector<16x128xf32> to vector<16xf32>
    %240 = vector.shape_cast %239 : vector<16xf32> to vector<16x1xf32>
    %cst_112 = arith.constant 1.280000e+02 : f32
    %241 = vector.broadcast %cst_112 : f32 to vector<16x1xf32>
    %242 = arith.divf %240, %241 : vector<16x1xf32>
    %cst_113 = arith.constant 9.99999997E-7 : f32
    %243 = vector.broadcast %cst_113 : f32 to vector<16x1xf32>
    %244 = arith.addf %242, %243 : vector<16x1xf32>
    %245 = math.rsqrt %244 : vector<16x1xf32>
    %246 = vector.broadcast %245 : vector<16x1xf32> to vector<16x128xf32>
    %247 = arith.mulf %237, %246 : vector<16x128xf32>
    %248 = vector.broadcast %229 : vector<1x128xf32> to vector<16x128xf32>
    %249 = arith.mulf %247, %248 : vector<16x128xf32>
    %250 = vector.broadcast %231 : vector<1x128xf32> to vector<16x128xf32>
    %251 = arith.addf %249, %250 : vector<16x128xf32>
    %252 = arith.truncf %251 : vector<16x128xf32> to vector<16x128xbf16>
    %c1_114 = arith.constant 1 : index
    %c0_115 = arith.constant 0 : index
    %c0_116 = arith.constant 0 : index
    %253 = vector.load %arg7[%c1_114, %c0_115, %c0_116] : memref<2x128x384xbf16, #tpu.memory_space<vmem>>, vector<1x128x384xbf16>
    %254 = vector.shape_cast %253 : vector<1x128x384xbf16> to vector<128x384xbf16>
    %cst_117 = arith.constant dense<0.000000e+00> : vector<16x384xf32>
    %255 = tpu.matmul %252, %254, %cst_117 {dimension_numbers = #tpu.dot_dimension_numbers<[1], [0], [0], [1], [0, 0, 1, 1], [], []>} : vector<16x128xbf16>, vector<128x384xbf16>, vector<16x384xf32> -> vector<16x384xf32>
    %c1_118 = arith.constant 1 : index
    %c0_119 = arith.constant 0 : index
    %c0_120 = arith.constant 0 : index
    %256 = vector.load %arg8[%c1_118, %c0_119, %c0_120] : memref<2x1x384xf32, #tpu.memory_space<vmem>>, vector<1x1x384xf32>
    %257 = vector.shape_cast %256 : vector<1x1x384xf32> to vector<1x384xf32>
    %258 = vector.broadcast %257 : vector<1x384xf32> to vector<16x384xf32>
    %259 = arith.addf %255, %258 : vector<16x384xf32>
    %260 = vector.extract_strided_slice %259 {offsets = [0, 0], sizes = [16, 128], strides = [1, 1]} : vector<16x384xf32> to vector<16x128xf32>
    %261 = vector.extract_strided_slice %259 {offsets = [0, 128], sizes = [16, 128], strides = [1, 1]} : vector<16x384xf32> to vector<16x128xf32>
    %262 = vector.extract_strided_slice %259 {offsets = [0, 256], sizes = [16, 128], strides = [1, 1]} : vector<16x384xf32> to vector<16x128xf32>
    %263 = vector.extract_strided_slice %260 {offsets = [0, 0], sizes = [8, 64], strides = [1, 1]} : vector<16x128xf32> to vector<8x64xf32>
    %264 = vector.extract_strided_slice %261 {offsets = [0, 0], sizes = [8, 64], strides = [1, 1]} : vector<16x128xf32> to vector<8x64xf32>
    %265 = vector.extract_strided_slice %262 {offsets = [0, 0], sizes = [8, 64], strides = [1, 1]} : vector<16x128xf32> to vector<8x64xf32>
    %cst_121 = arith.constant dense<0.000000e+00> : vector<8x8xf32>
    %266 = tpu.matmul %263, %264, %cst_121 {dimension_numbers = #tpu.dot_dimension_numbers<[1], [1], [0], [0], [0, 0, 1, 0], [], []>} : vector<8x64xf32>, vector<8x64xf32>, vector<8x8xf32> -> vector<8x8xf32>
    %cst_122 = arith.constant 1.250000e-01 : f32
    %267 = vector.broadcast %cst_122 : f32 to vector<8x8xf32>
    %268 = arith.mulf %266, %267 : vector<8x8xf32>
    %c2 = arith.constant 2 : index
    %c0_123 = arith.constant 0 : index
    %c0_124 = arith.constant 0 : index
    %269 = vector.load %arg9[%c2, %c0_123, %c0_124] : memref<4x8x8xf32, #tpu.memory_space<vmem>>, vector<1x8x8xf32>
    %270 = vector.shape_cast %269 : vector<1x8x8xf32> to vector<8x8xf32>
    %271 = arith.addf %268, %270 : vector<8x8xf32>
    %cst_125 = arith.constant dense<0xFF800000> : vector<8xf32>
    %272 = vector.multi_reduction <maximumf>, %271, %cst_125 [1] : vector<8x8xf32> to vector<8xf32>
    %273 = vector.shape_cast %272 : vector<8xf32> to vector<8x1xf32>
    %274 = vector.broadcast %273 : vector<8x1xf32> to vector<8x8xf32>
    %275 = arith.subf %271, %274 : vector<8x8xf32>
    %276 = math.exp %275 : vector<8x8xf32>
    %cst_126 = arith.constant dense<0.000000e+00> : vector<8xf32>
    %277 = vector.multi_reduction <add>, %276, %cst_126 [1] : vector<8x8xf32> to vector<8xf32>
    %278 = vector.shape_cast %277 : vector<8xf32> to vector<8x1xf32>
    %279 = vector.broadcast %278 : vector<8x1xf32> to vector<8x8xf32>
    %280 = arith.divf %276, %279 : vector<8x8xf32>
    %cst_127 = arith.constant dense<0.000000e+00> : vector<8x64xf32>
    %281 = tpu.matmul %280, %265, %cst_127 {dimension_numbers = #tpu.dot_dimension_numbers<[1], [0], [0], [1], [0, 0, 1, 1], [], []>} : vector<8x8xf32>, vector<8x64xf32>, vector<8x64xf32> -> vector<8x64xf32>
    %282 = vector.extract_strided_slice %260 {offsets = [0, 64], sizes = [8, 64], strides = [1, 1]} : vector<16x128xf32> to vector<8x64xf32>
    %283 = vector.extract_strided_slice %261 {offsets = [0, 64], sizes = [8, 64], strides = [1, 1]} : vector<16x128xf32> to vector<8x64xf32>
    %284 = vector.extract_strided_slice %262 {offsets = [0, 64], sizes = [8, 64], strides = [1, 1]} : vector<16x128xf32> to vector<8x64xf32>
    %cst_128 = arith.constant dense<0.000000e+00> : vector<8x8xf32>
    %285 = tpu.matmul %282, %283, %cst_128 {dimension_numbers = #tpu.dot_dimension_numbers<[1], [1], [0], [0], [0, 0, 1, 0], [], []>} : vector<8x64xf32>, vector<8x64xf32>, vector<8x8xf32> -> vector<8x8xf32>
    %cst_129 = arith.constant 1.250000e-01 : f32
    %286 = vector.broadcast %cst_129 : f32 to vector<8x8xf32>
    %287 = arith.mulf %285, %286 : vector<8x8xf32>
    %c3 = arith.constant 3 : index
    %c0_130 = arith.constant 0 : index
    %c0_131 = arith.constant 0 : index
    %288 = vector.load %arg9[%c3, %c0_130, %c0_131] : memref<4x8x8xf32, #tpu.memory_space<vmem>>, vector<1x8x8xf32>
    %289 = vector.shape_cast %288 : vector<1x8x8xf32> to vector<8x8xf32>
    %290 = arith.addf %287, %289 : vector<8x8xf32>
    %cst_132 = arith.constant dense<0xFF800000> : vector<8xf32>
    %291 = vector.multi_reduction <maximumf>, %290, %cst_132 [1] : vector<8x8xf32> to vector<8xf32>
    %292 = vector.shape_cast %291 : vector<8xf32> to vector<8x1xf32>
    %293 = vector.broadcast %292 : vector<8x1xf32> to vector<8x8xf32>
    %294 = arith.subf %290, %293 : vector<8x8xf32>
    %295 = math.exp %294 : vector<8x8xf32>
    %cst_133 = arith.constant dense<0.000000e+00> : vector<8xf32>
    %296 = vector.multi_reduction <add>, %295, %cst_133 [1] : vector<8x8xf32> to vector<8xf32>
    %297 = vector.shape_cast %296 : vector<8xf32> to vector<8x1xf32>
    %298 = vector.broadcast %297 : vector<8x1xf32> to vector<8x8xf32>
    %299 = arith.divf %295, %298 : vector<8x8xf32>
    %cst_134 = arith.constant dense<0.000000e+00> : vector<8x64xf32>
    %300 = tpu.matmul %299, %284, %cst_134 {dimension_numbers = #tpu.dot_dimension_numbers<[1], [0], [0], [1], [0, 0, 1, 1], [], []>} : vector<8x8xf32>, vector<8x64xf32>, vector<8x64xf32> -> vector<8x64xf32>
    %301 = tpu.concatenate %281, %300 in 1 : vector<8x64xf32>, vector<8x64xf32> -> vector<8x128xf32>
    %302 = vector.extract_strided_slice %260 {offsets = [8, 0], sizes = [8, 64], strides = [1, 1]} : vector<16x128xf32> to vector<8x64xf32>
    %303 = vector.extract_strided_slice %261 {offsets = [8, 0], sizes = [8, 64], strides = [1, 1]} : vector<16x128xf32> to vector<8x64xf32>
    %304 = vector.extract_strided_slice %262 {offsets = [8, 0], sizes = [8, 64], strides = [1, 1]} : vector<16x128xf32> to vector<8x64xf32>
    %cst_135 = arith.constant dense<0.000000e+00> : vector<8x8xf32>
    %305 = tpu.matmul %302, %303, %cst_135 {dimension_numbers = #tpu.dot_dimension_numbers<[1], [1], [0], [0], [0, 0, 1, 0], [], []>} : vector<8x64xf32>, vector<8x64xf32>, vector<8x8xf32> -> vector<8x8xf32>
    %cst_136 = arith.constant 1.250000e-01 : f32
    %306 = vector.broadcast %cst_136 : f32 to vector<8x8xf32>
    %307 = arith.mulf %305, %306 : vector<8x8xf32>
    %c2_137 = arith.constant 2 : index
    %c0_138 = arith.constant 0 : index
    %c0_139 = arith.constant 0 : index
    %308 = vector.load %arg9[%c2_137, %c0_138, %c0_139] : memref<4x8x8xf32, #tpu.memory_space<vmem>>, vector<1x8x8xf32>
    %309 = vector.shape_cast %308 : vector<1x8x8xf32> to vector<8x8xf32>
    %310 = arith.addf %307, %309 : vector<8x8xf32>
    %cst_140 = arith.constant dense<0xFF800000> : vector<8xf32>
    %311 = vector.multi_reduction <maximumf>, %310, %cst_140 [1] : vector<8x8xf32> to vector<8xf32>
    %312 = vector.shape_cast %311 : vector<8xf32> to vector<8x1xf32>
    %313 = vector.broadcast %312 : vector<8x1xf32> to vector<8x8xf32>
    %314 = arith.subf %310, %313 : vector<8x8xf32>
    %315 = math.exp %314 : vector<8x8xf32>
    %cst_141 = arith.constant dense<0.000000e+00> : vector<8xf32>
    %316 = vector.multi_reduction <add>, %315, %cst_141 [1] : vector<8x8xf32> to vector<8xf32>
    %317 = vector.shape_cast %316 : vector<8xf32> to vector<8x1xf32>
    %318 = vector.broadcast %317 : vector<8x1xf32> to vector<8x8xf32>
    %319 = arith.divf %315, %318 : vector<8x8xf32>
    %cst_142 = arith.constant dense<0.000000e+00> : vector<8x64xf32>
    %320 = tpu.matmul %319, %304, %cst_142 {dimension_numbers = #tpu.dot_dimension_numbers<[1], [0], [0], [1], [0, 0, 1, 1], [], []>} : vector<8x8xf32>, vector<8x64xf32>, vector<8x64xf32> -> vector<8x64xf32>
    %321 = vector.extract_strided_slice %260 {offsets = [8, 64], sizes = [8, 64], strides = [1, 1]} : vector<16x128xf32> to vector<8x64xf32>
    %322 = vector.extract_strided_slice %261 {offsets = [8, 64], sizes = [8, 64], strides = [1, 1]} : vector<16x128xf32> to vector<8x64xf32>
    %323 = vector.extract_strided_slice %262 {offsets = [8, 64], sizes = [8, 64], strides = [1, 1]} : vector<16x128xf32> to vector<8x64xf32>
    %cst_143 = arith.constant dense<0.000000e+00> : vector<8x8xf32>
    %324 = tpu.matmul %321, %322, %cst_143 {dimension_numbers = #tpu.dot_dimension_numbers<[1], [1], [0], [0], [0, 0, 1, 0], [], []>} : vector<8x64xf32>, vector<8x64xf32>, vector<8x8xf32> -> vector<8x8xf32>
    %cst_144 = arith.constant 1.250000e-01 : f32
    %325 = vector.broadcast %cst_144 : f32 to vector<8x8xf32>
    %326 = arith.mulf %324, %325 : vector<8x8xf32>
    %c3_145 = arith.constant 3 : index
    %c0_146 = arith.constant 0 : index
    %c0_147 = arith.constant 0 : index
    %327 = vector.load %arg9[%c3_145, %c0_146, %c0_147] : memref<4x8x8xf32, #tpu.memory_space<vmem>>, vector<1x8x8xf32>
    %328 = vector.shape_cast %327 : vector<1x8x8xf32> to vector<8x8xf32>
    %329 = arith.addf %326, %328 : vector<8x8xf32>
    %cst_148 = arith.constant dense<0xFF800000> : vector<8xf32>
    %330 = vector.multi_reduction <maximumf>, %329, %cst_148 [1] : vector<8x8xf32> to vector<8xf32>
    %331 = vector.shape_cast %330 : vector<8xf32> to vector<8x1xf32>
    %332 = vector.broadcast %331 : vector<8x1xf32> to vector<8x8xf32>
    %333 = arith.subf %329, %332 : vector<8x8xf32>
    %334 = math.exp %333 : vector<8x8xf32>
    %cst_149 = arith.constant dense<0.000000e+00> : vector<8xf32>
    %335 = vector.multi_reduction <add>, %334, %cst_149 [1] : vector<8x8xf32> to vector<8xf32>
    %336 = vector.shape_cast %335 : vector<8xf32> to vector<8x1xf32>
    %337 = vector.broadcast %336 : vector<8x1xf32> to vector<8x8xf32>
    %338 = arith.divf %334, %337 : vector<8x8xf32>
    %cst_150 = arith.constant dense<0.000000e+00> : vector<8x64xf32>
    %339 = tpu.matmul %338, %323, %cst_150 {dimension_numbers = #tpu.dot_dimension_numbers<[1], [0], [0], [1], [0, 0, 1, 1], [], []>} : vector<8x8xf32>, vector<8x64xf32>, vector<8x64xf32> -> vector<8x64xf32>
    %340 = tpu.concatenate %320, %339 in 1 : vector<8x64xf32>, vector<8x64xf32> -> vector<8x128xf32>
    %341 = tpu.concatenate %301, %340 in 0 : vector<8x128xf32>, vector<8x128xf32> -> vector<16x128xf32>
    %342 = arith.truncf %341 : vector<16x128xf32> to vector<16x128xbf16>
    %c1_151 = arith.constant 1 : index
    %c0_152 = arith.constant 0 : index
    %c0_153 = arith.constant 0 : index
    %343 = vector.load %arg10[%c1_151, %c0_152, %c0_153] : memref<2x128x128xbf16, #tpu.memory_space<vmem>>, vector<1x128x128xbf16>
    %344 = vector.shape_cast %343 : vector<1x128x128xbf16> to vector<128x128xbf16>
    %cst_154 = arith.constant dense<0.000000e+00> : vector<16x128xf32>
    %345 = tpu.matmul %342, %344, %cst_154 {dimension_numbers = #tpu.dot_dimension_numbers<[1], [0], [0], [1], [0, 0, 1, 1], [], []>} : vector<16x128xbf16>, vector<128x128xbf16>, vector<16x128xf32> -> vector<16x128xf32>
    %c1_155 = arith.constant 1 : index
    %c0_156 = arith.constant 0 : index
    %c0_157 = arith.constant 0 : index
    %346 = vector.load %arg11[%c1_155, %c0_156, %c0_157] : memref<2x1x128xf32, #tpu.memory_space<vmem>>, vector<1x1x128xf32>
    %347 = vector.shape_cast %346 : vector<1x1x128xf32> to vector<1x128xf32>
    %348 = vector.broadcast %347 : vector<1x128xf32> to vector<16x128xf32>
    %349 = arith.addf %345, %348 : vector<16x128xf32>
    %c1_158 = arith.constant 1 : index
    %c0_159 = arith.constant 0 : index
    %c0_160 = arith.constant 0 : index
    %350 = vector.load %arg12[%c1_158, %c0_159, %c0_160] : memref<2x1x128xf32, #tpu.memory_space<vmem>>, vector<1x1x128xf32>
    %351 = vector.shape_cast %350 : vector<1x1x128xf32> to vector<1x128xf32>
    %352 = vector.broadcast %351 : vector<1x128xf32> to vector<16x128xf32>
    %353 = arith.mulf %352, %349 : vector<16x128xf32>
    %354 = arith.addf %227, %353 : vector<16x128xf32>
    %c1_161 = arith.constant 1 : index
    %c0_162 = arith.constant 0 : index
    %c0_163 = arith.constant 0 : index
    %355 = vector.load %arg13[%c1_161, %c0_162, %c0_163] : memref<2x1x128xf32, #tpu.memory_space<vmem>>, vector<1x1x128xf32>
    %356 = vector.shape_cast %355 : vector<1x1x128xf32> to vector<1x128xf32>
    %c1_164 = arith.constant 1 : index
    %c0_165 = arith.constant 0 : index
    %c0_166 = arith.constant 0 : index
    %357 = vector.load %arg14[%c1_164, %c0_165, %c0_166] : memref<2x1x128xf32, #tpu.memory_space<vmem>>, vector<1x1x128xf32>
    %358 = vector.shape_cast %357 : vector<1x1x128xf32> to vector<1x128xf32>
    %cst_167 = arith.constant dense<0.000000e+00> : vector<16xf32>
    %359 = vector.multi_reduction <add>, %354, %cst_167 [1] : vector<16x128xf32> to vector<16xf32>
    %360 = vector.shape_cast %359 : vector<16xf32> to vector<16x1xf32>
    %cst_168 = arith.constant 1.280000e+02 : f32
    %361 = vector.broadcast %cst_168 : f32 to vector<16x1xf32>
    %362 = arith.divf %360, %361 : vector<16x1xf32>
    %363 = vector.broadcast %362 : vector<16x1xf32> to vector<16x128xf32>
    %364 = arith.subf %354, %363 : vector<16x128xf32>
    %365 = arith.mulf %364, %364 : vector<16x128xf32>
    %cst_169 = arith.constant dense<0.000000e+00> : vector<16xf32>
    %366 = vector.multi_reduction <add>, %365, %cst_169 [1] : vector<16x128xf32> to vector<16xf32>
    %367 = vector.shape_cast %366 : vector<16xf32> to vector<16x1xf32>
    %cst_170 = arith.constant 1.280000e+02 : f32
    %368 = vector.broadcast %cst_170 : f32 to vector<16x1xf32>
    %369 = arith.divf %367, %368 : vector<16x1xf32>
    %cst_171 = arith.constant 9.99999997E-7 : f32
    %370 = vector.broadcast %cst_171 : f32 to vector<16x1xf32>
    %371 = arith.addf %369, %370 : vector<16x1xf32>
    %372 = math.rsqrt %371 : vector<16x1xf32>
    %373 = vector.broadcast %372 : vector<16x1xf32> to vector<16x128xf32>
    %374 = arith.mulf %364, %373 : vector<16x128xf32>
    %375 = vector.broadcast %356 : vector<1x128xf32> to vector<16x128xf32>
    %376 = arith.mulf %374, %375 : vector<16x128xf32>
    %377 = vector.broadcast %358 : vector<1x128xf32> to vector<16x128xf32>
    %378 = arith.addf %376, %377 : vector<16x128xf32>
    %379 = arith.truncf %378 : vector<16x128xf32> to vector<16x128xbf16>
    %c1_172 = arith.constant 1 : index
    %c0_173 = arith.constant 0 : index
    %c0_174 = arith.constant 0 : index
    %380 = vector.load %arg15[%c1_172, %c0_173, %c0_174] : memref<2x128x512xbf16, #tpu.memory_space<vmem>>, vector<1x128x512xbf16>
    %381 = vector.shape_cast %380 : vector<1x128x512xbf16> to vector<128x512xbf16>
    %cst_175 = arith.constant dense<0.000000e+00> : vector<16x512xf32>
    %382 = tpu.matmul %379, %381, %cst_175 {dimension_numbers = #tpu.dot_dimension_numbers<[1], [0], [0], [1], [0, 0, 1, 1], [], []>} : vector<16x128xbf16>, vector<128x512xbf16>, vector<16x512xf32> -> vector<16x512xf32>
    %c1_176 = arith.constant 1 : index
    %c0_177 = arith.constant 0 : index
    %c0_178 = arith.constant 0 : index
    %383 = vector.load %arg16[%c1_176, %c0_177, %c0_178] : memref<2x1x512xf32, #tpu.memory_space<vmem>>, vector<1x1x512xf32>
    %384 = vector.shape_cast %383 : vector<1x1x512xf32> to vector<1x512xf32>
    %385 = vector.broadcast %384 : vector<1x512xf32> to vector<16x512xf32>
    %386 = arith.addf %382, %385 : vector<16x512xf32>
    %387 = arith.mulf %386, %386 : vector<16x512xf32>
    %388 = arith.mulf %386, %387 : vector<16x512xf32>
    %cst_179 = arith.constant 4.471500e-02 : f32
    %389 = vector.broadcast %cst_179 : f32 to vector<16x512xf32>
    %390 = arith.mulf %389, %388 : vector<16x512xf32>
    %391 = arith.addf %386, %390 : vector<16x512xf32>
    %cst_180 = arith.constant 0.797884583 : f32
    %392 = vector.broadcast %cst_180 : f32 to vector<16x512xf32>
    %393 = arith.mulf %392, %391 : vector<16x512xf32>
    %394 = math.tanh %393 : vector<16x512xf32>
    %cst_181 = arith.constant 1.000000e+00 : f32
    %395 = vector.broadcast %cst_181 : f32 to vector<16x512xf32>
    %396 = arith.addf %395, %394 : vector<16x512xf32>
    %cst_182 = arith.constant 5.000000e-01 : f32
    %397 = vector.broadcast %cst_182 : f32 to vector<16x512xf32>
    %398 = arith.mulf %397, %396 : vector<16x512xf32>
    %399 = arith.mulf %386, %398 : vector<16x512xf32>
    %400 = arith.truncf %399 : vector<16x512xf32> to vector<16x512xbf16>
    %c1_183 = arith.constant 1 : index
    %c0_184 = arith.constant 0 : index
    %c0_185 = arith.constant 0 : index
    %401 = vector.load %arg17[%c1_183, %c0_184, %c0_185] : memref<2x512x128xbf16, #tpu.memory_space<vmem>>, vector<1x512x128xbf16>
    %402 = vector.shape_cast %401 : vector<1x512x128xbf16> to vector<512x128xbf16>
    %cst_186 = arith.constant dense<0.000000e+00> : vector<16x128xf32>
    %403 = tpu.matmul %400, %402, %cst_186 {dimension_numbers = #tpu.dot_dimension_numbers<[1], [0], [0], [1], [0, 0, 1, 1], [], []>} : vector<16x512xbf16>, vector<512x128xbf16>, vector<16x128xf32> -> vector<16x128xf32>
    %c1_187 = arith.constant 1 : index
    %c0_188 = arith.constant 0 : index
    %c0_189 = arith.constant 0 : index
    %404 = vector.load %arg18[%c1_187, %c0_188, %c0_189] : memref<2x1x128xf32, #tpu.memory_space<vmem>>, vector<1x1x128xf32>
    %405 = vector.shape_cast %404 : vector<1x1x128xf32> to vector<1x128xf32>
    %406 = vector.broadcast %405 : vector<1x128xf32> to vector<16x128xf32>
    %407 = arith.addf %403, %406 : vector<16x128xf32>
    %c1_190 = arith.constant 1 : index
    %c0_191 = arith.constant 0 : index
    %c0_192 = arith.constant 0 : index
    %408 = vector.load %arg19[%c1_190, %c0_191, %c0_192] : memref<2x1x128xf32, #tpu.memory_space<vmem>>, vector<1x1x128xf32>
    %409 = vector.shape_cast %408 : vector<1x1x128xf32> to vector<1x128xf32>
    %410 = vector.broadcast %409 : vector<1x128xf32> to vector<16x128xf32>
    %411 = arith.mulf %410, %407 : vector<16x128xf32>
    %412 = arith.addf %354, %411 : vector<16x128xf32>
    %c0_193 = arith.constant 0 : index
    %c0_194 = arith.constant 0 : index
    %413 = vector.load %arg20[%c0_193, %c0_194] : memref<8x16xf32, #tpu.memory_space<vmem>>, vector<8x16xf32>
    %cst_195 = arith.constant dense<0.000000e+00> : vector<8x128xf32>
    %414 = tpu.matmul %413, %412, %cst_195 {dimension_numbers = #tpu.dot_dimension_numbers<[1], [0], [0], [1], [0, 0, 1, 1], [], []>} : vector<8x16xf32>, vector<16x128xf32>, vector<8x128xf32> -> vector<8x128xf32>
    %c0_196 = arith.constant 0 : index
    %c0_197 = arith.constant 0 : index
    %415 = vector.load %arg21[%c0_196, %c0_197] : memref<1x128xf32, #tpu.memory_space<vmem>>, vector<1x128xf32>
    %c0_198 = arith.constant 0 : index
    %c0_199 = arith.constant 0 : index
    %416 = vector.load %arg22[%c0_198, %c0_199] : memref<1x128xf32, #tpu.memory_space<vmem>>, vector<1x128xf32>
    %cst_200 = arith.constant dense<0.000000e+00> : vector<8xf32>
    %417 = vector.multi_reduction <add>, %414, %cst_200 [1] : vector<8x128xf32> to vector<8xf32>
    %418 = vector.shape_cast %417 : vector<8xf32> to vector<8x1xf32>
    %cst_201 = arith.constant 1.280000e+02 : f32
    %419 = vector.broadcast %cst_201 : f32 to vector<8x1xf32>
    %420 = arith.divf %418, %419 : vector<8x1xf32>
    %421 = vector.broadcast %420 : vector<8x1xf32> to vector<8x128xf32>
    %422 = arith.subf %414, %421 : vector<8x128xf32>
    %423 = arith.mulf %422, %422 : vector<8x128xf32>
    %cst_202 = arith.constant dense<0.000000e+00> : vector<8xf32>
    %424 = vector.multi_reduction <add>, %423, %cst_202 [1] : vector<8x128xf32> to vector<8xf32>
    %425 = vector.shape_cast %424 : vector<8xf32> to vector<8x1xf32>
    %cst_203 = arith.constant 1.280000e+02 : f32
    %426 = vector.broadcast %cst_203 : f32 to vector<8x1xf32>
    %427 = arith.divf %425, %426 : vector<8x1xf32>
    %cst_204 = arith.constant 9.99999997E-7 : f32
    %428 = vector.broadcast %cst_204 : f32 to vector<8x1xf32>
    %429 = arith.addf %427, %428 : vector<8x1xf32>
    %430 = math.rsqrt %429 : vector<8x1xf32>
    %431 = vector.broadcast %430 : vector<8x1xf32> to vector<8x128xf32>
    %432 = arith.mulf %422, %431 : vector<8x128xf32>
    %433 = vector.broadcast %415 : vector<1x128xf32> to vector<8x128xf32>
    %434 = arith.mulf %432, %433 : vector<8x128xf32>
    %435 = vector.broadcast %416 : vector<1x128xf32> to vector<8x128xf32>
    %436 = arith.addf %434, %435 : vector<8x128xf32>
    %437 = arith.truncf %436 : vector<8x128xf32> to vector<8x128xbf16>
    %c0_205 = arith.constant 0 : index
    %c0_206 = arith.constant 0 : index
    %438 = vector.load %arg23[%c0_205, %c0_206] : memref<128x256xbf16, #tpu.memory_space<vmem>>, vector<128x256xbf16>
    %cst_207 = arith.constant dense<0.000000e+00> : vector<8x256xf32>
    %439 = tpu.matmul %437, %438, %cst_207 {dimension_numbers = #tpu.dot_dimension_numbers<[1], [0], [0], [1], [0, 0, 1, 1], [], []>} : vector<8x128xbf16>, vector<128x256xbf16>, vector<8x256xf32> -> vector<8x256xf32>
    %c0_208 = arith.constant 0 : index
    %c0_209 = arith.constant 0 : index
    %440 = vector.load %arg24[%c0_208, %c0_209] : memref<1x256xf32, #tpu.memory_space<vmem>>, vector<1x256xf32>
    %441 = vector.broadcast %440 : vector<1x256xf32> to vector<8x256xf32>
    %442 = arith.addf %439, %441 : vector<8x256xf32>
    %c0_210 = arith.constant 0 : index
    %c0_211 = arith.constant 0 : index
    %443 = vector.load %arg25[%c0_210, %c0_211] : memref<8x256xf32, #tpu.memory_space<vmem>>, vector<8x256xf32>
    tpu.vector_store %arg25[%c0_210, %c0_211], %442 {strides = array<i32>} : memref<8x256xf32, #tpu.memory_space<vmem>>, vector<8x256xf32>,
    return
  }
  func.func @transform_0(%arg0: i32) -> (i32, i32) {
    %c0_i32 = arith.constant 0 : i32
    %c0_i32_0 = arith.constant 0 : i32
    %c0_i32_1 = arith.constant 0 : i32
    return %c0_i32, %c0_i32_0 : i32, i32
  }
  func.func @transform_1(%arg0: i32) -> (i32, i32) {
    %c0_i32 = arith.constant 0 : i32
    %c0_i32_0 = arith.constant 0 : i32
    %c0_i32_1 = arith.constant 0 : i32
    return %c0_i32, %c0_i32_0 : i32, i32
  }
  func.func @transform_2(%arg0: i32) -> (i32, i32) {
    %c0_i32 = arith.constant 0 : i32
    %c0_i32_0 = arith.constant 0 : i32
    %c0_i32_1 = arith.constant 0 : i32
    return %c0_i32, %c0_i32_0 : i32, i32
  }
  func.func @transform_3(%arg0: i32) -> (i32, i32) {
    %c0_i32 = arith.constant 0 : i32
    %c0_i32_0 = arith.constant 0 : i32
    %c0_i32_1 = arith.constant 0 : i32
    return %c0_i32, %c0_i32_0 : i32, i32
  }
  func.func @transform_4(%arg0: i32) -> (i32, i32, i32) {
    %c0_i32 = arith.constant 0 : i32
    %c0_i32_0 = arith.constant 0 : i32
    %c0_i32_1 = arith.constant 0 : i32
    %c0_i32_2 = arith.constant 0 : i32
    return %c0_i32, %c0_i32_0, %c0_i32_1 : i32, i32, i32
  }
  func.func @transform_5(%arg0: i32) -> (i32, i32, i32) {
    %c0_i32 = arith.constant 0 : i32
    %c0_i32_0 = arith.constant 0 : i32
    %c0_i32_1 = arith.constant 0 : i32
    %c0_i32_2 = arith.constant 0 : i32
    return %c0_i32, %c0_i32_0, %c0_i32_1 : i32, i32, i32
  }
  func.func @transform_6(%arg0: i32) -> (i32, i32, i32) {
    %c0_i32 = arith.constant 0 : i32
    %c0_i32_0 = arith.constant 0 : i32
    %c0_i32_1 = arith.constant 0 : i32
    %c0_i32_2 = arith.constant 0 : i32
    return %c0_i32, %c0_i32_0, %c0_i32_1 : i32, i32, i32
  }
  func.func @transform_7(%arg0: i32) -> (i32, i32, i32) {
    %c0_i32 = arith.constant 0 : i32
    %c0_i32_0 = arith.constant 0 : i32
    %c0_i32_1 = arith.constant 0 : i32
    %c0_i32_2 = arith.constant 0 : i32
    return %c0_i32, %c0_i32_0, %c0_i32_1 : i32, i32, i32
  }
  func.func @transform_8(%arg0: i32) -> (i32, i32, i32) {
    %c0_i32 = arith.constant 0 : i32
    %c0_i32_0 = arith.constant 0 : i32
    %c0_i32_1 = arith.constant 0 : i32
    %c0_i32_2 = arith.constant 0 : i32
    return %c0_i32, %c0_i32_0, %c0_i32_1 : i32, i32, i32
  }
  func.func @transform_9(%arg0: i32) -> (i32, i32, i32) {
    %c0_i32 = arith.constant 0 : i32
    %c0_i32_0 = arith.constant 0 : i32
    %c0_i32_1 = arith.constant 0 : i32
    %c0_i32_2 = arith.constant 0 : i32
    return %c0_i32, %c0_i32_0, %c0_i32_1 : i32, i32, i32
  }
  func.func @transform_10(%arg0: i32) -> (i32, i32, i32) {
    %c0_i32 = arith.constant 0 : i32
    %c0_i32_0 = arith.constant 0 : i32
    %c0_i32_1 = arith.constant 0 : i32
    %c0_i32_2 = arith.constant 0 : i32
    return %c0_i32, %c0_i32_0, %c0_i32_1 : i32, i32, i32
  }
  func.func @transform_11(%arg0: i32) -> (i32, i32, i32) {
    %c0_i32 = arith.constant 0 : i32
    %c0_i32_0 = arith.constant 0 : i32
    %c0_i32_1 = arith.constant 0 : i32
    %c0_i32_2 = arith.constant 0 : i32
    return %c0_i32, %c0_i32_0, %c0_i32_1 : i32, i32, i32
  }
  func.func @transform_12(%arg0: i32) -> (i32, i32, i32) {
    %c0_i32 = arith.constant 0 : i32
    %c0_i32_0 = arith.constant 0 : i32
    %c0_i32_1 = arith.constant 0 : i32
    %c0_i32_2 = arith.constant 0 : i32
    return %c0_i32, %c0_i32_0, %c0_i32_1 : i32, i32, i32
  }
  func.func @transform_13(%arg0: i32) -> (i32, i32, i32) {
    %c0_i32 = arith.constant 0 : i32
    %c0_i32_0 = arith.constant 0 : i32
    %c0_i32_1 = arith.constant 0 : i32
    %c0_i32_2 = arith.constant 0 : i32
    return %c0_i32, %c0_i32_0, %c0_i32_1 : i32, i32, i32
  }
  func.func @transform_14(%arg0: i32) -> (i32, i32, i32) {
    %c0_i32 = arith.constant 0 : i32
    %c0_i32_0 = arith.constant 0 : i32
    %c0_i32_1 = arith.constant 0 : i32
    %c0_i32_2 = arith.constant 0 : i32
    return %c0_i32, %c0_i32_0, %c0_i32_1 : i32, i32, i32
  }
  func.func @transform_15(%arg0: i32) -> (i32, i32, i32) {
    %c0_i32 = arith.constant 0 : i32
    %c0_i32_0 = arith.constant 0 : i32
    %c0_i32_1 = arith.constant 0 : i32
    %c0_i32_2 = arith.constant 0 : i32
    return %c0_i32, %c0_i32_0, %c0_i32_1 : i32, i32, i32
  }
  func.func @transform_16(%arg0: i32) -> (i32, i32, i32) {
    %c0_i32 = arith.constant 0 : i32
    %c0_i32_0 = arith.constant 0 : i32
    %c0_i32_1 = arith.constant 0 : i32
    %c0_i32_2 = arith.constant 0 : i32
    return %c0_i32, %c0_i32_0, %c0_i32_1 : i32, i32, i32
  }
  func.func @transform_17(%arg0: i32) -> (i32, i32, i32) {
    %c0_i32 = arith.constant 0 : i32
    %c0_i32_0 = arith.constant 0 : i32
    %c0_i32_1 = arith.constant 0 : i32
    %c0_i32_2 = arith.constant 0 : i32
    return %c0_i32, %c0_i32_0, %c0_i32_1 : i32, i32, i32
  }
  func.func @transform_18(%arg0: i32) -> (i32, i32, i32) {
    %c0_i32 = arith.constant 0 : i32
    %c0_i32_0 = arith.constant 0 : i32
    %c0_i32_1 = arith.constant 0 : i32
    %c0_i32_2 = arith.constant 0 : i32
    return %c0_i32, %c0_i32_0, %c0_i32_1 : i32, i32, i32
  }
  func.func @transform_19(%arg0: i32) -> (i32, i32) {
    %c0_i32 = arith.constant 0 : i32
    %c0_i32_0 = arith.constant 0 : i32
    %c0_i32_1 = arith.constant 0 : i32
    return %c0_i32, %c0_i32_0 : i32, i32
  }
  func.func @transform_20(%arg0: i32) -> (i32, i32) {
    %c0_i32 = arith.constant 0 : i32
    %c0_i32_0 = arith.constant 0 : i32
    %c0_i32_1 = arith.constant 0 : i32
    return %c0_i32, %c0_i32_0 : i32, i32
  }
  func.func @transform_21(%arg0: i32) -> (i32, i32) {
    %c0_i32 = arith.constant 0 : i32
    %c0_i32_0 = arith.constant 0 : i32
    %c0_i32_1 = arith.constant 0 : i32
    return %c0_i32, %c0_i32_0 : i32, i32
  }
  func.func @transform_22(%arg0: i32) -> (i32, i32) {
    %c0_i32 = arith.constant 0 : i32
    %c0_i32_0 = arith.constant 0 : i32
    %c0_i32_1 = arith.constant 0 : i32
    return %c0_i32, %c0_i32_0 : i32, i32
  }
  func.func @transform_23(%arg0: i32) -> (i32, i32) {
    %c0_i32 = arith.constant 0 : i32
    %c0_i32_0 = arith.constant 0 : i32
    %c0_i32_1 = arith.constant 0 : i32
    return %c0_i32, %c0_i32_0 : i32, i32
  }
  func.func @transform_24(%arg0: i32) -> (i32, i32) {
    %c0_i32 = arith.constant 0 : i32
    %c0_i32_0 = arith.constant 0 : i32
    %c0_i32_1 = arith.constant 0 : i32
    return %c0_i32, %c0_i32_0 : i32, i32
  }
}

</mosaic_0001>

<llo_original>
// kernel: beit_forward.1
$region0: #{beit_forward.1}
  #allocation0 [shape = 'u32[]', space=smem, size = 0x4, offset = 0x4, fixed_abs, tag = 'smem constant byte address 0x4 - core index']
  #allocation1 [shape = 'u32[72,128]{1,0:T(1,128)}', space=vmem, size = 0x9000, scoped, tag = 'internal scratch']
  %s0 = inlined_call_operand.vmem [shape: f32[16,256], index: 0, kind: input, shape index: {}]
  %s1 = inlined_call_operand.hbm [shape: bf16[256,128], index: 1, kind: input, shape index: {}]
  %s2 = inlined_call_operand.hbm [shape: f32[1,128], index: 2, kind: input, shape index: {}]
  %s3 = inlined_call_operand.hbm [shape: f32[1,128], index: 3, kind: input, shape index: {}]
  %s4 = inlined_call_operand.vmem [shape: f32[2,1,128], index: 4, kind: input, shape index: {}]
  %s5 = inlined_call_operand.hbm [shape: f32[2,1,128], index: 5, kind: input, shape index: {}]
  %s6 = inlined_call_operand.vmem [shape: bf16[2,128,384], index: 6, kind: input, shape index: {}]
  %s7 = inlined_call_operand.vmem [shape: f32[2,1,384], index: 7, kind: input, shape index: {}]
  %s8 = inlined_call_operand.vmem [shape: f32[4,8,8], index: 8, kind: input, shape index: {}]
  %s9 = inlined_call_operand.hbm [shape: bf16[2,128,128], index: 9, kind: input, shape index: {}]
  %s10 = inlined_call_operand.hbm [shape: f32[2,1,128], index: 10, kind: input, shape index: {}]
  %s11 = inlined_call_operand.hbm [shape: f32[2,1,128], index: 11, kind: input, shape index: {}]
  %s12 = inlined_call_operand.hbm [shape: f32[2,1,128], index: 12, kind: input, shape index: {}]
  %s13 = inlined_call_operand.hbm [shape: f32[2,1,128], index: 13, kind: input, shape index: {}]
  %s14 = inlined_call_operand.vmem [shape: bf16[2,128,512], index: 14, kind: input, shape index: {}]
  %s15 = inlined_call_operand.hbm [shape: f32[2,1,512], index: 15, kind: input, shape index: {}]
  %s16 = inlined_call_operand.hbm [shape: bf16[2,512,128], index: 16, kind: input, shape index: {}]
  %s17 = inlined_call_operand.hbm [shape: f32[2,1,128], index: 17, kind: input, shape index: {}]
  %s18 = inlined_call_operand.hbm [shape: f32[2,1,128], index: 18, kind: input, shape index: {}]
  %s19 = inlined_call_operand.vmem [shape: f32[8,16], index: 19, kind: input, shape index: {}]
  %s20 = inlined_call_operand.hbm [shape: f32[1,128], index: 20, kind: input, shape index: {}]
  %s21 = inlined_call_operand.hbm [shape: f32[1,128], index: 21, kind: input, shape index: {}]
  %s22 = inlined_call_operand.hbm [shape: bf16[128,256], index: 22, kind: input, shape index: {}]
  %s23 = inlined_call_operand.hbm [shape: f32[1,256], index: 23, kind: input, shape index: {}]
  %s24 = inlined_call_operand.vmem [shape: f32[8,256], index: 24, kind: output, shape index: {}]
  %s25 = sld [smem:[#allocation0]]
  $region174: #{beit_forward.1} parent=0
    _
  %s27 = ssub.s32 1, %s25
  %s28 = scalar_select 0, %s27, %s25
  $region1: #{beit_forward.1} parent=0
    #allocation2 [shape = 'u8[65536]{0}', space=vmem, size = 0x10000, scoped, tag = 'input window, operand 1, single buffered']
    #allocation3 [shape = 's32[1]{0}', space=sflag, size = 0x4, scoped, tag = 'scoped memory for beit_forward.1']
    #allocation4 [shape = 'u8[512]{0}', space=vmem, size = 0x400, scoped, tag = 'input window, operand 2, single buffered']
    #allocation5 [shape = 's32[1]{0}', space=sflag, size = 0x4, scoped, tag = 'scoped memory for beit_forward.1']
    #allocation6 [shape = 'u8[512]{0}', space=vmem, size = 0x400, scoped, tag = 'input window, operand 3, single buffered']
    #allocation7 [shape = 'u8[1024]{0}', space=vmem, size = 0x400, scoped, tag = 'input window, operand 5, single buffered']
    #allocation8 [shape = 's32[1]{0}', space=sflag, size = 0x4, scoped, tag = 'scoped memory for beit_forward.1']
    #allocation9 [shape = 'u8[65536]{0}', space=vmem, size = 0x10000, scoped, tag = 'input window, operand 9, single buffered']
    #allocation10 [shape = 'u8[1024]{0}', space=vmem, size = 0x400, scoped, tag = 'input window, operand 10, single buffered']
    #allocation11 [shape = 's32[1]{0}', space=sflag, size = 0x4, scoped, tag = 'scoped memory for beit_forward.1']
    #allocation12 [shape = 'u8[1024]{0}', space=vmem, size = 0x400, scoped, tag = 'input window, operand 11, single buffered']
    #allocation13 [shape = 'u8[1024]{0}', space=vmem, size = 0x400, scoped, tag = 'input window, operand 12, single buffered']
    #allocation14 [shape = 's32[1]{0}', space=sflag, size = 0x4, scoped, tag = 'scoped memory for beit_forward.1']
    #allocation15 [shape = 'u8[1024]{0}', space=vmem, size = 0x400, scoped, tag = 'input window, operand 13, single buffered']
    #allocation16 [shape = 'u8[4096]{0}', space=vmem, size = 0x1000, scoped, tag = 'input window, operand 15, single buffered']
    #allocation17 [shape = 's32[1]{0}', space=sflag, size = 0x4, scoped, tag = 'scoped memory for beit_forward.1']
    #allocation18 [shape = 'u8[262144]{0}', space=vmem, size = 0x40000, scoped, tag = 'input window, operand 16, single buffered']
    #allocation19 [shape = 'u8[1024]{0}', space=vmem, size = 0x400, scoped, tag = 'input window, operand 17, single buffered']
    #allocation20 [shape = 's32[1]{0}', space=sflag, size = 0x4, scoped, tag = 'scoped memory for beit_forward.1']
    #allocation21 [shape = 'u8[1024]{0}', space=vmem, size = 0x400, scoped, tag = 'input window, operand 18, single buffered']
    #allocation22 [shape = 'u8[512]{0}', space=vmem, size = 0x400, scoped, tag = 'input window, operand 20, single buffered']
    #allocation23 [shape = 's32[1]{0}', space=sflag, size = 0x4, scoped, tag = 'scoped memory for beit_forward.1']
    #allocation24 [shape = 'u8[512]{0}', space=vmem, size = 0x400, scoped, tag = 'input window, operand 21, single buffered']
    #allocation25 [shape = 'u8[65536]{0}', space=vmem, size = 0x10000, scoped, tag = 'input window, operand 22, single buffered']
    #allocation26 [shape = 's32[1]{0}', space=sflag, size = 0x4, scoped, tag = 'scoped memory for beit_forward.1']
    #allocation27 [shape = 'u8[1024]{0}', space=vmem, size = 0x400, scoped, tag = 'input window, operand 23, single buffered']
    %29 = vsyncpa [#allocation3], 0
    %30 = vsyncpa [#allocation5], 0
    %31 = vsyncpa [#allocation8], 0
    %32 = vsyncpa [#allocation11], 0
    %33 = vsyncpa [#allocation14], 0
    %34 = vsyncpa [#allocation17], 0
    %35 = vsyncpa [#allocation20], 0
    %36 = vsyncpa [#allocation23], 0
    %37 = vsyncpa [#allocation26], 0
    // Predicated region
    $region2: #{beit_forward.1} parent=1 // pred_check
      _
    $region3: #{beit_forward.1} parent=1 // pred_check_branch
      %39 = sbr.rel (0) target = $region5
    $region4: #{beit_forward.1} parent=1 // pred_region
      _
    $region5: #{beit_forward.1} parent=1 // pred_fallthru
      _
    // Predicated region
    $region6: #{beit_forward.1} parent=1 // pred_check
      _
    $region7: #{beit_forward.1} parent=1 // pred_check_branch
      %41 = sbr.rel (0) target = $region9
    $region8: #{beit_forward.1} parent=1 // pred_region
      %43 = vsyncadd [#allocation3], 0
      %s44 = sshll.u32 %s1, 4
      %s45 = int_to_ptr.hbm [resolvable:$true] %s44
      %s46 = sshll.u32 [#allocation2], 4
      %s47 = int_to_ptr.vmem [resolvable:$true] %s46
      %52 = dma.hbm_to_vmem [thread:$0]  %s45, 2048, %s47, [#allocation3], 64, 64, 4
    $region9: #{beit_forward.1} parent=1 // pred_fallthru
      _
    // Predicated region
    $region10: #{beit_forward.1} parent=1 // pred_check
      _
    $region11: #{beit_forward.1} parent=1 // pred_check_branch
      %54 = sbr.rel (0) target = $region13
    $region12: #{beit_forward.1} parent=1 // pred_region
      %56 = vsyncadd [#allocation5], 0
      %s58 = sshll.u32 %s2, 4
      %s59 = int_to_ptr.hbm [resolvable:$true] %s58
      %s60 = sshll.u32 [#allocation4], 4
      %s61 = int_to_ptr.vmem [resolvable:$true] %s60
      %63 = dma.hbm_to_vmem [thread:$0]  %s59, 16, %s61, [#allocation5]
    $region13: #{beit_forward.1} parent=1 // pred_fallthru
      _
    // Predicated region
    $region14: #{beit_forward.1} parent=1 // pred_check
      _
    $region15: #{beit_forward.1} parent=1 // pred_check_branch
      %65 = sbr.rel (0) target = $region17
    $region16: #{beit_forward.1} parent=1 // pred_region
      %67 = vsyncadd [#allocation5], 0
      %s69 = sshll.u32 %s3, 4
      %s70 = int_to_ptr.hbm [resolvable:$true] %s69
      %s71 = sshll.u32 [#allocation6], 4
      %s72 = int_to_ptr.vmem [resolvable:$true] %s71
      %74 = dma.hbm_to_vmem [thread:$0]  %s70, 16, %s72, [#allocation5]
    $region17: #{beit_forward.1} parent=1 // pred_fallthru
      _
    // Predicated region
    $region18: #{beit_forward.1} parent=1 // pred_check
      _
    $region19: #{beit_forward.1} parent=1 // pred_check_branch
      %76 = sbr.rel (0) target = $region21
    $region20: #{beit_forward.1} parent=1 // pred_region
      _
    $region21: #{beit_forward.1} parent=1 // pred_fallthru
      _
    // Predicated region
    $region22: #{beit_forward.1} parent=1 // pred_check
      _
    $region23: #{beit_forward.1} parent=1 // pred_check_branch
      %78 = sbr.rel (0) target = $region25
    $region24: #{beit_forward.1} parent=1 // pred_region
      %80 = vsyncadd [#allocation8], 0
      %s81 = sshll.u32 %s5, 4
      %s82 = int_to_ptr.hbm [resolvable:$true] %s81
      %s83 = sshll.u32 [#allocation7], 4
      %s84 = int_to_ptr.vmem [resolvable:$true] %s83
      %89 = dma.hbm_to_vmem [thread:$0]  %s82, 32, %s84, [#allocation8], 16, 16, 1
    $region25: #{beit_forward.1} parent=1 // pred_fallthru
      _
    // Predicated region
    $region26: #{beit_forward.1} parent=1 // pred_check
      _
    $region27: #{beit_forward.1} parent=1 // pred_check_branch
      %91 = sbr.rel (0) target = $region29
    $region28: #{beit_forward.1} parent=1 // pred_region
      _
    $region29: #{beit_forward.1} parent=1 // pred_fallthru
      _
    // Predicated region
    $region30: #{beit_forward.1} parent=1 // pred_check
      _
    $region31: #{beit_forward.1} parent=1 // pred_check_branch
      %93 = sbr.rel (0) target = $region33
    $region32: #{beit_forward.1} parent=1 // pred_region
      _
    $region33: #{beit_forward.1} parent=1 // pred_fallthru
      _
    // Predicated region
    $region34: #{beit_forward.1} parent=1 // pred_check
      _
    $region35: #{beit_forward.1} parent=1 // pred_check_branch
      %95 = sbr.rel (0) target = $region37
    $region36: #{beit_forward.1} parent=1 // pred_region
      _
    $region37: #{beit_forward.1} parent=1 // pred_fallthru
      _
    // Predicated region
    $region38: #{beit_forward.1} parent=1 // pred_check
      _
    $region39: #{beit_forward.1} parent=1 // pred_check_branch
      %97 = sbr.rel (0) target = $region41
    $region40: #{beit_forward.1} parent=1 // pred_region
      %99 = vsyncadd [#allocation8], 0
      %s100 = sshll.u32 %s9, 4
      %s101 = int_to_ptr.hbm [resolvable:$true] %s100
      %s102 = sshll.u32 [#allocation9], 4
      %s103 = int_to_ptr.vmem [resolvable:$true] %s102
      %108 = dma.hbm_to_vmem [thread:$0]  %s101, 2048, %s103, [#allocation8], 64, 64, 4
    $region41: #{beit_forward.1} parent=1 // pred_fallthru
      _
    // Predicated region
    $region42: #{beit_forward.1} parent=1 // pred_check
      _
    $region43: #{beit_forward.1} parent=1 // pred_check_branch
      %110 = sbr.rel (0) target = $region45
    $region44: #{beit_forward.1} parent=1 // pred_region
      %112 = vsyncadd [#allocation11], 0
      %s113 = sshll.u32 %s10, 4
      %s114 = int_to_ptr.hbm [resolvable:$true] %s113
      %s115 = sshll.u32 [#allocation10], 4
      %s116 = int_to_ptr.vmem [resolvable:$true] %s115
      %121 = dma.hbm_to_vmem [thread:$0]  %s114, 32, %s116, [#allocation11], 16, 16, 1
    $region45: #{beit_forward.1} parent=1 // pred_fallthru
      _
    // Predicated region
    $region46: #{beit_forward.1} parent=1 // pred_check
      _
    $region47: #{beit_forward.1} parent=1 // pred_check_branch
      %123 = sbr.rel (0) target = $region49
    $region48: #{beit_forward.1} parent=1 // pred_region
      %125 = vsyncadd [#allocation11], 0
      %s126 = sshll.u32 %s11, 4
      %s127 = int_to_ptr.hbm [resolvable:$true] %s126
      %s128 = sshll.u32 [#allocation12], 4
      %s129 = int_to_ptr.vmem [resolvable:$true] %s128
      %134 = dma.hbm_to_vmem [thread:$0]  %s127, 32, %s129, [#allocation11], 16, 16, 1
    $region49: #{beit_forward.1} parent=1 // pred_fallthru
      _
    // Predicated region
    $region50: #{beit_forward.1} parent=1 // pred_check
      _
    $region51: #{beit_forward.1} parent=1 // pred_check_branch
      %136 = sbr.rel (0) target = $region53
    $region52: #{beit_forward.1} parent=1 // pred_region
      %138 = vsyncadd [#allocation14], 0
      %s139 = sshll.u32 %s12, 4
      %s140 = int_to_ptr.hbm [resolvable:$true] %s139
      %s141 = sshll.u32 [#allocation13], 4
      %s142 = int_to_ptr.vmem [resolvable:$true] %s141
      %147 = dma.hbm_to_vmem [thread:$0]  %s140, 32, %s142, [#allocation14], 16, 16, 1
    $region53: #{beit_forward.1} parent=1 // pred_fallthru
      _
    // Predicated region
    $region54: #{beit_forward.1} parent=1 // pred_check
      _
    $region55: #{beit_forward.1} parent=1 // pred_check_branch
      %149 = sbr.rel (0) target = $region57
    $region56: #{beit_forward.1} parent=1 // pred_region
      %151 = vsyncadd [#allocation14], 0
      %s152 = sshll.u32 %s13, 4
      %s153 = int_to_ptr.hbm [resolvable:$true] %s152
      %s154 = sshll.u32 [#allocation15], 4
      %s155 = int_to_ptr.vmem [resolvable:$true] %s154
      %160 = dma.hbm_to_vmem [thread:$0]  %s153, 32, %s155, [#allocation14], 16, 16, 1
    $region57: #{beit_forward.1} parent=1 // pred_fallthru
      _
    // Predicated region
    $region58: #{beit_forward.1} parent=1 // pred_check
      _
    $region59: #{beit_forward.1} parent=1 // pred_check_branch
      %162 = sbr.rel (0) target = $region61
    $region60: #{beit_forward.1} parent=1 // pred_region
      _
    $region61: #{beit_forward.1} parent=1 // pred_fallthru
      _
    // Predicated region
    $region62: #{beit_forward.1} parent=1 // pred_check
      _
    $region63: #{beit_forward.1} parent=1 // pred_check_branch
      %164 = sbr.rel (0) target = $region65
    $region64: #{beit_forward.1} parent=1 // pred_region
      %166 = vsyncadd [#allocation17], 0
      %s167 = sshll.u32 %s15, 4
      %s168 = int_to_ptr.hbm [resolvable:$true] %s167
      %s169 = sshll.u32 [#allocation16], 4
      %s170 = int_to_ptr.vmem [resolvable:$true] %s169
      %175 = dma.hbm_to_vmem [thread:$0]  %s168, 128, %s170, [#allocation17], 64, 64, 4
    $region65: #{beit_forward.1} parent=1 // pred_fallthru
      _
    // Predicated region
    $region66: #{beit_forward.1} parent=1 // pred_check
      _
    $region67: #{beit_forward.1} parent=1 // pred_check_branch
      %177 = sbr.rel (0) target = $region69
    $region68: #{beit_forward.1} parent=1 // pred_region
      %179 = vsyncadd [#allocation17], 0
      %s180 = sshll.u32 %s16, 4
      %s181 = int_to_ptr.hbm [resolvable:$true] %s180
      %s182 = sshll.u32 [#allocation18], 4
      %s183 = int_to_ptr.vmem [resolvable:$true] %s182
      %188 = dma.hbm_to_vmem [thread:$0]  %s181, 8192, %s183, [#allocation17], 64, 64, 4
    $region69: #{beit_forward.1} parent=1 // pred_fallthru
      _
    // Predicated region
    $region70: #{beit_forward.1} parent=1 // pred_check
      _
    $region71: #{beit_forward.1} parent=1 // pred_check_branch
      %190 = sbr.rel (0) target = $region73
    $region72: #{beit_forward.1} parent=1 // pred_region
      %192 = vsyncadd [#allocation20], 0
      %s193 = sshll.u32 %s17, 4
      %s194 = int_to_ptr.hbm [resolvable:$true] %s193
      %s195 = sshll.u32 [#allocation19], 4
      %s196 = int_to_ptr.vmem [resolvable:$true] %s195
      %201 = dma.hbm_to_vmem [thread:$0]  %s194, 32, %s196, [#allocation20], 16, 16, 1
    $region73: #{beit_forward.1} parent=1 // pred_fallthru
      _
    // Predicated region
    $region74: #{beit_forward.1} parent=1 // pred_check
      _
    $region75: #{beit_forward.1} parent=1 // pred_check_branch
      %203 = sbr.rel (0) target = $region77
    $region76: #{beit_forward.1} parent=1 // pred_region
      %205 = vsyncadd [#allocation20], 0
      %s206 = sshll.u32 %s18, 4
      %s207 = int_to_ptr.hbm [resolvable:$true] %s206
      %s208 = sshll.u32 [#allocation21], 4
      %s209 = int_to_ptr.vmem [resolvable:$true] %s208
      %214 = dma.hbm_to_vmem [thread:$0]  %s207, 32, %s209, [#allocation20], 16, 16, 1
    $region77: #{beit_forward.1} parent=1 // pred_fallthru
      _
    // Predicated region
    $region78: #{beit_forward.1} parent=1 // pred_check
      _
    $region79: #{beit_forward.1} parent=1 // pred_check_branch
      %216 = sbr.rel (0) target = $region81
    $region80: #{beit_forward.1} parent=1 // pred_region
      _
    $region81: #{beit_forward.1} parent=1 // pred_fallthru
      _
    // Predicated region
    $region82: #{beit_forward.1} parent=1 // pred_check
      _
    $region83: #{beit_forward.1} parent=1 // pred_check_branch
      %218 = sbr.rel (0) target = $region85
    $region84: #{beit_forward.1} parent=1 // pred_region
      %220 = vsyncadd [#allocation23], 0
      %s222 = sshll.u32 %s20, 4
      %s223 = int_to_ptr.hbm [resolvable:$true] %s222
      %s224 = sshll.u32 [#allocation22], 4
      %s225 = int_to_ptr.vmem [resolvable:$true] %s224
      %227 = dma.hbm_to_vmem [thread:$0]  %s223, 16, %s225, [#allocation23]
    $region85: #{beit_forward.1} parent=1 // pred_fallthru
      _
    // Predicated region
    $region86: #{beit_forward.1} parent=1 // pred_check
      _
    $region87: #{beit_forward.1} parent=1 // pred_check_branch
      %229 = sbr.rel (0) target = $region89
    $region88: #{beit_forward.1} parent=1 // pred_region
      %231 = vsyncadd [#allocation23], 0
      %s233 = sshll.u32 %s21, 4
      %s234 = int_to_ptr.hbm [resolvable:$true] %s233
      %s235 = sshll.u32 [#allocation24], 4
      %s236 = int_to_ptr.vmem [resolvable:$true] %s235
      %238 = dma.hbm_to_vmem [thread:$0]  %s234, 16, %s236, [#allocation23]
    $region89: #{beit_forward.1} parent=1 // pred_fallthru
      _
    // Predicated region
    $region90: #{beit_forward.1} parent=1 // pred_check
      _
    $region91: #{beit_forward.1} parent=1 // pred_check_branch
      %240 = sbr.rel (0) target = $region93
    $region92: #{beit_forward.1} parent=1 // pred_region
      %242 = vsyncadd [#allocation26], 0
      %s243 = sshll.u32 %s22, 4
      %s244 = int_to_ptr.hbm [resolvable:$true] %s243
      %s245 = sshll.u32 [#allocation25], 4
      %s246 = int_to_ptr.vmem [resolvable:$true] %s245
      %251 = dma.hbm_to_vmem [thread:$0]  %s244, 2048, %s246, [#allocation26], 128, 128, 8
    $region93: #{beit_forward.1} parent=1 // pred_fallthru
      _
    // Predicated region
    $region94: #{beit_forward.1} parent=1 // pred_check
      _
    $region95: #{beit_forward.1} parent=1 // pred_check_branch
      %253 = sbr.rel (0) target = $region97
    $region96: #{beit_forward.1} parent=1 // pred_region
      %255 = vsyncadd [#allocation26], 0
      %s257 = sshll.u32 %s23, 4
      %s258 = int_to_ptr.hbm [resolvable:$true] %s257
      %s259 = sshll.u32 [#allocation27], 4
      %s260 = int_to_ptr.vmem [resolvable:$true] %s259
      %262 = dma.hbm_to_vmem [thread:$0]  %s258, 32, %s260, [#allocation26]
    $region97: #{beit_forward.1} parent=1 // pred_fallthru
      _
    // Predicated region
    $region98: #{beit_forward.1} parent=1 // pred_check
      _
    $region99: #{beit_forward.1} parent=1 // pred_check_branch
      %264 = sbr.rel (0) target = $region101
    $region100: #{beit_forward.1} parent=1 // pred_region
      %266 = dma.done [#allocation3], 2048
    $region101: #{beit_forward.1} parent=1 // pred_fallthru
      _
    // Predicated region
    $region102: #{beit_forward.1} parent=1 // pred_check
      _
    $region103: #{beit_forward.1} parent=1 // pred_check_branch
      %268 = sbr.rel (0) target = $region105
    $region104: #{beit_forward.1} parent=1 // pred_region
      %270 = dma.done [#allocation5], 16
    $region105: #{beit_forward.1} parent=1 // pred_fallthru
      _
    // Predicated region
    $region106: #{beit_forward.1} parent=1 // pred_check
      _
    $region107: #{beit_forward.1} parent=1 // pred_check_branch
      %272 = sbr.rel (0) target = $region109
    $region108: #{beit_forward.1} parent=1 // pred_region
      %274 = dma.done [#allocation5], 16
    $region109: #{beit_forward.1} parent=1 // pred_fallthru
      _
    // Predicated region
    $region110: #{beit_forward.1} parent=1 // pred_check
      _
    $region111: #{beit_forward.1} parent=1 // pred_check_branch
      %276 = sbr.rel (0) target = $region113
    $region112: #{beit_forward.1} parent=1 // pred_region
      %278 = dma.done [#allocation8], 32
    $region113: #{beit_forward.1} parent=1 // pred_fallthru
      _
    // Predicated region
    $region114: #{beit_forward.1} parent=1 // pred_check
      _
    $region115: #{beit_forward.1} parent=1 // pred_check_branch
      %280 = sbr.rel (0) target = $region117
    $region116: #{beit_forward.1} parent=1 // pred_region
      %282 = dma.done [#allocation8], 2048
    $region117: #{beit_forward.1} parent=1 // pred_fallthru
      _
    // Predicated region
    $region118: #{beit_forward.1} parent=1 // pred_check
      _
    $region119: #{beit_forward.1} parent=1 // pred_check_branch
      %284 = sbr.rel (0) target = $region121
    $region120: #{beit_forward.1} parent=1 // pred_region
      %286 = dma.done [#allocation11], 32
    $region121: #{beit_forward.1} parent=1 // pred_fallthru
      _
    // Predicated region
    $region122: #{beit_forward.1} parent=1 // pred_check
      _
    $region123: #{beit_forward.1} parent=1 // pred_check_branch
      %288 = sbr.rel (0) target = $region125
    $region124: #{beit_forward.1} parent=1 // pred_region
      %290 = dma.done [#allocation11], 32
    $region125: #{beit_forward.1} parent=1 // pred_fallthru
      _
    // Predicated region
    $region126: #{beit_forward.1} parent=1 // pred_check
      _
    $region127: #{beit_forward.1} parent=1 // pred_check_branch
      %292 = sbr.rel (0) target = $region129
    $region128: #{beit_forward.1} parent=1 // pred_region
      %294 = dma.done [#allocation14], 32
    $region129: #{beit_forward.1} parent=1 // pred_fallthru
      _
    // Predicated region
    $region130: #{beit_forward.1} parent=1 // pred_check
      _
    $region131: #{beit_forward.1} parent=1 // pred_check_branch
      %296 = sbr.rel (0) target = $region133
    $region132: #{beit_forward.1} parent=1 // pred_region
      %298 = dma.done [#allocation14], 32
    $region133: #{beit_forward.1} parent=1 // pred_fallthru
      _
    // Predicated region
    $region134: #{beit_forward.1} parent=1 // pred_check
      _
    $region135: #{beit_forward.1} parent=1 // pred_check_branch
      %300 = sbr.rel (0) target = $region137
    $region136: #{beit_forward.1} parent=1 // pred_region
      %302 = dma.done [#allocation17], 128
    $region137: #{beit_forward.1} parent=1 // pred_fallthru
      _
    // Predicated region
    $region138: #{beit_forward.1} parent=1 // pred_check
      _
    $region139: #{beit_forward.1} parent=1 // pred_check_branch
      %304 = sbr.rel (0) target = $region141
    $region140: #{beit_forward.1} parent=1 // pred_region
      %306 = dma.done [#allocation17], 8192
    $region141: #{beit_forward.1} parent=1 // pred_fallthru
      _
    // Predicated region
    $region142: #{beit_forward.1} parent=1 // pred_check
      _
    $region143: #{beit_forward.1} parent=1 // pred_check_branch
      %308 = sbr.rel (0) target = $region145
    $region144: #{beit_forward.1} parent=1 // pred_region
      %310 = dma.done [#allocation20], 32
    $region145: #{beit_forward.1} parent=1 // pred_fallthru
      _
    // Predicated region
    $region146: #{beit_forward.1} parent=1 // pred_check
      _
    $region147: #{beit_forward.1} parent=1 // pred_check_branch
      %312 = sbr.rel (0) target = $region149
    $region148: #{beit_forward.1} parent=1 // pred_region
      %314 = dma.done [#allocation20], 32
    $region149: #{beit_forward.1} parent=1 // pred_fallthru
      _
    // Predicated region
    $region150: #{beit_forward.1} parent=1 // pred_check
      _
    $region151: #{beit_forward.1} parent=1 // pred_check_branch
      %316 = sbr.rel (0) target = $region153
    $region152: #{beit_forward.1} parent=1 // pred_region
      %318 = dma.done [#allocation23], 16
    $region153: #{beit_forward.1} parent=1 // pred_fallthru
      _
    // Predicated region
    $region154: #{beit_forward.1} parent=1 // pred_check
      _
    $region155: #{beit_forward.1} parent=1 // pred_check_branch
      %320 = sbr.rel (0) target = $region157
    $region156: #{beit_forward.1} parent=1 // pred_region
      %322 = dma.done [#allocation23], 16
    $region157: #{beit_forward.1} parent=1 // pred_fallthru
      _
    // Predicated region
    $region158: #{beit_forward.1} parent=1 // pred_check
      _
    $region159: #{beit_forward.1} parent=1 // pred_check_branch
      %324 = sbr.rel (0) target = $region161
    $region160: #{beit_forward.1} parent=1 // pred_region
      %326 = dma.done [#allocation26], 2048
    $region161: #{beit_forward.1} parent=1 // pred_fallthru
      _
    // Predicated region
    $region162: #{beit_forward.1} parent=1 // pred_check
      _
    $region163: #{beit_forward.1} parent=1 // pred_check_branch
      %328 = sbr.rel (0) target = $region165
    $region164: #{beit_forward.1} parent=1 // pred_region
      %330 = dma.done [#allocation26], 32
    $region165: #{beit_forward.1} parent=1 // pred_fallthru
      _
    %v331 = vld [vmem:[%s0] sm:$0xff]
    %v332 = vld [vmem:[%s0 + $0x8] sm:$0xff]
    %v333 = vld [vmem:[%s0 + $0x10] sm:$0xff]
    %v334 = vld [vmem:[%s0 + $0x18] sm:$0xff]
    %v335 = vpack.c.bf16 %v333, %v331
    %v336 = vpack.c.bf16 %v334, %v332
    %v337 = vld [vmem:[#allocation2] sm:$0xf]
    %v338 = vld [vmem:[#allocation2 + $0x4] sm:$0xf]
    %v339 = vld [vmem:[#allocation2 + $0x8] sm:$0xf]
    %v340 = vld [vmem:[#allocation2 + $0xc] sm:$0xf]
    %v341 = vld [vmem:[#allocation2 + $0x10] sm:$0xf]
    %v342 = vld [vmem:[#allocation2 + $0x14] sm:$0xf]
    %v343 = vld [vmem:[#allocation2 + $0x18] sm:$0xf]
    %v344 = vld [vmem:[#allocation2 + $0x1c] sm:$0xf]
    %v345 = vld [vmem:[#allocation2 + $0x20] sm:$0xf]
    %v346 = vld [vmem:[#allocation2 + $0x24] sm:$0xf]
    %v347 = vld [vmem:[#allocation2 + $0x28] sm:$0xf]
    %v348 = vld [vmem:[#allocation2 + $0x2c] sm:$0xf]
    %v349 = vld [vmem:[#allocation2 + $0x30] sm:$0xf]
    %v350 = vld [vmem:[#allocation2 + $0x34] sm:$0xf]
    %v351 = vld [vmem:[#allocation2 + $0x38] sm:$0xf]
    %v352 = vld [vmem:[#allocation2 + $0x3c] sm:$0xf]
    %v353 = vld [vmem:[#allocation2 + $0x40] sm:$0xf]
    %v354 = vld [vmem:[#allocation2 + $0x44] sm:$0xf]
    %v355 = vld [vmem:[#allocation2 + $0x48] sm:$0xf]
    %v356 = vld [vmem:[#allocation2 + $0x4c] sm:$0xf]
    %v357 = vld [vmem:[#allocation2 + $0x50] sm:$0xf]
    %v358 = vld [vmem:[#allocation2 + $0x54] sm:$0xf]
    %v359 = vld [vmem:[#allocation2 + $0x58] sm:$0xf]
    %v360 = vld [vmem:[#allocation2 + $0x5c] sm:$0xf]
    %v361 = vld [vmem:[#allocation2 + $0x60] sm:$0xf]
    %v362 = vld [vmem:[#allocation2 + $0x64] sm:$0xf]
    %v363 = vld [vmem:[#allocation2 + $0x68] sm:$0xf]
    %v364 = vld [vmem:[#allocation2 + $0x6c] sm:$0xf]
    %v365 = vld [vmem:[#allocation2 + $0x70] sm:$0xf]
    %v366 = vld [vmem:[#allocation2 + $0x74] sm:$0xf]
    %v367 = vld [vmem:[#allocation2 + $0x78] sm:$0xf]
    %v368 = vld [vmem:[#allocation2 + $0x7c] sm:$0xf]
    %v369 = vld [vmem:[#allocation4] sm:$0x1]
    %v371 = vperm.slane %v369, 0
    %v405 = vunpack.c.l.b16 %v337
    %v406 = vunpack.c.l.b16 %v338
    %v407 = vunpack.c.l.b16 %v339
    %v408 = vunpack.c.l.b16 %v340
    %v409 = vunpack.c.l.b16 %v341
    %v410 = vunpack.c.l.b16 %v342
    %v411 = vunpack.c.l.b16 %v343
    %v412 = vunpack.c.l.b16 %v344
    %v413 = vunpack.c.l.b16 %v345
    %v414 = vunpack.c.l.b16 %v346
    %v415 = vunpack.c.l.b16 %v347
    %v416 = vunpack.c.l.b16 %v348
    %v417 = vunpack.c.l.b16 %v349
    %v418 = vunpack.c.l.b16 %v350
    %v419 = vunpack.c.l.b16 %v351
    %v420 = vunpack.c.l.b16 %v352
    %v421 = vunpack.c.l.b16 %v353
    %v422 = vunpack.c.l.b16 %v354
    %v423 = vunpack.c.l.b16 %v355
    %v424 = vunpack.c.l.b16 %v356
    %v425 = vunpack.c.l.b16 %v357
    %v426 = vunpack.c.l.b16 %v358
    %v427 = vunpack.c.l.b16 %v359
    %v428 = vunpack.c.l.b16 %v360
    %v429 = vunpack.c.l.b16 %v361
    %v430 = vunpack.c.l.b16 %v362
    %v431 = vunpack.c.l.b16 %v363
    %v432 = vunpack.c.l.b16 %v364
    %v433 = vunpack.c.l.b16 %v365
    %v434 = vunpack.c.l.b16 %v366
    %v435 = vunpack.c.l.b16 %v367
    %v436 = vunpack.c.l.b16 %v368
    %v437 = vpack.c.b16 %v406, %v405
    %v438 = vpack.c.b16 %v408, %v407
    %v439 = vpack.c.b16 %v410, %v409
    %v440 = vpack.c.b16 %v412, %v411
    %v441 = vpack.c.b16 %v414, %v413
    %v442 = vpack.c.b16 %v416, %v415
    %v443 = vpack.c.b16 %v418, %v417
    %v444 = vpack.c.b16 %v420, %v419
    %v445 = vpack.c.b16 %v422, %v421
    %v446 = vpack.c.b16 %v424, %v423
    %v447 = vpack.c.b16 %v426, %v425
    %v448 = vpack.c.b16 %v428, %v427
    %v449 = vpack.c.b16 %v430, %v429
    %v450 = vpack.c.b16 %v432, %v431
    %v451 = vpack.c.b16 %v434, %v433
    %v452 = vpack.c.b16 %v436, %v435
    %469 = vmatpush.bf16.msra.mxu0 %v444
    %470 = vmatpush.bf16.msra.mxu0 %v443
    %471 = vmatpush.bf16.msra.mxu0 %v442
    %472 = vmatpush.bf16.msra.mxu0 %v441
    %473 = vmatpush.bf16.msra.mxu0 %v440
    %474 = vmatpush.bf16.msra.mxu0 %v439
    %475 = vmatpush.bf16.msra.mxu0 %v438
    %476 = vmatpush.bf16.msra.mxu0 %v437
    %477 = vmatmul.bf16.gmra.mxu0 %v335
    %v478 = vpop.f32.mrf.mxu0
    %v479 = vadd.f32 %v371, %v478
    %v480 = vpop.f32.mrf.mxu0
    %v481 = vadd.f32 %v371, %v480
    %482 = vdwg.mxu0
    %483 = vmatpush.bf16.msra.mxu0 %v452
    %484 = vmatpush.bf16.msra.mxu0 %v451
    %485 = vmatpush.bf16.msra.mxu0 %v450
    %486 = vmatpush.bf16.msra.mxu0 %v449
    %487 = vmatpush.bf16.msra.mxu0 %v448
    %488 = vmatpush.bf16.msra.mxu0 %v447
    %489 = vmatpush.bf16.msra.mxu0 %v446
    %490 = vmatpush.bf16.msra.mxu0 %v445
    %491 = vmatmul.bf16.gmra.mxu0 %v336
    %v492 = vpop.f32.mrf.mxu0
    %v493 = vadd.f32 %v479, %v492
    %v494 = vpop.f32.mrf.mxu0
    %v495 = vadd.f32 %v481, %v494
    %496 = vdwg.mxu0
    %v497 = vlaneseq
    %v498 = vshrl.u32 %v497, 7
    %v499 = vadd.s32 %v498, 8
    %vm500 = vcmp.lt.s32.totalorder %v498, 0
    %v501 = vsub.s32 0, %v498
    %v502 = vsel %vm500, %v501, %v498
    %v503 = vshrl.u32 %v502, 3
    %v504 = vand.u32 %v502, 7
    %v505 = vsub.s32 0, %v504
    %v506 = vsel %vm500, %v505, %v504
    %vm507 = vcmp.lt.s32.totalorder %v499, 0
    %v508 = vsub.s32 0, %v499
    %v509 = vsel %vm507, %v508, %v499
    %v510 = vshrl.u32 %v509, 3
    %v511 = vand.u32 %v509, 7
    %v512 = vsub.s32 0, %v511
    %v513 = vsel %vm507, %v512, %v511
    %vm514 = vcmp.ne.s32.totalorder %v506, 0
    %vm515 = vcmp.ne.s32.totalorder %v513, 0
    %vm516 = vcmp.lt.s32.totalorder %v506, 0
    %vm517 = vcmp.lt.s32.totalorder %v513, 0
    %vm518 = vmand %vm516, %vm514
    %vm519 = vmand %vm517, %vm515
    %v520 = vadd.s32 %v506, 8
    %v521 = vadd.s32 %v513, 8
    %v522 = vsel %vm518, %v520, %v506
    %v523 = vsel %vm519, %v521, %v513
    %vm524 = vcmp.eq.s32.totalorder %v522, 0
    %vm525 = vcmp.eq.s32.totalorder %v523, 0
    %v526 = vsel %vm524, 1, 0
    %v527 = vsel %vm525, 1, 0
    %v528 = vcvt.s32.f32 %v526
    %v529 = vcvt.s32.f32 %v527
    %vm530 = vcmp.ge.s32.totalorder %v522, 1
    %vm531 = vcmp.ge.s32.totalorder %v523, 1
    %vm532 = vcmp.le.s32.totalorder %v522, 4
    %vm533 = vcmp.le.s32.totalorder %v523, 4
    %vm534 = vmand %vm530, %vm532
    %vm535 = vmand %vm531, %vm533
    %v536 = vsel %vm534, 1, 0
    %v537 = vsel %vm535, 1, 0
    %v538 = vcvt.s32.f32 %v536
    %v539 = vcvt.s32.f32 %v537
    %v540 = vld [vmem:[#allocation6] sm:$0x1]
    %v542 = vperm.slane %v540, 0
    %v544 = vmul.f32 %v493, %v538
    %v545 = vmul.f32 %v495, %v539
    %v546 = vmul.f32 %v542, %v528
    %v547 = vmul.f32 %v542, %v529
    %v548 = vadd.f32 %v544, %v546
    %v549 = vadd.f32 %v545, %v547
    %v550 = vld [vmem:[%s4] sm:$0x1]
    %v551 = vld [vmem:[#allocation7] sm:$0x1]
    %552 = vadd.xlane.f32.xlu0 %v548
    %v553 = vpop.xlane.xlu0 %552
    %554 = vadd.xlane.f32.xlu0 %v549
    %v555 = vpop.xlane.xlu0 %554
    %v556 = vrcp.pop 128.0
    %v557 = vmul.f32 128.0, %v556
    %v558 = vsub.f32 1.0, %v557
    %v559 = vmul.f32 %v556, %v558
    %v560 = vadd.f32 %v556, %v559
    %vm561 = vweird.f32 %v556
    %v562 = vsel %vm561, %v556, %v560
    %v563 = vmul.f32 %v553, %v562
    %v564 = vmul.f32 %v555, %v562
    %v565 = vsub.f32 %v548, %v563
    %v566 = vsub.f32 %v549, %v564
    %v567 = vmul.f32 %v565, %v565
    %v568 = vmul.f32 %v566, %v566
    %569 = vadd.xlane.f32.xlu0 %v567
    %v570 = vpop.xlane.xlu0 %569
    %571 = vadd.xlane.f32.xlu0 %v568
    %v572 = vpop.xlane.xlu0 %571
    %v573 = vmul.f32 %v570, %v562
    %v574 = vmul.f32 %v572, %v562
    %v575 = vadd.f32 %v573, 1e-06
    %v576 = vadd.f32 %v574, 1e-06
    %v577 = vrsqrt.pop %v575
    %v578 = vmul.f32 %v577, %v575
    %v579 = vmul.f32 %v578, %v577
    %v580 = vmul.f32 0.5, %v579
    %v581 = vsub.f32 1.5, %v580
    %v582 = vmul.f32 %v577, %v581
    %vm583 = vweird.f32 %v575
    %vm584 = vweird.f32 %v577
    %vm585 = vmor %vm583, %vm584
    %v586 = vsel %vm585, %v577, %v582
    %v587 = vrsqrt.pop %v576
    %v588 = vmul.f32 %v587, %v576
    %v589 = vmul.f32 %v588, %v587
    %v590 = vmul.f32 0.5, %v589
    %v591 = vsub.f32 1.5, %v590
    %v592 = vmul.f32 %v587, %v591
    %vm593 = vweird.f32 %v576
    %vm594 = vweird.f32 %v587
    %vm595 = vmor %vm593, %vm594
    %v596 = vsel %vm595, %v587, %v592
    %v597 = vmul.f32 %v565, %v586
    %v598 = vmul.f32 %v566, %v596
    %v600 = vperm.slane %v550, 0
    %v602 = vmul.f32 %v597, %v600
    %v603 = vmul.f32 %v598, %v600
    %v605 = vperm.slane %v551, 0
    %v607 = vadd.f32 %v602, %v605
    %v608 = vadd.f32 %v603, %v605
    %v609 = vpack.c.bf16 %v608, %v607
    %v610 = vld [vmem:[%s6] sm:$0xff]
    %v611 = vld [vmem:[%s6 + $0x8] sm:$0xf]
    %v612 = vld [vmem:[%s6 + $0xc] sm:$0xff]
    %v613 = vld [vmem:[%s6 + $0x14] sm:$0xf]
    %v614 = vld [vmem:[%s6 + $0x18] sm:$0xff]
    %v615 = vld [vmem:[%s6 + $0x20] sm:$0xf]
    %v616 = vld [vmem:[%s6 + $0x24] sm:$0xff]
    %v617 = vld [vmem:[%s6 + $0x2c] sm:$0xf]
    %v618 = vld [vmem:[%s6 + $0x30] sm:$0xff]
    %v619 = vld [vmem:[%s6 + $0x38] sm:$0xf]
    %v620 = vld [vmem:[%s6 + $0x3c] sm:$0xff]
    %v621 = vld [vmem:[%s6 + $0x44] sm:$0xf]
    %v622 = vld [vmem:[%s6 + $0x48] sm:$0xff]
    %v623 = vld [vmem:[%s6 + $0x50] sm:$0xf]
    %v624 = vld [vmem:[%s6 + $0x54] sm:$0xff]
    %v625 = vld [vmem:[%s6 + $0x5c] sm:$0xf]
    %v626 = vld [vmem:[%s6 + $0x60] sm:$0xff]
    %v627 = vld [vmem:[%s6 + $0x68] sm:$0xf]
    %v628 = vld [vmem:[%s6 + $0x6c] sm:$0xff]
    %v629 = vld [vmem:[%s6 + $0x74] sm:$0xf]
    %v630 = vld [vmem:[%s6 + $0x78] sm:$0xff]
    %v631 = vld [vmem:[%s6 + $0x80] sm:$0xf]
    %v632 = vld [vmem:[%s6 + $0x84] sm:$0xff]
    %v633 = vld [vmem:[%s6 + $0x8c] sm:$0xf]
    %v634 = vld [vmem:[%s6 + $0x90] sm:$0xff]
    %v635 = vld [vmem:[%s6 + $0x98] sm:$0xf]
    %v636 = vld [vmem:[%s6 + $0x9c] sm:$0xff]
    %v637 = vld [vmem:[%s6 + $0xa4] sm:$0xf]
    %v638 = vld [vmem:[%s6 + $0xa8] sm:$0xff]
    %v639 = vld [vmem:[%s6 + $0xb0] sm:$0xf]
    %v640 = vld [vmem:[%s6 + $0xb4] sm:$0xff]
    %v641 = vld [vmem:[%s6 + $0xbc] sm:$0xf]
    %v642 = vld [vmem:[%s7] sm:$0x7]
    %v644 = vperm.slane %v642, 0
    %v645 = vperm.slane %v642, 1
    %v646 = vperm.slane %v642, 2
    %v682 = vunpack.c.l.b16 %v610
    %v683 = vunpack.c.h.b16 %v610
    %v684 = vunpack.c.l.b16 %v611
    %v685 = vunpack.c.l.b16 %v612
    %v686 = vunpack.c.h.b16 %v612
    %v687 = vunpack.c.l.b16 %v613
    %v688 = vunpack.c.l.b16 %v614
    %v689 = vunpack.c.h.b16 %v614
    %v690 = vunpack.c.l.b16 %v615
    %v691 = vunpack.c.l.b16 %v616
    %v692 = vunpack.c.h.b16 %v616
    %v693 = vunpack.c.l.b16 %v617
    %v694 = vunpack.c.l.b16 %v618
    %v695 = vunpack.c.h.b16 %v618
    %v696 = vunpack.c.l.b16 %v619
    %v697 = vunpack.c.l.b16 %v620
    %v698 = vunpack.c.h.b16 %v620
    %v699 = vunpack.c.l.b16 %v621
    %v700 = vunpack.c.l.b16 %v622
    %v701 = vunpack.c.h.b16 %v622
    %v702 = vunpack.c.l.b16 %v623
    %v703 = vunpack.c.l.b16 %v624
    %v704 = vunpack.c.h.b16 %v624
    %v705 = vunpack.c.l.b16 %v625
    %v706 = vunpack.c.l.b16 %v626
    %v707 = vunpack.c.h.b16 %v626
    %v708 = vunpack.c.l.b16 %v627
    %v709 = vunpack.c.l.b16 %v628
    %v710 = vunpack.c.h.b16 %v628
    %v711 = vunpack.c.l.b16 %v629
    %v712 = vunpack.c.l.b16 %v630
    %v713 = vunpack.c.h.b16 %v630
    %v714 = vunpack.c.l.b16 %v631
    %v715 = vunpack.c.l.b16 %v632
    %v716 = vunpack.c.h.b16 %v632
    %v717 = vunpack.c.l.b16 %v633
    %v718 = vunpack.c.l.b16 %v634
    %v719 = vunpack.c.h.b16 %v634
    %v720 = vunpack.c.l.b16 %v635
    %v721 = vunpack.c.l.b16 %v636
    %v722 = vunpack.c.h.b16 %v636
    %v723 = vunpack.c.l.b16 %v637
    %v724 = vunpack.c.l.b16 %v638
    %v725 = vunpack.c.h.b16 %v638
    %v726 = vunpack.c.l.b16 %v639
    %v727 = vunpack.c.l.b16 %v640
    %v728 = vunpack.c.h.b16 %v640
    %v729 = vunpack.c.l.b16 %v641
    %v730 = vpack.c.b16 %v685, %v682
    %v731 = vpack.c.b16 %v686, %v683
    %v732 = vpack.c.b16 %v687, %v684
    %v733 = vpack.c.b16 %v691, %v688
    %v734 = vpack.c.b16 %v692, %v689
    %v735 = vpack.c.b16 %v693, %v690
    %v736 = vpack.c.b16 %v697, %v694
    %v737 = vpack.c.b16 %v698, %v695
    %v738 = vpack.c.b16 %v699, %v696
    %v739 = vpack.c.b16 %v703, %v700
    %v740 = vpack.c.b16 %v704, %v701
    %v741 = vpack.c.b16 %v705, %v702
    %v742 = vpack.c.b16 %v709, %v706
    %v743 = vpack.c.b16 %v710, %v707
    %v744 = vpack.c.b16 %v711, %v708
    %v745 = vpack.c.b16 %v715, %v712
    %v746 = vpack.c.b16 %v716, %v713
    %v747 = vpack.c.b16 %v717, %v714
    %v748 = vpack.c.b16 %v721, %v718
    %v749 = vpack.c.b16 %v722, %v719
    %v750 = vpack.c.b16 %v723, %v720
    %v751 = vpack.c.b16 %v727, %v724
    %v752 = vpack.c.b16 %v728, %v725
    %v753 = vpack.c.b16 %v729, %v726
    %778 = vmatpush.bf16.msra.mxu0 %v751
    %779 = vmatpush.bf16.msra.mxu0 %v748
    %780 = vmatpush.bf16.msra.mxu0 %v745
    %781 = vmatpush.bf16.msra.mxu0 %v742
    %782 = vmatpush.bf16.msra.mxu0 %v739
    %783 = vmatpush.bf16.msra.mxu0 %v736
    %784 = vmatpush.bf16.msra.mxu0 %v733
    %785 = vmatpush.bf16.msra.mxu0 %v730
    %786 = vmatmul.bf16.gmra.mxu0 %v609
    %v787 = vpop.f32.mrf.mxu0
    %v788 = vadd.f32 %v644, %v787
    %v789 = vpop.f32.mrf.mxu0
    %v790 = vadd.f32 %v644, %v789
    %791 = vdwg.mxu0
    %792 = vmatpush.bf16.msra.mxu0 %v752
    %793 = vmatpush.bf16.msra.mxu0 %v749
    %794 = vmatpush.bf16.msra.mxu0 %v746
    %795 = vmatpush.bf16.msra.mxu0 %v743
    %796 = vmatpush.bf16.msra.mxu0 %v740
    %797 = vmatpush.bf16.msra.mxu0 %v737
    %798 = vmatpush.bf16.msra.mxu0 %v734
    %799 = vmatpush.bf16.msra.mxu0 %v731
    %800 = vmatmul.bf16.gmra.mxu0 %v609
    %v801 = vpop.f32.mrf.mxu0
    %v802 = vadd.f32 %v645, %v801
    %v803 = vpop.f32.mrf.mxu0
    %v804 = vadd.f32 %v645, %v803
    %805 = vdwg.mxu0
    %806 = vmatpush.bf16.msra.mxu0 %v753
    %807 = vmatpush.bf16.msra.mxu0 %v750
    %808 = vmatpush.bf16.msra.mxu0 %v747
    %809 = vmatpush.bf16.msra.mxu0 %v744
    %810 = vmatpush.bf16.msra.mxu0 %v741
    %811 = vmatpush.bf16.msra.mxu0 %v738
    %812 = vmatpush.bf16.msra.mxu0 %v735
    %813 = vmatpush.bf16.msra.mxu0 %v732
    %814 = vmatmul.bf16.gmra.mxu0 %v609
    %v815 = vpop.f32.mrf.mxu0
    %v816 = vadd.f32 %v646, %v815
    %v817 = vpop.f32.mrf.mxu0
    %v818 = vadd.f32 %v646, %v817
    %819 = vdwg.mxu0
    %vm820 = vcmask 523264
    %v822 = vsel %vm820, %v788, 0
    %v825 = vsel %vm820, %v802, 0
    %827 = vmatpush.xpose.msra.mxu0 0.0
    %828 = vmatpush.xpose.msra.mxu0 0.0
    %829 = vmatpush.xpose.msra.mxu0 0.0
    %830 = vmatpush.xpose.msra.mxu0 0.0
    %831 = vmatpush.xpose.msra.mxu0 0.0
    %832 = vmatpush.xpose.msra.mxu0 0.0
    %833 = vmatpush.xpose.msra.mxu0 0.0
    %834 = vmatpush.xpose.msra.mxu0 0.0
    %835 = vmatpush.xpose.msra.mxu0 0.0
    %836 = vmatpush.xpose.msra.mxu0 0.0
    %837 = vmatpush.xpose.msra.mxu0 0.0
    %838 = vmatpush.xpose.msra.mxu0 0.0
    %839 = vmatpush.xpose.msra.mxu0 0.0
    %840 = vmatpush.xpose.msra.mxu0 0.0
    %841 = vmatpush.xpose.msra.mxu0 0.0
    %842 = vmatpush.xpose.msra.mxu0 %v825
    %843 = vmatmul.f32.gmra.mxu0 %v822
    %v844 = vpop.f32.mrf.mxu0
    %v845 = vadd.f32 0.0, %v844
    %846 = vdwg.mxu0
    %v847 = vmul.f32 %v845, 0.125
    %v848 = vld [vmem:[%s8] sm:$0xff]
    %v849 = vadd.f32 %v847, %v848
    %vm850 = vcmask 64512
    %v851 = vsel %vm850, %v849, -inf
    %852 = vmax.xlane.f32.xlu0 %v851
    %v853 = vpop.xlane.xlu0 %852
    %v854 = vsub.f32 %v849, %v853
    %v855 = vmul.f32 %v854, 1.442695
    %v856 = vpow.pop %v855
    %v857 = vsel %vm850, %v856, 0.0
    %858 = vadd.xlane.f32.xlu0 %v857
    %v859 = vpop.xlane.xlu0 %858
    %v860 = vrcp.pop %v859
    %v861 = vmul.f32 %v859, %v860
    %v862 = vsub.f32 1.0, %v861
    %v863 = vmul.f32 %v860, %v862
    %v864 = vadd.f32 %v860, %v863
    %vm865 = vweird.f32 %v859
    %vm866 = vweird.f32 %v860
    %vm867 = vmor %vm865, %vm866
    %v868 = vsel %vm867, %v860, %v864
    %v869 = vand.u32 2147483647, %v859
    %vm870 = vcmp.eq.f32.partialorder %v869, 8.507059e+37
    %v871 = vand.u32 %v859, 2147483648
    %v872 = vor.u32 1.1754944e-38, %v871
    %v873 = vsel %vm870, %v872, %v868
    %v874 = vmul.f32 %v856, %v873
    %v876 = vsel %vm850, %v874, 0
    %878 = vmatpush.msra.mxu0 0.0
    %879 = vmatpush.msra.mxu0 0.0
    %880 = vmatpush.msra.mxu0 0.0
    %881 = vmatpush.msra.mxu0 0.0
    %882 = vmatpush.msra.mxu0 0.0
    %883 = vmatpush.msra.mxu0 0.0
    %884 = vmatpush.msra.mxu0 0.0
    %885 = vmatpush.msra.mxu0 0.0
    %886 = vmatpush.msra.mxu0 0.0
    %887 = vmatpush.msra.mxu0 0.0
    %888 = vmatpush.msra.mxu0 0.0
    %889 = vmatpush.msra.mxu0 0.0
    %890 = vmatpush.msra.mxu0 0.0
    %891 = vmatpush.msra.mxu0 0.0
    %892 = vmatpush.msra.mxu0 0.0
    %893 = vmatpush.msra.mxu0 %v816
    %894 = vmatmul.f32.gmra.mxu0 %v876
    %v895 = vpop.f32.mrf.mxu0
    %v896 = vadd.f32 0.0, %v895
    %897 = vdwg.mxu0
    %898 = vrot.lane.b32.xlu0 %v788, 64
    %v899 = vpop.permute.xlu0 %898
    %900 = vrot.lane.b32.xlu0 %v802, 64
    %v901 = vpop.permute.xlu0 %900
    %v902 = vsel %vm820, %v899, 0
    %v904 = vsel %vm820, %v901, 0
    %906 = vmatpush.xpose.msra.mxu0 0.0
    %907 = vmatpush.xpose.msra.mxu0 0.0
    %908 = vmatpush.xpose.msra.mxu0 0.0
    %909 = vmatpush.xpose.msra.mxu0 0.0
    %910 = vmatpush.xpose.msra.mxu0 0.0
    %911 = vmatpush.xpose.msra.mxu0 0.0
    %912 = vmatpush.xpose.msra.mxu0 0.0
    %913 = vmatpush.xpose.msra.mxu0 0.0
    %914 = vmatpush.xpose.msra.mxu0 0.0
    %915 = vmatpush.xpose.msra.mxu0 0.0
    %916 = vmatpush.xpose.msra.mxu0 0.0
    %917 = vmatpush.xpose.msra.mxu0 0.0
    %918 = vmatpush.xpose.msra.mxu0 0.0
    %919 = vmatpush.xpose.msra.mxu0 0.0
    %920 = vmatpush.xpose.msra.mxu0 0.0
    %921 = vmatpush.xpose.msra.mxu0 %v904
    %922 = vmatmul.f32.gmra.mxu0 %v902
    %v923 = vpop.f32.mrf.mxu0
    %v924 = vadd.f32 0.0, %v923
    %925 = vdwg.mxu0
    %v926 = vmul.f32 %v924, 0.125
    %s927 = scalar_lea.vmem %s8, 8
    %v928 = vld [vmem:[%s927] sm:$0xff]
    %v929 = vadd.f32 %v926, %v928
    %v930 = vsel %vm850, %v929, -inf
    %931 = vmax.xlane.f32.xlu0 %v930
    %v932 = vpop.xlane.xlu0 %931
    %v933 = vsub.f32 %v929, %v932
    %v934 = vmul.f32 %v933, 1.442695
    %v935 = vpow.pop %v934
    %v936 = vsel %vm850, %v935, 0.0
    %937 = vadd.xlane.f32.xlu0 %v936
    %v938 = vpop.xlane.xlu0 %937
    %v939 = vrcp.pop %v938
    %v940 = vmul.f32 %v938, %v939
    %v941 = vsub.f32 1.0, %v940
    %v942 = vmul.f32 %v939, %v941
    %v943 = vadd.f32 %v939, %v942
    %vm944 = vweird.f32 %v938
    %vm945 = vweird.f32 %v939
    %vm946 = vmor %vm944, %vm945
    %v947 = vsel %vm946, %v939, %v943
    %v948 = vand.u32 2147483647, %v938
    %vm949 = vcmp.eq.f32.partialorder %v948, 8.507059e+37
    %v950 = vand.u32 %v938, 2147483648
    %v951 = vor.u32 1.1754944e-38, %v950
    %v952 = vsel %vm949, %v951, %v947
    %v953 = vmul.f32 %v935, %v952
    %955 = vrot.lane.b32.xlu0 %v816, 64
    %v956 = vpop.permute.xlu0 %955
    %v959 = vsel %vm850, %v953, 0
    %961 = vmatpush.msra.mxu0 0.0
    %962 = vmatpush.msra.mxu0 0.0
    %963 = vmatpush.msra.mxu0 0.0
    %964 = vmatpush.msra.mxu0 0.0
    %965 = vmatpush.msra.mxu0 0.0
    %966 = vmatpush.msra.mxu0 0.0
    %967 = vmatpush.msra.mxu0 0.0
    %968 = vmatpush.msra.mxu0 0.0
    %969 = vmatpush.msra.mxu0 0.0
    %970 = vmatpush.msra.mxu0 0.0
    %971 = vmatpush.msra.mxu0 0.0
    %972 = vmatpush.msra.mxu0 0.0
    %973 = vmatpush.msra.mxu0 0.0
    %974 = vmatpush.msra.mxu0 0.0
    %975 = vmatpush.msra.mxu0 0.0
    %976 = vmatpush.msra.mxu0 %v956
    %977 = vmatmul.f32.gmra.mxu0 %v959
    %v978 = vpop.f32.mrf.mxu0
    %v979 = vadd.f32 0.0, %v978
    %980 = vdwg.mxu0
    %982 = vrot.lane.b32.xlu0 %v979, 64
    %v983 = vpop.permute.xlu0 %982
    %v985 = vsel %vm820, %v896, %v983
    %v987 = vsel %vm820, %v790, 0
    %v990 = vsel %vm820, %v804, 0
    %992 = vmatpush.xpose.msra.mxu0 0.0
    %993 = vmatpush.xpose.msra.mxu0 0.0
    %994 = vmatpush.xpose.msra.mxu0 0.0
    %995 = vmatpush.xpose.msra.mxu0 0.0
    %996 = vmatpush.xpose.msra.mxu0 0.0
    %997 = vmatpush.xpose.msra.mxu0 0.0
    %998 = vmatpush.xpose.msra.mxu0 0.0
    %999 = vmatpush.xpose.msra.mxu0 0.0
    %1000 = vmatpush.xpose.msra.mxu0 0.0
    %1001 = vmatpush.xpose.msra.mxu0 0.0
    %1002 = vmatpush.xpose.msra.mxu0 0.0
    %1003 = vmatpush.xpose.msra.mxu0 0.0
    %1004 = vmatpush.xpose.msra.mxu0 0.0
    %1005 = vmatpush.xpose.msra.mxu0 0.0
    %1006 = vmatpush.xpose.msra.mxu0 0.0
    %1007 = vmatpush.xpose.msra.mxu0 %v990
    %1008 = vmatmul.f32.gmra.mxu0 %v987
    %v1009 = vpop.f32.mrf.mxu0
    %v1010 = vadd.f32 0.0, %v1009
    %1011 = vdwg.mxu0
    %v1012 = vmul.f32 %v1010, 0.125
    %v1013 = vadd.f32 %v1012, %v848
    %v1014 = vsel %vm850, %v1013, -inf
    %1015 = vmax.xlane.f32.xlu0 %v1014
    %v1016 = vpop.xlane.xlu0 %1015
    %v1017 = vsub.f32 %v1013, %v1016
    %v1018 = vmul.f32 %v1017, 1.442695
    %v1019 = vpow.pop %v1018
    %v1020 = vsel %vm850, %v1019, 0.0
    %1021 = vadd.xlane.f32.xlu0 %v1020
    %v1022 = vpop.xlane.xlu0 %1021
    %v1023 = vrcp.pop %v1022
    %v1024 = vmul.f32 %v1022, %v1023
    %v1025 = vsub.f32 1.0, %v1024
    %v1026 = vmul.f32 %v1023, %v1025
    %v1027 = vadd.f32 %v1023, %v1026
    %vm1028 = vweird.f32 %v1022
    %vm1029 = vweird.f32 %v1023
    %vm1030 = vmor %vm1028, %vm1029
    %v1031 = vsel %vm1030, %v1023, %v1027
    %v1032 = vand.u32 2147483647, %v1022
    %vm1033 = vcmp.eq.f32.partialorder %v1032, 8.507059e+37
    %v1034 = vand.u32 %v1022, 2147483648
    %v1035 = vor.u32 1.1754944e-38, %v1034
    %v1036 = vsel %vm1033, %v1035, %v1031
    %v1037 = vmul.f32 %v1019, %v1036
    %v1039 = vsel %vm850, %v1037, 0
    %1041 = vmatpush.msra.mxu0 0.0
    %1042 = vmatpush.msra.mxu0 0.0
    %1043 = vmatpush.msra.mxu0 0.0
    %1044 = vmatpush.msra.mxu0 0.0
    %1045 = vmatpush.msra.mxu0 0.0
    %1046 = vmatpush.msra.mxu0 0.0
    %1047 = vmatpush.msra.mxu0 0.0
    %1048 = vmatpush.msra.mxu0 0.0
    %1049 = vmatpush.msra.mxu0 0.0
    %1050 = vmatpush.msra.mxu0 0.0
    %1051 = vmatpush.msra.mxu0 0.0
    %1052 = vmatpush.msra.mxu0 0.0
    %1053 = vmatpush.msra.mxu0 0.0
    %1054 = vmatpush.msra.mxu0 0.0
    %1055 = vmatpush.msra.mxu0 0.0
    %1056 = vmatpush.msra.mxu0 %v818
    %1057 = vmatmul.f32.gmra.mxu0 %v1039
    %v1058 = vpop.f32.mrf.mxu0
    %v1059 = vadd.f32 0.0, %v1058
    %1060 = vdwg.mxu0
    %1061 = vrot.lane.b32.xlu0 %v790, 64
    %v1062 = vpop.permute.xlu0 %1061
    %1063 = vrot.lane.b32.xlu0 %v804, 64
    %v1064 = vpop.permute.xlu0 %1063
    %v1065 = vsel %vm820, %v1062, 0
    %v1067 = vsel %vm820, %v1064, 0
    %1069 = vmatpush.xpose.msra.mxu0 0.0
    %1070 = vmatpush.xpose.msra.mxu0 0.0
    %1071 = vmatpush.xpose.msra.mxu0 0.0
    %1072 = vmatpush.xpose.msra.mxu0 0.0
    %1073 = vmatpush.xpose.msra.mxu0 0.0
    %1074 = vmatpush.xpose.msra.mxu0 0.0
    %1075 = vmatpush.xpose.msra.mxu0 0.0
    %1076 = vmatpush.xpose.msra.mxu0 0.0
    %1077 = vmatpush.xpose.msra.mxu0 0.0
    %1078 = vmatpush.xpose.msra.mxu0 0.0
    %1079 = vmatpush.xpose.msra.mxu0 0.0
    %1080 = vmatpush.xpose.msra.mxu0 0.0
    %1081 = vmatpush.xpose.msra.mxu0 0.0
    %1082 = vmatpush.xpose.msra.mxu0 0.0
    %1083 = vmatpush.xpose.msra.mxu0 0.0
    %1084 = vmatpush.xpose.msra.mxu0 %v1067
    %1085 = vmatmul.f32.gmra.mxu0 %v1065
    %v1086 = vpop.f32.mrf.mxu0
    %v1087 = vadd.f32 0.0, %v1086
    %1088 = vdwg.mxu0
    %v1089 = vmul.f32 %v1087, 0.125
    %v1090 = vadd.f32 %v1089, %v928
    %v1091 = vsel %vm850, %v1090, -inf
    %1092 = vmax.xlane.f32.xlu0 %v1091
    %v1093 = vpop.xlane.xlu0 %1092
    %v1094 = vsub.f32 %v1090, %v1093
    %v1095 = vmul.f32 %v1094, 1.442695
    %v1096 = vpow.pop %v1095
    %v1097 = vsel %vm850, %v1096, 0.0
    %1098 = vadd.xlane.f32.xlu0 %v1097
    %v1099 = vpop.xlane.xlu0 %1098
    %v1100 = vrcp.pop %v1099
    %v1101 = vmul.f32 %v1099, %v1100
    %v1102 = vsub.f32 1.0, %v1101
    %v1103 = vmul.f32 %v1100, %v1102
    %v1104 = vadd.f32 %v1100, %v1103
    %vm1105 = vweird.f32 %v1099
    %vm1106 = vweird.f32 %v1100
    %vm1107 = vmor %vm1105, %vm1106
    %v1108 = vsel %vm1107, %v1100, %v1104
    %v1109 = vand.u32 2147483647, %v1099
    %vm1110 = vcmp.eq.f32.partialorder %v1109, 8.507059e+37
    %v1111 = vand.u32 %v1099, 2147483648
    %v1112 = vor.u32 1.1754944e-38, %v1111
    %v1113 = vsel %vm1110, %v1112, %v1108
    %v1114 = vmul.f32 %v1096, %v1113
    %1116 = vrot.lane.b32.xlu0 %v818, 64
    %v1117 = vpop.permute.xlu0 %1116
    %v1120 = vsel %vm850, %v1114, 0
    %1122 = vmatpush.msra.mxu0 0.0
    %1123 = vmatpush.msra.mxu0 0.0
    %1124 = vmatpush.msra.mxu0 0.0
    %1125 = vmatpush.msra.mxu0 0.0
    %1126 = vmatpush.msra.mxu0 0.0
    %1127 = vmatpush.msra.mxu0 0.0
    %1128 = vmatpush.msra.mxu0 0.0
    %1129 = vmatpush.msra.mxu0 0.0
    %1130 = vmatpush.msra.mxu0 0.0
    %1131 = vmatpush.msra.mxu0 0.0
    %1132 = vmatpush.msra.mxu0 0.0
    %1133 = vmatpush.msra.mxu0 0.0
    %1134 = vmatpush.msra.mxu0 0.0
    %1135 = vmatpush.msra.mxu0 0.0
    %1136 = vmatpush.msra.mxu0 0.0
    %1137 = vmatpush.msra.mxu0 %v1117
    %1138 = vmatmul.f32.gmra.mxu0 %v1120
    %v1139 = vpop.f32.mrf.mxu0
    %v1140 = vadd.f32 0.0, %v1139
    %1141 = vdwg.mxu0
    %1143 = vrot.lane.b32.xlu0 %v1140, 64
    %v1144 = vpop.permute.xlu0 %1143
    %v1146 = vsel %vm820, %v1059, %v1144
    %v1147 = vpack.c.bf16 %v1146, %v985
    %v1148 = vld [vmem:[#allocation9] sm:$0xf]
    %v1149 = vld [vmem:[#allocation9 + $0x4] sm:$0xf]
    %v1150 = vld [vmem:[#allocation9 + $0x8] sm:$0xf]
    %v1151 = vld [vmem:[#allocation9 + $0xc] sm:$0xf]
    %v1152 = vld [vmem:[#allocation9 + $0x10] sm:$0xf]
    %v1153 = vld [vmem:[#allocation9 + $0x14] sm:$0xf]
    %v1154 = vld [vmem:[#allocation9 + $0x18] sm:$0xf]
    %v1155 = vld [vmem:[#allocation9 + $0x1c] sm:$0xf]
    %v1156 = vld [vmem:[#allocation9 + $0x20] sm:$0xf]
    %v1157 = vld [vmem:[#allocation9 + $0x24] sm:$0xf]
    %v1158 = vld [vmem:[#allocation9 + $0x28] sm:$0xf]
    %v1159 = vld [vmem:[#allocation9 + $0x2c] sm:$0xf]
    %v1160 = vld [vmem:[#allocation9 + $0x30] sm:$0xf]
    %v1161 = vld [vmem:[#allocation9 + $0x34] sm:$0xf]
    %v1162 = vld [vmem:[#allocation9 + $0x38] sm:$0xf]
    %v1163 = vld [vmem:[#allocation9 + $0x3c] sm:$0xf]
    %v1164 = vld [vmem:[#allocation10] sm:$0x1]
    %v1166 = vperm.slane %v1164, 0
    %v1184 = vunpack.c.l.b16 %v1148
    %v1185 = vunpack.c.l.b16 %v1149
    %v1186 = vunpack.c.l.b16 %v1150
    %v1187 = vunpack.c.l.b16 %v1151
    %v1188 = vunpack.c.l.b16 %v1152
    %v1189 = vunpack.c.l.b16 %v1153
    %v1190 = vunpack.c.l.b16 %v1154
    %v1191 = vunpack.c.l.b16 %v1155
    %v1192 = vunpack.c.l.b16 %v1156
    %v1193 = vunpack.c.l.b16 %v1157
    %v1194 = vunpack.c.l.b16 %v1158
    %v1195 = vunpack.c.l.b16 %v1159
    %v1196 = vunpack.c.l.b16 %v1160
    %v1197 = vunpack.c.l.b16 %v1161
    %v1198 = vunpack.c.l.b16 %v1162
    %v1199 = vunpack.c.l.b16 %v1163
    %v1200 = vpack.c.b16 %v1185, %v1184
    %v1201 = vpack.c.b16 %v1187, %v1186
    %v1202 = vpack.c.b16 %v1189, %v1188
    %v1203 = vpack.c.b16 %v1191, %v1190
    %v1204 = vpack.c.b16 %v1193, %v1192
    %v1205 = vpack.c.b16 %v1195, %v1194
    %v1206 = vpack.c.b16 %v1197, %v1196
    %v1207 = vpack.c.b16 %v1199, %v1198
    %1216 = vmatpush.bf16.msra.mxu0 %v1207
    %1217 = vmatpush.bf16.msra.mxu0 %v1206
    %1218 = vmatpush.bf16.msra.mxu0 %v1205
    %1219 = vmatpush.bf16.msra.mxu0 %v1204
    %1220 = vmatpush.bf16.msra.mxu0 %v1203
    %1221 = vmatpush.bf16.msra.mxu0 %v1202
    %1222 = vmatpush.bf16.msra.mxu0 %v1201
    %1223 = vmatpush.bf16.msra.mxu0 %v1200
    %1224 = vmatmul.bf16.gmra.mxu0 %v1147
    %v1225 = vpop.f32.mrf.mxu0
    %v1226 = vadd.f32 %v1166, %v1225
    %v1227 = vpop.f32.mrf.mxu0
    %v1228 = vadd.f32 %v1166, %v1227
    %1229 = vdwg.mxu0
    %v1230 = vld [vmem:[#allocation12] sm:$0x1]
    %v1232 = vperm.slane %v1230, 0
    %v1234 = vmul.f32 %v1232, %v1226
    %v1235 = vmul.f32 %v1232, %v1228
    %v1236 = vadd.f32 %v548, %v1234
    %v1237 = vadd.f32 %v549, %v1235
    %v1238 = vld [vmem:[#allocation13] sm:$0x1]
    %v1239 = vld [vmem:[#allocation15] sm:$0x1]
    %1240 = vadd.xlane.f32.xlu0 %v1236
    %v1241 = vpop.xlane.xlu0 %1240
    %1242 = vadd.xlane.f32.xlu0 %v1237
    %v1243 = vpop.xlane.xlu0 %1242
    %v1244 = vmul.f32 %v1241, %v562
    %v1245 = vmul.f32 %v1243, %v562
    %v1246 = vsub.f32 %v1236, %v1244
    %v1247 = vsub.f32 %v1237, %v1245
    %v1248 = vmul.f32 %v1246, %v1246
    %v1249 = vmul.f32 %v1247, %v1247
    %1250 = vadd.xlane.f32.xlu0 %v1248
    %v1251 = vpop.xlane.xlu0 %1250
    %1252 = vadd.xlane.f32.xlu0 %v1249
    %v1253 = vpop.xlane.xlu0 %1252
    %v1254 = vmul.f32 %v1251, %v562
    %v1255 = vmul.f32 %v1253, %v562
    %v1256 = vadd.f32 %v1254, 1e-06
    %v1257 = vadd.f32 %v1255, 1e-06
    %v1258 = vrsqrt.pop %v1256
    %v1259 = vmul.f32 %v1258, %v1256
    %v1260 = vmul.f32 %v1259, %v1258
    %v1261 = vmul.f32 0.5, %v1260
    %v1262 = vsub.f32 1.5, %v1261
    %v1263 = vmul.f32 %v1258, %v1262
    %vm1264 = vweird.f32 %v1256
    %vm1265 = vweird.f32 %v1258
    %vm1266 = vmor %vm1264, %vm1265
    %v1267 = vsel %vm1266, %v1258, %v1263
    %v1268 = vrsqrt.pop %v1257
    %v1269 = vmul.f32 %v1268, %v1257
    %v1270 = vmul.f32 %v1269, %v1268
    %v1271 = vmul.f32 0.5, %v1270
    %v1272 = vsub.f32 1.5, %v1271
    %v1273 = vmul.f32 %v1268, %v1272
    %vm1274 = vweird.f32 %v1257
    %vm1275 = vweird.f32 %v1268
    %vm1276 = vmor %vm1274, %vm1275
    %v1277 = vsel %vm1276, %v1268, %v1273
    %v1278 = vmul.f32 %v1246, %v1267
    %v1279 = vmul.f32 %v1247, %v1277
    %v1281 = vperm.slane %v1238, 0
    %v1283 = vmul.f32 %v1278, %v1281
    %v1284 = vmul.f32 %v1279, %v1281
    %v1286 = vperm.slane %v1239, 0
    %v1288 = vadd.f32 %v1283, %v1286
    %v1289 = vadd.f32 %v1284, %v1286
    %v1290 = vpack.c.bf16 %v1289, %v1288
    %v1291 = vld [vmem:[%s14] sm:$0xff]
    %v1292 = vld [vmem:[%s14 + $0x8] sm:$0xff]
    %v1293 = vld [vmem:[%s14 + $0x10] sm:$0xff]
    %v1294 = vld [vmem:[%s14 + $0x18] sm:$0xff]
    %v1295 = vld [vmem:[%s14 + $0x20] sm:$0xff]
    %v1296 = vld [vmem:[%s14 + $0x28] sm:$0xff]
    %v1297 = vld [vmem:[%s14 + $0x30] sm:$0xff]
    %v1298 = vld [vmem:[%s14 + $0x38] sm:$0xff]
    %v1299 = vld [vmem:[%s14 + $0x40] sm:$0xff]
    %v1300 = vld [vmem:[%s14 + $0x48] sm:$0xff]
    %v1301 = vld [vmem:[%s14 + $0x50] sm:$0xff]
    %v1302 = vld [vmem:[%s14 + $0x58] sm:$0xff]
    %v1303 = vld [vmem:[%s14 + $0x60] sm:$0xff]
    %v1304 = vld [vmem:[%s14 + $0x68] sm:$0xff]
    %v1305 = vld [vmem:[%s14 + $0x70] sm:$0xff]
    %v1306 = vld [vmem:[%s14 + $0x78] sm:$0xff]
    %v1307 = vld [vmem:[%s14 + $0x80] sm:$0xff]
    %v1308 = vld [vmem:[%s14 + $0x88] sm:$0xff]
    %v1309 = vld [vmem:[%s14 + $0x90] sm:$0xff]
    %v1310 = vld [vmem:[%s14 + $0x98] sm:$0xff]
    %v1311 = vld [vmem:[%s14 + $0xa0] sm:$0xff]
    %v1312 = vld [vmem:[%s14 + $0xa8] sm:$0xff]
    %v1313 = vld [vmem:[%s14 + $0xb0] sm:$0xff]
    %v1314 = vld [vmem:[%s14 + $0xb8] sm:$0xff]
    %v1315 = vld [vmem:[%s14 + $0xc0] sm:$0xff]
    %v1316 = vld [vmem:[%s14 + $0xc8] sm:$0xff]
    %v1317 = vld [vmem:[%s14 + $0xd0] sm:$0xff]
    %v1318 = vld [vmem:[%s14 + $0xd8] sm:$0xff]
    %v1319 = vld [vmem:[%s14 + $0xe0] sm:$0xff]
    %v1320 = vld [vmem:[%s14 + $0xe8] sm:$0xff]
    %v1321 = vld [vmem:[%s14 + $0xf0] sm:$0xff]
    %v1322 = vld [vmem:[%s14 + $0xf8] sm:$0xff]
    %v1323 = vld [vmem:[#allocation16] sm:$0xf]
    %v1325 = vperm.slane %v1323, 0
    %v1326 = vperm.slane %v1323, 1
    %v1327 = vperm.slane %v1323, 2
    %v1328 = vperm.slane %v1323, 3
    %v1365 = vunpack.c.l.b16 %v1291
    %v1366 = vunpack.c.h.b16 %v1291
    %v1367 = vunpack.c.l.b16 %v1292
    %v1368 = vunpack.c.h.b16 %v1292
    %v1369 = vunpack.c.l.b16 %v1293
    %v1370 = vunpack.c.h.b16 %v1293
    %v1371 = vunpack.c.l.b16 %v1294
    %v1372 = vunpack.c.h.b16 %v1294
    %v1373 = vunpack.c.l.b16 %v1295
    %v1374 = vunpack.c.h.b16 %v1295
    %v1375 = vunpack.c.l.b16 %v1296
    %v1376 = vunpack.c.h.b16 %v1296
    %v1377 = vunpack.c.l.b16 %v1297
    %v1378 = vunpack.c.h.b16 %v1297
    %v1379 = vunpack.c.l.b16 %v1298
    %v1380 = vunpack.c.h.b16 %v1298
    %v1381 = vunpack.c.l.b16 %v1299
    %v1382 = vunpack.c.h.b16 %v1299
    %v1383 = vunpack.c.l.b16 %v1300
    %v1384 = vunpack.c.h.b16 %v1300
    %v1385 = vunpack.c.l.b16 %v1301
    %v1386 = vunpack.c.h.b16 %v1301
    %v1387 = vunpack.c.l.b16 %v1302
    %v1388 = vunpack.c.h.b16 %v1302
    %v1389 = vunpack.c.l.b16 %v1303
    %v1390 = vunpack.c.h.b16 %v1303
    %v1391 = vunpack.c.l.b16 %v1304
    %v1392 = vunpack.c.h.b16 %v1304
    %v1393 = vunpack.c.l.b16 %v1305
    %v1394 = vunpack.c.h.b16 %v1305
    %v1395 = vunpack.c.l.b16 %v1306
    %v1396 = vunpack.c.h.b16 %v1306
    %v1397 = vunpack.c.l.b16 %v1307
    %v1398 = vunpack.c.h.b16 %v1307
    %v1399 = vunpack.c.l.b16 %v1308
    %v1400 = vunpack.c.h.b16 %v1308
    %v1401 = vunpack.c.l.b16 %v1309
    %v1402 = vunpack.c.h.b16 %v1309
    %v1403 = vunpack.c.l.b16 %v1310
    %v1404 = vunpack.c.h.b16 %v1310
    %v1405 = vunpack.c.l.b16 %v1311
    %v1406 = vunpack.c.h.b16 %v1311
    %v1407 = vunpack.c.l.b16 %v1312
    %v1408 = vunpack.c.h.b16 %v1312
    %v1409 = vunpack.c.l.b16 %v1313
    %v1410 = vunpack.c.h.b16 %v1313
    %v1411 = vunpack.c.l.b16 %v1314
    %v1412 = vunpack.c.h.b16 %v1314
    %v1413 = vunpack.c.l.b16 %v1315
    %v1414 = vunpack.c.h.b16 %v1315
    %v1415 = vunpack.c.l.b16 %v1316
    %v1416 = vunpack.c.h.b16 %v1316
    %v1417 = vunpack.c.l.b16 %v1317
    %v1418 = vunpack.c.h.b16 %v1317
    %v1419 = vunpack.c.l.b16 %v1318
    %v1420 = vunpack.c.h.b16 %v1318
    %v1421 = vunpack.c.l.b16 %v1319
    %v1422 = vunpack.c.h.b16 %v1319
    %v1423 = vunpack.c.l.b16 %v1320
    %v1424 = vunpack.c.h.b16 %v1320
    %v1425 = vunpack.c.l.b16 %v1321
    %v1426 = vunpack.c.h.b16 %v1321
    %v1427 = vunpack.c.l.b16 %v1322
    %v1428 = vunpack.c.h.b16 %v1322
    %v1429 = vpack.c.b16 %v1369, %v1365
    %v1430 = vpack.c.b16 %v1370, %v1366
    %v1431 = vpack.c.b16 %v1371, %v1367
    %v1432 = vpack.c.b16 %v1372, %v1368
    %v1433 = vpack.c.b16 %v1377, %v1373
    %v1434 = vpack.c.b16 %v1378, %v1374
    %v1435 = vpack.c.b16 %v1379, %v1375
    %v1436 = vpack.c.b16 %v1380, %v1376
    %v1437 = vpack.c.b16 %v1385, %v1381
    %v1438 = vpack.c.b16 %v1386, %v1382
    %v1439 = vpack.c.b16 %v1387, %v1383
    %v1440 = vpack.c.b16 %v1388, %v1384
    %v1441 = vpack.c.b16 %v1393, %v1389
    %v1442 = vpack.c.b16 %v1394, %v1390
    %v1443 = vpack.c.b16 %v1395, %v1391
    %v1444 = vpack.c.b16 %v1396, %v1392
    %v1445 = vpack.c.b16 %v1401, %v1397
    %v1446 = vpack.c.b16 %v1402, %v1398
    %v1447 = vpack.c.b16 %v1403, %v1399
    %v1448 = vpack.c.b16 %v1404, %v1400
    %v1449 = vpack.c.b16 %v1409, %v1405
    %v1450 = vpack.c.b16 %v1410, %v1406
    %v1451 = vpack.c.b16 %v1411, %v1407
    %v1452 = vpack.c.b16 %v1412, %v1408
    %v1453 = vpack.c.b16 %v1417, %v1413
    %v1454 = vpack.c.b16 %v1418, %v1414
    %v1455 = vpack.c.b16 %v1419, %v1415
    %v1456 = vpack.c.b16 %v1420, %v1416
    %v1457 = vpack.c.b16 %v1425, %v1421
    %v1458 = vpack.c.b16 %v1426, %v1422
    %v1459 = vpack.c.b16 %v1427, %v1423
    %v1460 = vpack.c.b16 %v1428, %v1424
    %1493 = vmatpush.bf16.msra.mxu0 %v1457
    %1494 = vmatpush.bf16.msra.mxu0 %v1453
    %1495 = vmatpush.bf16.msra.mxu0 %v1449
    %1496 = vmatpush.bf16.msra.mxu0 %v1445
    %1497 = vmatpush.bf16.msra.mxu0 %v1441
    %1498 = vmatpush.bf16.msra.mxu0 %v1437
    %1499 = vmatpush.bf16.msra.mxu0 %v1433
    %1500 = vmatpush.bf16.msra.mxu0 %v1429
    %1501 = vmatmul.bf16.gmra.mxu0 %v1290
    %v1502 = vpop.f32.mrf.mxu0
    %v1503 = vadd.f32 %v1325, %v1502
    %v1504 = vpop.f32.mrf.mxu0
    %v1505 = vadd.f32 %v1325, %v1504
    %1506 = vdwg.mxu0
    %1507 = vmatpush.bf16.msra.mxu0 %v1458
    %1508 = vmatpush.bf16.msra.mxu0 %v1454
    %1509 = vmatpush.bf16.msra.mxu0 %v1450
    %1510 = vmatpush.bf16.msra.mxu0 %v1446
    %1511 = vmatpush.bf16.msra.mxu0 %v1442
    %1512 = vmatpush.bf16.msra.mxu0 %v1438
    %1513 = vmatpush.bf16.msra.mxu0 %v1434
    %1514 = vmatpush.bf16.msra.mxu0 %v1430
    %1515 = vmatmul.bf16.gmra.mxu0 %v1290
    %v1516 = vpop.f32.mrf.mxu0
    %v1517 = vadd.f32 %v1326, %v1516
    %v1518 = vpop.f32.mrf.mxu0
    %v1519 = vadd.f32 %v1326, %v1518
    %1520 = vdwg.mxu0
    %1521 = vmatpush.bf16.msra.mxu0 %v1459
    %1522 = vmatpush.bf16.msra.mxu0 %v1455
    %1523 = vmatpush.bf16.msra.mxu0 %v1451
    %1524 = vmatpush.bf16.msra.mxu0 %v1447
    %1525 = vmatpush.bf16.msra.mxu0 %v1443
    %1526 = vmatpush.bf16.msra.mxu0 %v1439
    %1527 = vmatpush.bf16.msra.mxu0 %v1435
    %1528 = vmatpush.bf16.msra.mxu0 %v1431
    %1529 = vmatmul.bf16.gmra.mxu0 %v1290
    %v1530 = vpop.f32.mrf.mxu0
    %v1531 = vadd.f32 %v1327, %v1530
    %v1532 = vpop.f32.mrf.mxu0
    %v1533 = vadd.f32 %v1327, %v1532
    %1534 = vdwg.mxu0
    %1535 = vmatpush.bf16.msra.mxu0 %v1460
    %1536 = vmatpush.bf16.msra.mxu0 %v1456
    %1537 = vmatpush.bf16.msra.mxu0 %v1452
    %1538 = vmatpush.bf16.msra.mxu0 %v1448
    %1539 = vmatpush.bf16.msra.mxu0 %v1444
    %1540 = vmatpush.bf16.msra.mxu0 %v1440
    %1541 = vmatpush.bf16.msra.mxu0 %v1436
    %1542 = vmatpush.bf16.msra.mxu0 %v1432
    %1543 = vmatmul.bf16.gmra.mxu0 %v1290
    %v1544 = vpop.f32.mrf.mxu0
    %v1545 = vadd.f32 %v1328, %v1544
    %v1546 = vpop.f32.mrf.mxu0
    %v1547 = vadd.f32 %v1328, %v1546
    %1548 = vdwg.mxu0
    %v1549 = vmul.f32 %v1503, %v1503
    %v1550 = vmul.f32 %v1517, %v1517
    %v1551 = vmul.f32 %v1531, %v1531
    %v1552 = vmul.f32 %v1545, %v1545
    %v1553 = vmul.f32 %v1505, %v1505
    %v1554 = vmul.f32 %v1519, %v1519
    %v1555 = vmul.f32 %v1533, %v1533
    %v1556 = vmul.f32 %v1547, %v1547
    %v1557 = vmul.f32 %v1503, %v1549
    %v1558 = vmul.f32 %v1517, %v1550
    %v1559 = vmul.f32 %v1531, %v1551
    %v1560 = vmul.f32 %v1545, %v1552
    %v1561 = vmul.f32 %v1505, %v1553
    %v1562 = vmul.f32 %v1519, %v1554
    %v1563 = vmul.f32 %v1533, %v1555
    %v1564 = vmul.f32 %v1547, %v1556
    %v1565 = vmul.f32 %v1557, 0.044715
    %v1566 = vmul.f32 %v1558, 0.044715
    %v1567 = vmul.f32 %v1559, 0.044715
    %v1568 = vmul.f32 %v1560, 0.044715
    %v1569 = vmul.f32 %v1561, 0.044715
    %v1570 = vmul.f32 %v1562, 0.044715
    %v1571 = vmul.f32 %v1563, 0.044715
    %v1572 = vmul.f32 %v1564, 0.044715
    %v1573 = vadd.f32 %v1503, %v1565
    %v1574 = vadd.f32 %v1517, %v1566
    %v1575 = vadd.f32 %v1531, %v1567
    %v1576 = vadd.f32 %v1545, %v1568
    %v1577 = vadd.f32 %v1505, %v1569
    %v1578 = vadd.f32 %v1519, %v1570
    %v1579 = vadd.f32 %v1533, %v1571
    %v1580 = vadd.f32 %v1547, %v1572
    %v1581 = vmul.f32 %v1573, 0.7978846
    %v1582 = vmul.f32 %v1574, 0.7978846
    %v1583 = vmul.f32 %v1575, 0.7978846
    %v1584 = vmul.f32 %v1576, 0.7978846
    %v1585 = vmul.f32 %v1577, 0.7978846
    %v1586 = vmul.f32 %v1578, 0.7978846
    %v1587 = vmul.f32 %v1579, 0.7978846
    %v1588 = vmul.f32 %v1580, 0.7978846
    %v1589 = vtanh.pop %v1581
    %v1590 = vtanh.pop %v1582
    %v1591 = vtanh.pop %v1583
    %v1592 = vtanh.pop %v1584
    %v1593 = vtanh.pop %v1585
    %v1594 = vtanh.pop %v1586
    %v1595 = vtanh.pop %v1587
    %v1596 = vtanh.pop %v1588
    %v1597 = vadd.f32 %v1589, 1.0
    %v1598 = vadd.f32 %v1590, 1.0
    %v1599 = vadd.f32 %v1591, 1.0
    %v1600 = vadd.f32 %v1592, 1.0
    %v1601 = vadd.f32 %v1593, 1.0
    %v1602 = vadd.f32 %v1594, 1.0
    %v1603 = vadd.f32 %v1595, 1.0
    %v1604 = vadd.f32 %v1596, 1.0
    %v1605 = vmul.f32 %v1597, 0.5
    %v1606 = vmul.f32 %v1598, 0.5
    %v1607 = vmul.f32 %v1599, 0.5
    %v1608 = vmul.f32 %v1600, 0.5
    %v1609 = vmul.f32 %v1601, 0.5
    %v1610 = vmul.f32 %v1602, 0.5
    %v1611 = vmul.f32 %v1603, 0.5
    %v1612 = vmul.f32 %v1604, 0.5
    %v1613 = vmul.f32 %v1503, %v1605
    %v1614 = vmul.f32 %v1517, %v1606
    %v1615 = vmul.f32 %v1531, %v1607
    %v1616 = vmul.f32 %v1545, %v1608
    %v1617 = vmul.f32 %v1505, %v1609
    %v1618 = vmul.f32 %v1519, %v1610
    %v1619 = vmul.f32 %v1533, %v1611
    %v1620 = vmul.f32 %v1547, %v1612
    %v1621 = vpack.c.bf16 %v1617, %v1613
    %v1622 = vpack.c.bf16 %v1618, %v1614
    %v1623 = vpack.c.bf16 %v1619, %v1615
    %v1624 = vpack.c.bf16 %v1620, %v1616
    %v1625 = vld [vmem:[#allocation18] sm:$0xf]
    %v1626 = vld [vmem:[#allocation18 + $0x4] sm:$0xf]
    %v1627 = vld [vmem:[#allocation18 + $0x8] sm:$0xf]
    %v1628 = vld [vmem:[#allocation18 + $0xc] sm:$0xf]
    %v1629 = vld [vmem:[#allocation18 + $0x10] sm:$0xf]
    %v1630 = vld [vmem:[#allocation18 + $0x14] sm:$0xf]
    %v1631 = vld [vmem:[#allocation18 + $0x18] sm:$0xf]
    %v1632 = vld [vmem:[#allocation18 + $0x1c] sm:$0xf]
    %v1633 = vld [vmem:[#allocation18 + $0x20] sm:$0xf]
    %v1634 = vld [vmem:[#allocation18 + $0x24] sm:$0xf]
    %v1635 = vld [vmem:[#allocation18 + $0x28] sm:$0xf]
    %v1636 = vld [vmem:[#allocation18 + $0x2c] sm:$0xf]
    %v1637 = vld [vmem:[#allocation18 + $0x30] sm:$0xf]
    %v1638 = vld [vmem:[#allocation18 + $0x34] sm:$0xf]
    %v1639 = vld [vmem:[#allocation18 + $0x38] sm:$0xf]
    %v1640 = vld [vmem:[#allocation18 + $0x3c] sm:$0xf]
    %v1641 = vld [vmem:[#allocation18 + $0x40] sm:$0xf]
    %v1642 = vld [vmem:[#allocation18 + $0x44] sm:$0xf]
    %v1643 = vld [vmem:[#allocation18 + $0x48] sm:$0xf]
    %v1644 = vld [vmem:[#allocation18 + $0x4c] sm:$0xf]
    %v1645 = vld [vmem:[#allocation18 + $0x50] sm:$0xf]
    %v1646 = vld [vmem:[#allocation18 + $0x54] sm:$0xf]
    %v1647 = vld [vmem:[#allocation18 + $0x58] sm:$0xf]
    %v1648 = vld [vmem:[#allocation18 + $0x5c] sm:$0xf]
    %v1649 = vld [vmem:[#allocation18 + $0x60] sm:$0xf]
    %v1650 = vld [vmem:[#allocation18 + $0x64] sm:$0xf]
    %v1651 = vld [vmem:[#allocation18 + $0x68] sm:$0xf]
    %v1652 = vld [vmem:[#allocation18 + $0x6c] sm:$0xf]
    %v1653 = vld [vmem:[#allocation18 + $0x70] sm:$0xf]
    %v1654 = vld [vmem:[#allocation18 + $0x74] sm:$0xf]
    %v1655 = vld [vmem:[#allocation18 + $0x78] sm:$0xf]
    %v1656 = vld [vmem:[#allocation18 + $0x7c] sm:$0xf]
    %v1657 = vld [vmem:[#allocation18 + $0x80] sm:$0xf]
    %v1658 = vld [vmem:[#allocation18 + $0x84] sm:$0xf]
    %v1659 = vld [vmem:[#allocation18 + $0x88] sm:$0xf]
    %v1660 = vld [vmem:[#allocation18 + $0x8c] sm:$0xf]
    %v1661 = vld [vmem:[#allocation18 + $0x90] sm:$0xf]
    %v1662 = vld [vmem:[#allocation18 + $0x94] sm:$0xf]
    %v1663 = vld [vmem:[#allocation18 + $0x98] sm:$0xf]
    %v1664 = vld [vmem:[#allocation18 + $0x9c] sm:$0xf]
    %v1665 = vld [vmem:[#allocation18 + $0xa0] sm:$0xf]
    %v1666 = vld [vmem:[#allocation18 + $0xa4] sm:$0xf]
    %v1667 = vld [vmem:[#allocation18 + $0xa8] sm:$0xf]
    %v1668 = vld [vmem:[#allocation18 + $0xac] sm:$0xf]
    %v1669 = vld [vmem:[#allocation18 + $0xb0] sm:$0xf]
    %v1670 = vld [vmem:[#allocation18 + $0xb4] sm:$0xf]
    %v1671 = vld [vmem:[#allocation18 + $0xb8] sm:$0xf]
    %v1672 = vld [vmem:[#allocation18 + $0xbc] sm:$0xf]
    %v1673 = vld [vmem:[#allocation18 + $0xc0] sm:$0xf]
    %v1674 = vld [vmem:[#allocation18 + $0xc4] sm:$0xf]
    %v1675 = vld [vmem:[#allocation18 + $0xc8] sm:$0xf]
    %v1676 = vld [vmem:[#allocation18 + $0xcc] sm:$0xf]
    %v1677 = vld [vmem:[#allocation18 + $0xd0] sm:$0xf]
    %v1678 = vld [vmem:[#allocation18 + $0xd4] sm:$0xf]
    %v1679 = vld [vmem:[#allocation18 + $0xd8] sm:$0xf]
    %v1680 = vld [vmem:[#allocation18 + $0xdc] sm:$0xf]
    %v1681 = vld [vmem:[#allocation18 + $0xe0] sm:$0xf]
    %v1682 = vld [vmem:[#allocation18 + $0xe4] sm:$0xf]
    %v1683 = vld [vmem:[#allocation18 + $0xe8] sm:$0xf]
    %v1684 = vld [vmem:[#allocation18 + $0xec] sm:$0xf]
    %v1685 = vld [vmem:[#allocation18 + $0xf0] sm:$0xf]
    %v1686 = vld [vmem:[#allocation18 + $0xf4] sm:$0xf]
    %v1687 = vld [vmem:[#allocation18 + $0xf8] sm:$0xf]
    %v1688 = vld [vmem:[#allocation18 + $0xfc] sm:$0xf]
    %v1689 = vld [vmem:[#allocation19] sm:$0x1]
    %v1691 = vperm.slane %v1689, 0
    %v1757 = vunpack.c.l.b16 %v1625
    %v1758 = vunpack.c.l.b16 %v1626
    %v1759 = vunpack.c.l.b16 %v1627
    %v1760 = vunpack.c.l.b16 %v1628
    %v1761 = vunpack.c.l.b16 %v1629
    %v1762 = vunpack.c.l.b16 %v1630
    %v1763 = vunpack.c.l.b16 %v1631
    %v1764 = vunpack.c.l.b16 %v1632
    %v1765 = vunpack.c.l.b16 %v1633
    %v1766 = vunpack.c.l.b16 %v1634
    %v1767 = vunpack.c.l.b16 %v1635
    %v1768 = vunpack.c.l.b16 %v1636
    %v1769 = vunpack.c.l.b16 %v1637
    %v1770 = vunpack.c.l.b16 %v1638
    %v1771 = vunpack.c.l.b16 %v1639
    %v1772 = vunpack.c.l.b16 %v1640
    %v1773 = vunpack.c.l.b16 %v1641
    %v1774 = vunpack.c.l.b16 %v1642
    %v1775 = vunpack.c.l.b16 %v1643
    %v1776 = vunpack.c.l.b16 %v1644
    %v1777 = vunpack.c.l.b16 %v1645
    %v1778 = vunpack.c.l.b16 %v1646
    %v1779 = vunpack.c.l.b16 %v1647
    %v1780 = vunpack.c.l.b16 %v1648
    %v1781 = vunpack.c.l.b16 %v1649
    %v1782 = vunpack.c.l.b16 %v1650
    %v1783 = vunpack.c.l.b16 %v1651
    %v1784 = vunpack.c.l.b16 %v1652
    %v1785 = vunpack.c.l.b16 %v1653
    %v1786 = vunpack.c.l.b16 %v1654
    %v1787 = vunpack.c.l.b16 %v1655
    %v1788 = vunpack.c.l.b16 %v1656
    %v1789 = vunpack.c.l.b16 %v1657
    %v1790 = vunpack.c.l.b16 %v1658
    %v1791 = vunpack.c.l.b16 %v1659
    %v1792 = vunpack.c.l.b16 %v1660
    %v1793 = vunpack.c.l.b16 %v1661
    %v1794 = vunpack.c.l.b16 %v1662
    %v1795 = vunpack.c.l.b16 %v1663
    %v1796 = vunpack.c.l.b16 %v1664
    %v1797 = vunpack.c.l.b16 %v1665
    %v1798 = vunpack.c.l.b16 %v1666
    %v1799 = vunpack.c.l.b16 %v1667
    %v1800 = vunpack.c.l.b16 %v1668
    %v1801 = vunpack.c.l.b16 %v1669
    %v1802 = vunpack.c.l.b16 %v1670
    %v1803 = vunpack.c.l.b16 %v1671
    %v1804 = vunpack.c.l.b16 %v1672
    %v1805 = vunpack.c.l.b16 %v1673
    %v1806 = vunpack.c.l.b16 %v1674
    %v1807 = vunpack.c.l.b16 %v1675
    %v1808 = vunpack.c.l.b16 %v1676
    %v1809 = vunpack.c.l.b16 %v1677
    %v1810 = vunpack.c.l.b16 %v1678
    %v1811 = vunpack.c.l.b16 %v1679
    %v1812 = vunpack.c.l.b16 %v1680
    %v1813 = vunpack.c.l.b16 %v1681
    %v1814 = vunpack.c.l.b16 %v1682
    %v1815 = vunpack.c.l.b16 %v1683
    %v1816 = vunpack.c.l.b16 %v1684
    %v1817 = vunpack.c.l.b16 %v1685
    %v1818 = vunpack.c.l.b16 %v1686
    %v1819 = vunpack.c.l.b16 %v1687
    %v1820 = vunpack.c.l.b16 %v1688
    %v1821 = vpack.c.b16 %v1758, %v1757
    %v1822 = vpack.c.b16 %v1760, %v1759
    %v1823 = vpack.c.b16 %v1762, %v1761
    %v1824 = vpack.c.b16 %v1764, %v1763
    %v1825 = vpack.c.b16 %v1766, %v1765
    %v1826 = vpack.c.b16 %v1768, %v1767
    %v1827 = vpack.c.b16 %v1770, %v1769
    %v1828 = vpack.c.b16 %v1772, %v1771
    %v1829 = vpack.c.b16 %v1774, %v1773
    %v1830 = vpack.c.b16 %v1776, %v1775
    %v1831 = vpack.c.b16 %v1778, %v1777
    %v1832 = vpack.c.b16 %v1780, %v1779
    %v1833 = vpack.c.b16 %v1782, %v1781
    %v1834 = vpack.c.b16 %v1784, %v1783
    %v1835 = vpack.c.b16 %v1786, %v1785
    %v1836 = vpack.c.b16 %v1788, %v1787
    %v1837 = vpack.c.b16 %v1790, %v1789
    %v1838 = vpack.c.b16 %v1792, %v1791
    %v1839 = vpack.c.b16 %v1794, %v1793
    %v1840 = vpack.c.b16 %v1796, %v1795
    %v1841 = vpack.c.b16 %v1798, %v1797
    %v1842 = vpack.c.b16 %v1800, %v1799
    %v1843 = vpack.c.b16 %v1802, %v1801
    %v1844 = vpack.c.b16 %v1804, %v1803
    %v1845 = vpack.c.b16 %v1806, %v1805
    %v1846 = vpack.c.b16 %v1808, %v1807
    %v1847 = vpack.c.b16 %v1810, %v1809
    %v1848 = vpack.c.b16 %v1812, %v1811
    %v1849 = vpack.c.b16 %v1814, %v1813
    %v1850 = vpack.c.b16 %v1816, %v1815
    %v1851 = vpack.c.b16 %v1818, %v1817
    %v1852 = vpack.c.b16 %v1820, %v1819
    %1885 = vmatpush.bf16.msra.mxu0 %v1828
    %1886 = vmatpush.bf16.msra.mxu0 %v1827
    %1887 = vmatpush.bf16.msra.mxu0 %v1826
    %1888 = vmatpush.bf16.msra.mxu0 %v1825
    %1889 = vmatpush.bf16.msra.mxu0 %v1824
    %1890 = vmatpush.bf16.msra.mxu0 %v1823
    %1891 = vmatpush.bf16.msra.mxu0 %v1822
    %1892 = vmatpush.bf16.msra.mxu0 %v1821
    %1893 = vmatmul.bf16.gmra.mxu0 %v1621
    %v1894 = vpop.f32.mrf.mxu0
    %v1895 = vadd.f32 %v1691, %v1894
    %v1896 = vpop.f32.mrf.mxu0
    %v1897 = vadd.f32 %v1691, %v1896
    %1898 = vdwg.mxu0
    %1899 = vmatpush.bf16.msra.mxu0 %v1836
    %1900 = vmatpush.bf16.msra.mxu0 %v1835
    %1901 = vmatpush.bf16.msra.mxu0 %v1834
    %1902 = vmatpush.bf16.msra.mxu0 %v1833
    %1903 = vmatpush.bf16.msra.mxu0 %v1832
    %1904 = vmatpush.bf16.msra.mxu0 %v1831
    %1905 = vmatpush.bf16.msra.mxu0 %v1830
    %1906 = vmatpush.bf16.msra.mxu0 %v1829
    %1907 = vmatmul.bf16.gmra.mxu0 %v1622
    %v1908 = vpop.f32.mrf.mxu0
    %v1909 = vadd.f32 %v1895, %v1908
    %v1910 = vpop.f32.mrf.mxu0
    %v1911 = vadd.f32 %v1897, %v1910
    %1912 = vdwg.mxu0
    %1913 = vmatpush.bf16.msra.mxu0 %v1844
    %1914 = vmatpush.bf16.msra.mxu0 %v1843
    %1915 = vmatpush.bf16.msra.mxu0 %v1842
    %1916 = vmatpush.bf16.msra.mxu0 %v1841
    %1917 = vmatpush.bf16.msra.mxu0 %v1840
    %1918 = vmatpush.bf16.msra.mxu0 %v1839
    %1919 = vmatpush.bf16.msra.mxu0 %v1838
    %1920 = vmatpush.bf16.msra.mxu0 %v1837
    %1921 = vmatmul.bf16.gmra.mxu0 %v1623
    %v1922 = vpop.f32.mrf.mxu0
    %v1923 = vadd.f32 %v1909, %v1922
    %v1924 = vpop.f32.mrf.mxu0
    %v1925 = vadd.f32 %v1911, %v1924
    %1926 = vdwg.mxu0
    %1927 = vmatpush.bf16.msra.mxu0 %v1852
    %1928 = vmatpush.bf16.msra.mxu0 %v1851
    %1929 = vmatpush.bf16.msra.mxu0 %v1850
    %1930 = vmatpush.bf16.msra.mxu0 %v1849
    %1931 = vmatpush.bf16.msra.mxu0 %v1848
    %1932 = vmatpush.bf16.msra.mxu0 %v1847
    %1933 = vmatpush.bf16.msra.mxu0 %v1846
    %1934 = vmatpush.bf16.msra.mxu0 %v1845
    %1935 = vmatmul.bf16.gmra.mxu0 %v1624
    %v1936 = vpop.f32.mrf.mxu0
    %v1937 = vadd.f32 %v1923, %v1936
    %v1938 = vpop.f32.mrf.mxu0
    %v1939 = vadd.f32 %v1925, %v1938
    %1940 = vdwg.mxu0
    %v1941 = vld [vmem:[#allocation21] sm:$0x1]
    %v1943 = vperm.slane %v1941, 0
    %v1945 = vmul.f32 %v1943, %v1937
    %v1946 = vmul.f32 %v1943, %v1939
    %v1947 = vadd.f32 %v1236, %v1945
    %v1948 = vadd.f32 %v1237, %v1946
    %s1949 = scalar_lea.vmem %s4, 1
    %v1950 = vld [vmem:[%s1949] sm:$0x1]
    %s1951 = scalar_lea.vmem [#allocation7], 1
    %v1952 = vld [vmem:[%s1951] sm:$0x1]
    %1953 = vadd.xlane.f32.xlu0 %v1947
    %v1954 = vpop.xlane.xlu0 %1953
    %1955 = vadd.xlane.f32.xlu0 %v1948
    %v1956 = vpop.xlane.xlu0 %1955
    %v1957 = vmul.f32 %v1954, %v562
    %v1958 = vmul.f32 %v1956, %v562
    %v1959 = vsub.f32 %v1947, %v1957
    %v1960 = vsub.f32 %v1948, %v1958
    %v1961 = vmul.f32 %v1959, %v1959
    %v1962 = vmul.f32 %v1960, %v1960
    %1963 = vadd.xlane.f32.xlu0 %v1961
    %v1964 = vpop.xlane.xlu0 %1963
    %1965 = vadd.xlane.f32.xlu0 %v1962
    %v1966 = vpop.xlane.xlu0 %1965
    %v1967 = vmul.f32 %v1964, %v562
    %v1968 = vmul.f32 %v1966, %v562
    %v1969 = vadd.f32 %v1967, 1e-06
    %v1970 = vadd.f32 %v1968, 1e-06
    %v1971 = vrsqrt.pop %v1969
    %v1972 = vmul.f32 %v1971, %v1969
    %v1973 = vmul.f32 %v1972, %v1971
    %v1974 = vmul.f32 0.5, %v1973
    %v1975 = vsub.f32 1.5, %v1974
    %v1976 = vmul.f32 %v1971, %v1975
    %vm1977 = vweird.f32 %v1969
    %vm1978 = vweird.f32 %v1971
    %vm1979 = vmor %vm1977, %vm1978
    %v1980 = vsel %vm1979, %v1971, %v1976
    %v1981 = vrsqrt.pop %v1970
    %v1982 = vmul.f32 %v1981, %v1970
    %v1983 = vmul.f32 %v1982, %v1981
    %v1984 = vmul.f32 0.5, %v1983
    %v1985 = vsub.f32 1.5, %v1984
    %v1986 = vmul.f32 %v1981, %v1985
    %vm1987 = vweird.f32 %v1970
    %vm1988 = vweird.f32 %v1981
    %vm1989 = vmor %vm1987, %vm1988
    %v1990 = vsel %vm1989, %v1981, %v1986
    %v1991 = vmul.f32 %v1959, %v1980
    %v1992 = vmul.f32 %v1960, %v1990
    %v1994 = vperm.slane %v1950, 0
    %v1996 = vmul.f32 %v1991, %v1994
    %v1997 = vmul.f32 %v1992, %v1994
    %v1999 = vperm.slane %v1952, 0
    %v2001 = vadd.f32 %v1996, %v1999
    %v2002 = vadd.f32 %v1997, %v1999
    %v2003 = vpack.c.bf16 %v2002, %v2001
    %s2004 = scalar_lea.vmem %s6, 192
    %v2005 = vld [vmem:[%s2004] sm:$0xff]
    %v2006 = vld [vmem:[%s2004 + $0x8] sm:$0xf]
    %v2007 = vld [vmem:[%s2004 + $0xc] sm:$0xff]
    %v2008 = vld [vmem:[%s2004 + $0x14] sm:$0xf]
    %v2009 = vld [vmem:[%s2004 + $0x18] sm:$0xff]
    %v2010 = vld [vmem:[%s2004 + $0x20] sm:$0xf]
    %v2011 = vld [vmem:[%s2004 + $0x24] sm:$0xff]
    %v2012 = vld [vmem:[%s2004 + $0x2c] sm:$0xf]
    %v2013 = vld [vmem:[%s2004 + $0x30] sm:$0xff]
    %v2014 = vld [vmem:[%s2004 + $0x38] sm:$0xf]
    %v2015 = vld [vmem:[%s2004 + $0x3c] sm:$0xff]
    %v2016 = vld [vmem:[%s2004 + $0x44] sm:$0xf]
    %v2017 = vld [vmem:[%s2004 + $0x48] sm:$0xff]
    %v2018 = vld [vmem:[%s2004 + $0x50] sm:$0xf]
    %v2019 = vld [vmem:[%s2004 + $0x54] sm:$0xff]
    %v2020 = vld [vmem:[%s2004 + $0x5c] sm:$0xf]
    %v2021 = vld [vmem:[%s2004 + $0x60] sm:$0xff]
    %v2022 = vld [vmem:[%s2004 + $0x68] sm:$0xf]
    %v2023 = vld [vmem:[%s2004 + $0x6c] sm:$0xff]
    %v2024 = vld [vmem:[%s2004 + $0x74] sm:$0xf]
    %v2025 = vld [vmem:[%s2004 + $0x78] sm:$0xff]
    %v2026 = vld [vmem:[%s2004 + $0x80] sm:$0xf]
    %v2027 = vld [vmem:[%s2004 + $0x84] sm:$0xff]
    %v2028 = vld [vmem:[%s2004 + $0x8c] sm:$0xf]
    %v2029 = vld [vmem:[%s2004 + $0x90] sm:$0xff]
    %v2030 = vld [vmem:[%s2004 + $0x98] sm:$0xf]
    %v2031 = vld [vmem:[%s2004 + $0x9c] sm:$0xff]
    %v2032 = vld [vmem:[%s2004 + $0xa4] sm:$0xf]
    %v2033 = vld [vmem:[%s2004 + $0xa8] sm:$0xff]
    %v2034 = vld [vmem:[%s2004 + $0xb0] sm:$0xf]
    %v2035 = vld [vmem:[%s2004 + $0xb4] sm:$0xff]
    %v2036 = vld [vmem:[%s2004 + $0xbc] sm:$0xf]
    %s2037 = scalar_lea.vmem %s7, 3
    %v2038 = vld [vmem:[%s2037] sm:$0x7]
    %v2040 = vperm.slane %v2038, 0
    %v2041 = vperm.slane %v2038, 1
    %v2042 = vperm.slane %v2038, 2
    %v2078 = vunpack.c.l.b16 %v2005
    %v2079 = vunpack.c.h.b16 %v2005
    %v2080 = vunpack.c.l.b16 %v2006
    %v2081 = vunpack.c.l.b16 %v2007
    %v2082 = vunpack.c.h.b16 %v2007
    %v2083 = vunpack.c.l.b16 %v2008
    %v2084 = vunpack.c.l.b16 %v2009
    %v2085 = vunpack.c.h.b16 %v2009
    %v2086 = vunpack.c.l.b16 %v2010
    %v2087 = vunpack.c.l.b16 %v2011
    %v2088 = vunpack.c.h.b16 %v2011
    %v2089 = vunpack.c.l.b16 %v2012
    %v2090 = vunpack.c.l.b16 %v2013
    %v2091 = vunpack.c.h.b16 %v2013
    %v2092 = vunpack.c.l.b16 %v2014
    %v2093 = vunpack.c.l.b16 %v2015
    %v2094 = vunpack.c.h.b16 %v2015
    %v2095 = vunpack.c.l.b16 %v2016
    %v2096 = vunpack.c.l.b16 %v2017
    %v2097 = vunpack.c.h.b16 %v2017
    %v2098 = vunpack.c.l.b16 %v2018
    %v2099 = vunpack.c.l.b16 %v2019
    %v2100 = vunpack.c.h.b16 %v2019
    %v2101 = vunpack.c.l.b16 %v2020
    %v2102 = vunpack.c.l.b16 %v2021
    %v2103 = vunpack.c.h.b16 %v2021
    %v2104 = vunpack.c.l.b16 %v2022
    %v2105 = vunpack.c.l.b16 %v2023
    %v2106 = vunpack.c.h.b16 %v2023
    %v2107 = vunpack.c.l.b16 %v2024
    %v2108 = vunpack.c.l.b16 %v2025
    %v2109 = vunpack.c.h.b16 %v2025
    %v2110 = vunpack.c.l.b16 %v2026
    %v2111 = vunpack.c.l.b16 %v2027
    %v2112 = vunpack.c.h.b16 %v2027
    %v2113 = vunpack.c.l.b16 %v2028
    %v2114 = vunpack.c.l.b16 %v2029
    %v2115 = vunpack.c.h.b16 %v2029
    %v2116 = vunpack.c.l.b16 %v2030
    %v2117 = vunpack.c.l.b16 %v2031
    %v2118 = vunpack.c.h.b16 %v2031
    %v2119 = vunpack.c.l.b16 %v2032
    %v2120 = vunpack.c.l.b16 %v2033
    %v2121 = vunpack.c.h.b16 %v2033
    %v2122 = vunpack.c.l.b16 %v2034
    %v2123 = vunpack.c.l.b16 %v2035
    %v2124 = vunpack.c.h.b16 %v2035
    %v2125 = vunpack.c.l.b16 %v2036
    %v2126 = vpack.c.b16 %v2081, %v2078
    %v2127 = vpack.c.b16 %v2082, %v2079
    %v2128 = vpack.c.b16 %v2083, %v2080
    %v2129 = vpack.c.b16 %v2087, %v2084
    %v2130 = vpack.c.b16 %v2088, %v2085
    %v2131 = vpack.c.b16 %v2089, %v2086
    %v2132 = vpack.c.b16 %v2093, %v2090
    %v2133 = vpack.c.b16 %v2094, %v2091
    %v2134 = vpack.c.b16 %v2095, %v2092
    %v2135 = vpack.c.b16 %v2099, %v2096
    %v2136 = vpack.c.b16 %v2100, %v2097
    %v2137 = vpack.c.b16 %v2101, %v2098
    %v2138 = vpack.c.b16 %v2105, %v2102
    %v2139 = vpack.c.b16 %v2106, %v2103
    %v2140 = vpack.c.b16 %v2107, %v2104
    %v2141 = vpack.c.b16 %v2111, %v2108
    %v2142 = vpack.c.b16 %v2112, %v2109
    %v2143 = vpack.c.b16 %v2113, %v2110
    %v2144 = vpack.c.b16 %v2117, %v2114
    %v2145 = vpack.c.b16 %v2118, %v2115
    %v2146 = vpack.c.b16 %v2119, %v2116
    %v2147 = vpack.c.b16 %v2123, %v2120
    %v2148 = vpack.c.b16 %v2124, %v2121
    %v2149 = vpack.c.b16 %v2125, %v2122
    %2174 = vmatpush.bf16.msra.mxu0 %v2147
    %2175 = vmatpush.bf16.msra.mxu0 %v2144
    %2176 = vmatpush.bf16.msra.mxu0 %v2141
    %2177 = vmatpush.bf16.msra.mxu0 %v2138
    %2178 = vmatpush.bf16.msra.mxu0 %v2135
    %2179 = vmatpush.bf16.msra.mxu0 %v2132
    %2180 = vmatpush.bf16.msra.mxu0 %v2129
    %2181 = vmatpush.bf16.msra.mxu0 %v2126
    %2182 = vmatmul.bf16.gmra.mxu0 %v2003
    %v2183 = vpop.f32.mrf.mxu0
    %v2184 = vadd.f32 %v2040, %v2183
    %v2185 = vpop.f32.mrf.mxu0
    %v2186 = vadd.f32 %v2040, %v2185
    %2187 = vdwg.mxu0
    %2188 = vmatpush.bf16.msra.mxu0 %v2148
    %2189 = vmatpush.bf16.msra.mxu0 %v2145
    %2190 = vmatpush.bf16.msra.mxu0 %v2142
    %2191 = vmatpush.bf16.msra.mxu0 %v2139
    %2192 = vmatpush.bf16.msra.mxu0 %v2136
    %2193 = vmatpush.bf16.msra.mxu0 %v2133
    %2194 = vmatpush.bf16.msra.mxu0 %v2130
    %2195 = vmatpush.bf16.msra.mxu0 %v2127
    %2196 = vmatmul.bf16.gmra.mxu0 %v2003
    %v2197 = vpop.f32.mrf.mxu0
    %v2198 = vadd.f32 %v2041, %v2197
    %v2199 = vpop.f32.mrf.mxu0
    %v2200 = vadd.f32 %v2041, %v2199
    %2201 = vdwg.mxu0
    %2202 = vmatpush.bf16.msra.mxu0 %v2149
    %2203 = vmatpush.bf16.msra.mxu0 %v2146
    %2204 = vmatpush.bf16.msra.mxu0 %v2143
    %2205 = vmatpush.bf16.msra.mxu0 %v2140
    %2206 = vmatpush.bf16.msra.mxu0 %v2137
    %2207 = vmatpush.bf16.msra.mxu0 %v2134
    %2208 = vmatpush.bf16.msra.mxu0 %v2131
    %2209 = vmatpush.bf16.msra.mxu0 %v2128
    %2210 = vmatmul.bf16.gmra.mxu0 %v2003
    %v2211 = vpop.f32.mrf.mxu0
    %v2212 = vadd.f32 %v2042, %v2211
    %v2213 = vpop.f32.mrf.mxu0
    %v2214 = vadd.f32 %v2042, %v2213
    %2215 = vdwg.mxu0
    %v2217 = vsel %vm820, %v2184, 0
    %v2220 = vsel %vm820, %v2198, 0
    %2222 = vmatpush.xpose.msra.mxu0 0.0
    %2223 = vmatpush.xpose.msra.mxu0 0.0
    %2224 = vmatpush.xpose.msra.mxu0 0.0
    %2225 = vmatpush.xpose.msra.mxu0 0.0
    %2226 = vmatpush.xpose.msra.mxu0 0.0
    %2227 = vmatpush.xpose.msra.mxu0 0.0
    %2228 = vmatpush.xpose.msra.mxu0 0.0
    %2229 = vmatpush.xpose.msra.mxu0 0.0
    %2230 = vmatpush.xpose.msra.mxu0 0.0
    %2231 = vmatpush.xpose.msra.mxu0 0.0
    %2232 = vmatpush.xpose.msra.mxu0 0.0
    %2233 = vmatpush.xpose.msra.mxu0 0.0
    %2234 = vmatpush.xpose.msra.mxu0 0.0
    %2235 = vmatpush.xpose.msra.mxu0 0.0
    %2236 = vmatpush.xpose.msra.mxu0 0.0
    %2237 = vmatpush.xpose.msra.mxu0 %v2220
    %2238 = vmatmul.f32.gmra.mxu0 %v2217
    %v2239 = vpop.f32.mrf.mxu0
    %v2240 = vadd.f32 0.0, %v2239
    %2241 = vdwg.mxu0
    %v2242 = vmul.f32 %v2240, 0.125
    %s2243 = scalar_lea.vmem %s8, 16
    %v2244 = vld [vmem:[%s2243] sm:$0xff]
    %v2245 = vadd.f32 %v2242, %v2244
    %v2246 = vsel %vm850, %v2245, -inf
    %2247 = vmax.xlane.f32.xlu0 %v2246
    %v2248 = vpop.xlane.xlu0 %2247
    %v2249 = vsub.f32 %v2245, %v2248
    %v2250 = vmul.f32 %v2249, 1.442695
    %v2251 = vpow.pop %v2250
    %v2252 = vsel %vm850, %v2251, 0.0
    %2253 = vadd.xlane.f32.xlu0 %v2252
    %v2254 = vpop.xlane.xlu0 %2253
    %v2255 = vrcp.pop %v2254
    %v2256 = vmul.f32 %v2254, %v2255
    %v2257 = vsub.f32 1.0, %v2256
    %v2258 = vmul.f32 %v2255, %v2257
    %v2259 = vadd.f32 %v2255, %v2258
    %vm2260 = vweird.f32 %v2254
    %vm2261 = vweird.f32 %v2255
    %vm2262 = vmor %vm2260, %vm2261
    %v2263 = vsel %vm2262, %v2255, %v2259
    %v2264 = vand.u32 2147483647, %v2254
    %vm2265 = vcmp.eq.f32.partialorder %v2264, 8.507059e+37
    %v2266 = vand.u32 %v2254, 2147483648
    %v2267 = vor.u32 1.1754944e-38, %v2266
    %v2268 = vsel %vm2265, %v2267, %v2263
    %v2269 = vmul.f32 %v2251, %v2268
    %v2271 = vsel %vm850, %v2269, 0
    %2273 = vmatpush.msra.mxu0 0.0
    %2274 = vmatpush.msra.mxu0 0.0
    %2275 = vmatpush.msra.mxu0 0.0
    %2276 = vmatpush.msra.mxu0 0.0
    %2277 = vmatpush.msra.mxu0 0.0
    %2278 = vmatpush.msra.mxu0 0.0
    %2279 = vmatpush.msra.mxu0 0.0
    %2280 = vmatpush.msra.mxu0 0.0
    %2281 = vmatpush.msra.mxu0 0.0
    %2282 = vmatpush.msra.mxu0 0.0
    %2283 = vmatpush.msra.mxu0 0.0
    %2284 = vmatpush.msra.mxu0 0.0
    %2285 = vmatpush.msra.mxu0 0.0
    %2286 = vmatpush.msra.mxu0 0.0
    %2287 = vmatpush.msra.mxu0 0.0
    %2288 = vmatpush.msra.mxu0 %v2212
    %2289 = vmatmul.f32.gmra.mxu0 %v2271
    %v2290 = vpop.f32.mrf.mxu0
    %v2291 = vadd.f32 0.0, %v2290
    %2292 = vdwg.mxu0
    %2293 = vrot.lane.b32.xlu0 %v2184, 64
    %v2294 = vpop.permute.xlu0 %2293
    %2295 = vrot.lane.b32.xlu0 %v2198, 64
    %v2296 = vpop.permute.xlu0 %2295
    %v2297 = vsel %vm820, %v2294, 0
    %v2299 = vsel %vm820, %v2296, 0
    %2301 = vmatpush.xpose.msra.mxu0 0.0
    %2302 = vmatpush.xpose.msra.mxu0 0.0
    %2303 = vmatpush.xpose.msra.mxu0 0.0
    %2304 = vmatpush.xpose.msra.mxu0 0.0
    %2305 = vmatpush.xpose.msra.mxu0 0.0
    %2306 = vmatpush.xpose.msra.mxu0 0.0
    %2307 = vmatpush.xpose.msra.mxu0 0.0
    %2308 = vmatpush.xpose.msra.mxu0 0.0
    %2309 = vmatpush.xpose.msra.mxu0 0.0
    %2310 = vmatpush.xpose.msra.mxu0 0.0
    %2311 = vmatpush.xpose.msra.mxu0 0.0
    %2312 = vmatpush.xpose.msra.mxu0 0.0
    %2313 = vmatpush.xpose.msra.mxu0 0.0
    %2314 = vmatpush.xpose.msra.mxu0 0.0
    %2315 = vmatpush.xpose.msra.mxu0 0.0
    %2316 = vmatpush.xpose.msra.mxu0 %v2299
    %2317 = vmatmul.f32.gmra.mxu0 %v2297
    %v2318 = vpop.f32.mrf.mxu0
    %v2319 = vadd.f32 0.0, %v2318
    %2320 = vdwg.mxu0
    %v2321 = vmul.f32 %v2319, 0.125
    %s2322 = scalar_lea.vmem %s8, 24
    %v2323 = vld [vmem:[%s2322] sm:$0xff]
    %v2324 = vadd.f32 %v2321, %v2323
    %v2325 = vsel %vm850, %v2324, -inf
    %2326 = vmax.xlane.f32.xlu0 %v2325
    %v2327 = vpop.xlane.xlu0 %2326
    %v2328 = vsub.f32 %v2324, %v2327
    %v2329 = vmul.f32 %v2328, 1.442695
    %v2330 = vpow.pop %v2329
    %v2331 = vsel %vm850, %v2330, 0.0
    %2332 = vadd.xlane.f32.xlu0 %v2331
    %v2333 = vpop.xlane.xlu0 %2332
    %v2334 = vrcp.pop %v2333
    %v2335 = vmul.f32 %v2333, %v2334
    %v2336 = vsub.f32 1.0, %v2335
    %v2337 = vmul.f32 %v2334, %v2336
    %v2338 = vadd.f32 %v2334, %v2337
    %vm2339 = vweird.f32 %v2333
    %vm2340 = vweird.f32 %v2334
    %vm2341 = vmor %vm2339, %vm2340
    %v2342 = vsel %vm2341, %v2334, %v2338
    %v2343 = vand.u32 2147483647, %v2333
    %vm2344 = vcmp.eq.f32.partialorder %v2343, 8.507059e+37
    %v2345 = vand.u32 %v2333, 2147483648
    %v2346 = vor.u32 1.1754944e-38, %v2345
    %v2347 = vsel %vm2344, %v2346, %v2342
    %v2348 = vmul.f32 %v2330, %v2347
    %2350 = vrot.lane.b32.xlu0 %v2212, 64
    %v2351 = vpop.permute.xlu0 %2350
    %v2354 = vsel %vm850, %v2348, 0
    %2356 = vmatpush.msra.mxu0 0.0
    %2357 = vmatpush.msra.mxu0 0.0
    %2358 = vmatpush.msra.mxu0 0.0
    %2359 = vmatpush.msra.mxu0 0.0
    %2360 = vmatpush.msra.mxu0 0.0
    %2361 = vmatpush.msra.mxu0 0.0
    %2362 = vmatpush.msra.mxu0 0.0
    %2363 = vmatpush.msra.mxu0 0.0
    %2364 = vmatpush.msra.mxu0 0.0
    %2365 = vmatpush.msra.mxu0 0.0
    %2366 = vmatpush.msra.mxu0 0.0
    %2367 = vmatpush.msra.mxu0 0.0
    %2368 = vmatpush.msra.mxu0 0.0
    %2369 = vmatpush.msra.mxu0 0.0
    %2370 = vmatpush.msra.mxu0 0.0
    %2371 = vmatpush.msra.mxu0 %v2351
    %2372 = vmatmul.f32.gmra.mxu0 %v2354
    %v2373 = vpop.f32.mrf.mxu0
    %v2374 = vadd.f32 0.0, %v2373
    %2375 = vdwg.mxu0
    %2377 = vrot.lane.b32.xlu0 %v2374, 64
    %v2378 = vpop.permute.xlu0 %2377
    %v2380 = vsel %vm820, %v2291, %v2378
    %v2382 = vsel %vm820, %v2186, 0
    %v2385 = vsel %vm820, %v2200, 0
    %2387 = vmatpush.xpose.msra.mxu0 0.0
    %2388 = vmatpush.xpose.msra.mxu0 0.0
    %2389 = vmatpush.xpose.msra.mxu0 0.0
    %2390 = vmatpush.xpose.msra.mxu0 0.0
    %2391 = vmatpush.xpose.msra.mxu0 0.0
    %2392 = vmatpush.xpose.msra.mxu0 0.0
    %2393 = vmatpush.xpose.msra.mxu0 0.0
    %2394 = vmatpush.xpose.msra.mxu0 0.0
    %2395 = vmatpush.xpose.msra.mxu0 0.0
    %2396 = vmatpush.xpose.msra.mxu0 0.0
    %2397 = vmatpush.xpose.msra.mxu0 0.0
    %2398 = vmatpush.xpose.msra.mxu0 0.0
    %2399 = vmatpush.xpose.msra.mxu0 0.0
    %2400 = vmatpush.xpose.msra.mxu0 0.0
    %2401 = vmatpush.xpose.msra.mxu0 0.0
    %2402 = vmatpush.xpose.msra.mxu0 %v2385
    %2403 = vmatmul.f32.gmra.mxu0 %v2382
    %v2404 = vpop.f32.mrf.mxu0
    %v2405 = vadd.f32 0.0, %v2404
    %2406 = vdwg.mxu0
    %v2407 = vmul.f32 %v2405, 0.125
    %v2408 = vadd.f32 %v2407, %v2244
    %v2409 = vsel %vm850, %v2408, -inf
    %2410 = vmax.xlane.f32.xlu0 %v2409
    %v2411 = vpop.xlane.xlu0 %2410
    %v2412 = vsub.f32 %v2408, %v2411
    %v2413 = vmul.f32 %v2412, 1.442695
    %v2414 = vpow.pop %v2413
    %v2415 = vsel %vm850, %v2414, 0.0
    %2416 = vadd.xlane.f32.xlu0 %v2415
    %v2417 = vpop.xlane.xlu0 %2416
    %v2418 = vrcp.pop %v2417
    %v2419 = vmul.f32 %v2417, %v2418
    %v2420 = vsub.f32 1.0, %v2419
    %v2421 = vmul.f32 %v2418, %v2420
    %v2422 = vadd.f32 %v2418, %v2421
    %vm2423 = vweird.f32 %v2417
    %vm2424 = vweird.f32 %v2418
    %vm2425 = vmor %vm2423, %vm2424
    %v2426 = vsel %vm2425, %v2418, %v2422
    %v2427 = vand.u32 2147483647, %v2417
    %vm2428 = vcmp.eq.f32.partialorder %v2427, 8.507059e+37
    %v2429 = vand.u32 %v2417, 2147483648
    %v2430 = vor.u32 1.1754944e-38, %v2429
    %v2431 = vsel %vm2428, %v2430, %v2426
    %v2432 = vmul.f32 %v2414, %v2431
    %v2434 = vsel %vm850, %v2432, 0
    %2436 = vmatpush.msra.mxu0 0.0
    %2437 = vmatpush.msra.mxu0 0.0
    %2438 = vmatpush.msra.mxu0 0.0
    %2439 = vmatpush.msra.mxu0 0.0
    %2440 = vmatpush.msra.mxu0 0.0
    %2441 = vmatpush.msra.mxu0 0.0
    %2442 = vmatpush.msra.mxu0 0.0
    %2443 = vmatpush.msra.mxu0 0.0
    %2444 = vmatpush.msra.mxu0 0.0
    %2445 = vmatpush.msra.mxu0 0.0
    %2446 = vmatpush.msra.mxu0 0.0
    %2447 = vmatpush.msra.mxu0 0.0
    %2448 = vmatpush.msra.mxu0 0.0
    %2449 = vmatpush.msra.mxu0 0.0
    %2450 = vmatpush.msra.mxu0 0.0
    %2451 = vmatpush.msra.mxu0 %v2214
    %2452 = vmatmul.f32.gmra.mxu0 %v2434
    %v2453 = vpop.f32.mrf.mxu0
    %v2454 = vadd.f32 0.0, %v2453
    %2455 = vdwg.mxu0
    %2456 = vrot.lane.b32.xlu0 %v2186, 64
    %v2457 = vpop.permute.xlu0 %2456
    %2458 = vrot.lane.b32.xlu0 %v2200, 64
    %v2459 = vpop.permute.xlu0 %2458
    %v2460 = vsel %vm820, %v2457, 0
    %v2462 = vsel %vm820, %v2459, 0
    %2464 = vmatpush.xpose.msra.mxu0 0.0
    %2465 = vmatpush.xpose.msra.mxu0 0.0
    %2466 = vmatpush.xpose.msra.mxu0 0.0
    %2467 = vmatpush.xpose.msra.mxu0 0.0
    %2468 = vmatpush.xpose.msra.mxu0 0.0
    %2469 = vmatpush.xpose.msra.mxu0 0.0
    %2470 = vmatpush.xpose.msra.mxu0 0.0
    %2471 = vmatpush.xpose.msra.mxu0 0.0
    %2472 = vmatpush.xpose.msra.mxu0 0.0
    %2473 = vmatpush.xpose.msra.mxu0 0.0
    %2474 = vmatpush.xpose.msra.mxu0 0.0
    %2475 = vmatpush.xpose.msra.mxu0 0.0
    %2476 = vmatpush.xpose.msra.mxu0 0.0
    %2477 = vmatpush.xpose.msra.mxu0 0.0
    %2478 = vmatpush.xpose.msra.mxu0 0.0
    %2479 = vmatpush.xpose.msra.mxu0 %v2462
    %2480 = vmatmul.f32.gmra.mxu0 %v2460
    %v2481 = vpop.f32.mrf.mxu0
    %v2482 = vadd.f32 0.0, %v2481
    %2483 = vdwg.mxu0
    %v2484 = vmul.f32 %v2482, 0.125
    %v2485 = vadd.f32 %v2484, %v2323
    %v2486 = vsel %vm850, %v2485, -inf
    %2487 = vmax.xlane.f32.xlu0 %v2486
    %v2488 = vpop.xlane.xlu0 %2487
    %v2489 = vsub.f32 %v2485, %v2488
    %v2490 = vmul.f32 %v2489, 1.442695
    %v2491 = vpow.pop %v2490
    %v2492 = vsel %vm850, %v2491, 0.0
    %2493 = vadd.xlane.f32.xlu0 %v2492
    %v2494 = vpop.xlane.xlu0 %2493
    %v2495 = vrcp.pop %v2494
    %v2496 = vmul.f32 %v2494, %v2495
    %v2497 = vsub.f32 1.0, %v2496
    %v2498 = vmul.f32 %v2495, %v2497
    %v2499 = vadd.f32 %v2495, %v2498
    %vm2500 = vweird.f32 %v2494
    %vm2501 = vweird.f32 %v2495
    %vm2502 = vmor %vm2500, %vm2501
    %v2503 = vsel %vm2502, %v2495, %v2499
    %v2504 = vand.u32 2147483647, %v2494
    %vm2505 = vcmp.eq.f32.partialorder %v2504, 8.507059e+37
    %v2506 = vand.u32 %v2494, 2147483648
    %v2507 = vor.u32 1.1754944e-38, %v2506
    %v2508 = vsel %vm2505, %v2507, %v2503
    %v2509 = vmul.f32 %v2491, %v2508
    %2511 = vrot.lane.b32.xlu0 %v2214, 64
    %v2512 = vpop.permute.xlu0 %2511
    %v2515 = vsel %vm850, %v2509, 0
    %2517 = vmatpush.msra.mxu0 0.0
    %2518 = vmatpush.msra.mxu0 0.0
    %2519 = vmatpush.msra.mxu0 0.0
    %2520 = vmatpush.msra.mxu0 0.0
    %2521 = vmatpush.msra.mxu0 0.0
    %2522 = vmatpush.msra.mxu0 0.0
    %2523 = vmatpush.msra.mxu0 0.0
    %2524 = vmatpush.msra.mxu0 0.0
    %2525 = vmatpush.msra.mxu0 0.0
    %2526 = vmatpush.msra.mxu0 0.0
    %2527 = vmatpush.msra.mxu0 0.0
    %2528 = vmatpush.msra.mxu0 0.0
    %2529 = vmatpush.msra.mxu0 0.0
    %2530 = vmatpush.msra.mxu0 0.0
    %2531 = vmatpush.msra.mxu0 0.0
    %2532 = vmatpush.msra.mxu0 %v2512
    %2533 = vmatmul.f32.gmra.mxu0 %v2515
    %v2534 = vpop.f32.mrf.mxu0
    %v2535 = vadd.f32 0.0, %v2534
    %2536 = vdwg.mxu0
    %2538 = vrot.lane.b32.xlu0 %v2535, 64
    %v2539 = vpop.permute.xlu0 %2538
    %v2541 = vsel %vm820, %v2454, %v2539
    %v2542 = vpack.c.bf16 %v2541, %v2380
    %s2543 = scalar_lea.vmem [#allocation9], 64
    %v2544 = vld [vmem:[%s2543] sm:$0xf]
    %v2545 = vld [vmem:[%s2543 + $0x4] sm:$0xf]
    %v2546 = vld [vmem:[%s2543 + $0x8] sm:$0xf]
    %v2547 = vld [vmem:[%s2543 + $0xc] sm:$0xf]
    %v2548 = vld [vmem:[%s2543 + $0x10] sm:$0xf]
    %v2549 = vld [vmem:[%s2543 + $0x14] sm:$0xf]
    %v2550 = vld [vmem:[%s2543 + $0x18] sm:$0xf]
    %v2551 = vld [vmem:[%s2543 + $0x1c] sm:$0xf]
    %v2552 = vld [vmem:[%s2543 + $0x20] sm:$0xf]
    %v2553 = vld [vmem:[%s2543 + $0x24] sm:$0xf]
    %v2554 = vld [vmem:[%s2543 + $0x28] sm:$0xf]
    %v2555 = vld [vmem:[%s2543 + $0x2c] sm:$0xf]
    %v2556 = vld [vmem:[%s2543 + $0x30] sm:$0xf]
    %v2557 = vld [vmem:[%s2543 + $0x34] sm:$0xf]
    %v2558 = vld [vmem:[%s2543 + $0x38] sm:$0xf]
    %v2559 = vld [vmem:[%s2543 + $0x3c] sm:$0xf]
    %s2560 = scalar_lea.vmem [#allocation10], 1
    %v2561 = vld [vmem:[%s2560] sm:$0x1]
    %v2563 = vperm.slane %v2561, 0
    %v2581 = vunpack.c.l.b16 %v2544
    %v2582 = vunpack.c.l.b16 %v2545
    %v2583 = vunpack.c.l.b16 %v2546
    %v2584 = vunpack.c.l.b16 %v2547
    %v2585 = vunpack.c.l.b16 %v2548
    %v2586 = vunpack.c.l.b16 %v2549
    %v2587 = vunpack.c.l.b16 %v2550
    %v2588 = vunpack.c.l.b16 %v2551
    %v2589 = vunpack.c.l.b16 %v2552
    %v2590 = vunpack.c.l.b16 %v2553
    %v2591 = vunpack.c.l.b16 %v2554
    %v2592 = vunpack.c.l.b16 %v2555
    %v2593 = vunpack.c.l.b16 %v2556
    %v2594 = vunpack.c.l.b16 %v2557
    %v2595 = vunpack.c.l.b16 %v2558
    %v2596 = vunpack.c.l.b16 %v2559
    %v2597 = vpack.c.b16 %v2582, %v2581
    %v2598 = vpack.c.b16 %v2584, %v2583
    %v2599 = vpack.c.b16 %v2586, %v2585
    %v2600 = vpack.c.b16 %v2588, %v2587
    %v2601 = vpack.c.b16 %v2590, %v2589
    %v2602 = vpack.c.b16 %v2592, %v2591
    %v2603 = vpack.c.b16 %v2594, %v2593
    %v2604 = vpack.c.b16 %v2596, %v2595
    %2613 = vmatpush.bf16.msra.mxu0 %v2604
    %2614 = vmatpush.bf16.msra.mxu0 %v2603
    %2615 = vmatpush.bf16.msra.mxu0 %v2602
    %2616 = vmatpush.bf16.msra.mxu0 %v2601
    %2617 = vmatpush.bf16.msra.mxu0 %v2600
    %2618 = vmatpush.bf16.msra.mxu0 %v2599
    %2619 = vmatpush.bf16.msra.mxu0 %v2598
    %2620 = vmatpush.bf16.msra.mxu0 %v2597
    %2621 = vmatmul.bf16.gmra.mxu0 %v2542
    %v2622 = vpop.f32.mrf.mxu0
    %v2623 = vadd.f32 %v2563, %v2622
    %v2624 = vpop.f32.mrf.mxu0
    %v2625 = vadd.f32 %v2563, %v2624
    %2626 = vdwg.mxu0
    %s2627 = scalar_lea.vmem [#allocation12], 1
    %v2628 = vld [vmem:[%s2627] sm:$0x1]
    %v2630 = vperm.slane %v2628, 0
    %v2632 = vmul.f32 %v2630, %v2623
    %v2633 = vmul.f32 %v2630, %v2625
    %v2634 = vadd.f32 %v1947, %v2632
    %v2635 = vadd.f32 %v1948, %v2633
    %s2636 = scalar_lea.vmem [#allocation13], 1
    %v2637 = vld [vmem:[%s2636] sm:$0x1]
    %s2638 = scalar_lea.vmem [#allocation15], 1
    %v2639 = vld [vmem:[%s2638] sm:$0x1]
    %2640 = vadd.xlane.f32.xlu0 %v2634
    %v2641 = vpop.xlane.xlu0 %2640
    %2642 = vadd.xlane.f32.xlu0 %v2635
    %v2643 = vpop.xlane.xlu0 %2642
    %v2644 = vmul.f32 %v2641, %v562
    %v2645 = vmul.f32 %v2643, %v562
    %v2646 = vsub.f32 %v2634, %v2644
    %v2647 = vsub.f32 %v2635, %v2645
    %v2648 = vmul.f32 %v2646, %v2646
    %v2649 = vmul.f32 %v2647, %v2647
    %2650 = vadd.xlane.f32.xlu0 %v2648
    %v2651 = vpop.xlane.xlu0 %2650
    %2652 = vadd.xlane.f32.xlu0 %v2649
    %v2653 = vpop.xlane.xlu0 %2652
    %v2654 = vmul.f32 %v2651, %v562
    %v2655 = vmul.f32 %v2653, %v562
    %v2656 = vadd.f32 %v2654, 1e-06
    %v2657 = vadd.f32 %v2655, 1e-06
    %v2658 = vrsqrt.pop %v2656
    %v2659 = vmul.f32 %v2658, %v2656
    %v2660 = vmul.f32 %v2659, %v2658
    %v2661 = vmul.f32 0.5, %v2660
    %v2662 = vsub.f32 1.5, %v2661
    %v2663 = vmul.f32 %v2658, %v2662
    %vm2664 = vweird.f32 %v2656
    %vm2665 = vweird.f32 %v2658
    %vm2666 = vmor %vm2664, %vm2665
    %v2667 = vsel %vm2666, %v2658, %v2663
    %v2668 = vrsqrt.pop %v2657
    %v2669 = vmul.f32 %v2668, %v2657
    %v2670 = vmul.f32 %v2669, %v2668
    %v2671 = vmul.f32 0.5, %v2670
    %v2672 = vsub.f32 1.5, %v2671
    %v2673 = vmul.f32 %v2668, %v2672
    %vm2674 = vweird.f32 %v2657
    %vm2675 = vweird.f32 %v2668
    %vm2676 = vmor %vm2674, %vm2675
    %v2677 = vsel %vm2676, %v2668, %v2673
    %v2678 = vmul.f32 %v2646, %v2667
    %v2679 = vmul.f32 %v2647, %v2677
    %v2681 = vperm.slane %v2637, 0
    %v2683 = vmul.f32 %v2678, %v2681
    %v2684 = vmul.f32 %v2679, %v2681
    %v2686 = vperm.slane %v2639, 0
    %v2688 = vadd.f32 %v2683, %v2686
    %v2689 = vadd.f32 %v2684, %v2686
    %v2690 = vpack.c.bf16 %v2689, %v2688
    %s2691 = scalar_lea.vmem %s14, 256
    %v2692 = vld [vmem:[%s2691] sm:$0xff]
    %v2693 = vld [vmem:[%s2691 + $0x8] sm:$0xff]
    %v2694 = vld [vmem:[%s2691 + $0x10] sm:$0xff]
    %v2695 = vld [vmem:[%s2691 + $0x18] sm:$0xff]
    %v2696 = vld [vmem:[%s2691 + $0x20] sm:$0xff]
    %v2697 = vld [vmem:[%s2691 + $0x28] sm:$0xff]
    %v2698 = vld [vmem:[%s2691 + $0x30] sm:$0xff]
    %v2699 = vld [vmem:[%s2691 + $0x38] sm:$0xff]
    %v2700 = vld [vmem:[%s2691 + $0x40] sm:$0xff]
    %v2701 = vld [vmem:[%s2691 + $0x48] sm:$0xff]
    %v2702 = vld [vmem:[%s2691 + $0x50] sm:$0xff]
    %v2703 = vld [vmem:[%s2691 + $0x58] sm:$0xff]
    %v2704 = vld [vmem:[%s2691 + $0x60] sm:$0xff]
    %v2705 = vld [vmem:[%s2691 + $0x68] sm:$0xff]
    %v2706 = vld [vmem:[%s2691 + $0x70] sm:$0xff]
    %v2707 = vld [vmem:[%s2691 + $0x78] sm:$0xff]
    %v2708 = vld [vmem:[%s2691 + $0x80] sm:$0xff]
    %v2709 = vld [vmem:[%s2691 + $0x88] sm:$0xff]
    %v2710 = vld [vmem:[%s2691 + $0x90] sm:$0xff]
    %v2711 = vld [vmem:[%s2691 + $0x98] sm:$0xff]
    %v2712 = vld [vmem:[%s2691 + $0xa0] sm:$0xff]
    %v2713 = vld [vmem:[%s2691 + $0xa8] sm:$0xff]
    %v2714 = vld [vmem:[%s2691 + $0xb0] sm:$0xff]
    %v2715 = vld [vmem:[%s2691 + $0xb8] sm:$0xff]
    %v2716 = vld [vmem:[%s2691 + $0xc0] sm:$0xff]
    %v2717 = vld [vmem:[%s2691 + $0xc8] sm:$0xff]
    %v2718 = vld [vmem:[%s2691 + $0xd0] sm:$0xff]
    %v2719 = vld [vmem:[%s2691 + $0xd8] sm:$0xff]
    %v2720 = vld [vmem:[%s2691 + $0xe0] sm:$0xff]
    %v2721 = vld [vmem:[%s2691 + $0xe8] sm:$0xff]
    %v2722 = vld [vmem:[%s2691 + $0xf0] sm:$0xff]
    %v2723 = vld [vmem:[%s2691 + $0xf8] sm:$0xff]
    %s2724 = scalar_lea.vmem [#allocation16], 4
    %v2725 = vld [vmem:[%s2724] sm:$0xf]
    %v2727 = vperm.slane %v2725, 0
    %v2728 = vperm.slane %v2725, 1
    %v2729 = vperm.slane %v2725, 2
    %v2730 = vperm.slane %v2725, 3
    %v2767 = vunpack.c.l.b16 %v2692
    %v2768 = vunpack.c.h.b16 %v2692
    %v2769 = vunpack.c.l.b16 %v2693
    %v2770 = vunpack.c.h.b16 %v2693
    %v2771 = vunpack.c.l.b16 %v2694
    %v2772 = vunpack.c.h.b16 %v2694
    %v2773 = vunpack.c.l.b16 %v2695
    %v2774 = vunpack.c.h.b16 %v2695
    %v2775 = vunpack.c.l.b16 %v2696
    %v2776 = vunpack.c.h.b16 %v2696
    %v2777 = vunpack.c.l.b16 %v2697
    %v2778 = vunpack.c.h.b16 %v2697
    %v2779 = vunpack.c.l.b16 %v2698
    %v2780 = vunpack.c.h.b16 %v2698
    %v2781 = vunpack.c.l.b16 %v2699
    %v2782 = vunpack.c.h.b16 %v2699
    %v2783 = vunpack.c.l.b16 %v2700
    %v2784 = vunpack.c.h.b16 %v2700
    %v2785 = vunpack.c.l.b16 %v2701
    %v2786 = vunpack.c.h.b16 %v2701
    %v2787 = vunpack.c.l.b16 %v2702
    %v2788 = vunpack.c.h.b16 %v2702
    %v2789 = vunpack.c.l.b16 %v2703
    %v2790 = vunpack.c.h.b16 %v2703
    %v2791 = vunpack.c.l.b16 %v2704
    %v2792 = vunpack.c.h.b16 %v2704
    %v2793 = vunpack.c.l.b16 %v2705
    %v2794 = vunpack.c.h.b16 %v2705
    %v2795 = vunpack.c.l.b16 %v2706
    %v2796 = vunpack.c.h.b16 %v2706
    %v2797 = vunpack.c.l.b16 %v2707
    %v2798 = vunpack.c.h.b16 %v2707
    %v2799 = vunpack.c.l.b16 %v2708
    %v2800 = vunpack.c.h.b16 %v2708
    %v2801 = vunpack.c.l.b16 %v2709
    %v2802 = vunpack.c.h.b16 %v2709
    %v2803 = vunpack.c.l.b16 %v2710
    %v2804 = vunpack.c.h.b16 %v2710
    %v2805 = vunpack.c.l.b16 %v2711
    %v2806 = vunpack.c.h.b16 %v2711
    %v2807 = vunpack.c.l.b16 %v2712
    %v2808 = vunpack.c.h.b16 %v2712
    %v2809 = vunpack.c.l.b16 %v2713
    %v2810 = vunpack.c.h.b16 %v2713
    %v2811 = vunpack.c.l.b16 %v2714
    %v2812 = vunpack.c.h.b16 %v2714
    %v2813 = vunpack.c.l.b16 %v2715
    %v2814 = vunpack.c.h.b16 %v2715
    %v2815 = vunpack.c.l.b16 %v2716
    %v2816 = vunpack.c.h.b16 %v2716
    %v2817 = vunpack.c.l.b16 %v2717
    %v2818 = vunpack.c.h.b16 %v2717
    %v2819 = vunpack.c.l.b16 %v2718
    %v2820 = vunpack.c.h.b16 %v2718
    %v2821 = vunpack.c.l.b16 %v2719
    %v2822 = vunpack.c.h.b16 %v2719
    %v2823 = vunpack.c.l.b16 %v2720
    %v2824 = vunpack.c.h.b16 %v2720
    %v2825 = vunpack.c.l.b16 %v2721
    %v2826 = vunpack.c.h.b16 %v2721
    %v2827 = vunpack.c.l.b16 %v2722
    %v2828 = vunpack.c.h.b16 %v2722
    %v2829 = vunpack.c.l.b16 %v2723
    %v2830 = vunpack.c.h.b16 %v2723
    %v2831 = vpack.c.b16 %v2771, %v2767
    %v2832 = vpack.c.b16 %v2772, %v2768
    %v2833 = vpack.c.b16 %v2773, %v2769
    %v2834 = vpack.c.b16 %v2774, %v2770
    %v2835 = vpack.c.b16 %v2779, %v2775
    %v2836 = vpack.c.b16 %v2780, %v2776
    %v2837 = vpack.c.b16 %v2781, %v2777
    %v2838 = vpack.c.b16 %v2782, %v2778
    %v2839 = vpack.c.b16 %v2787, %v2783
    %v2840 = vpack.c.b16 %v2788, %v2784
    %v2841 = vpack.c.b16 %v2789, %v2785
    %v2842 = vpack.c.b16 %v2790, %v2786
    %v2843 = vpack.c.b16 %v2795, %v2791
    %v2844 = vpack.c.b16 %v2796, %v2792
    %v2845 = vpack.c.b16 %v2797, %v2793
    %v2846 = vpack.c.b16 %v2798, %v2794
    %v2847 = vpack.c.b16 %v2803, %v2799
    %v2848 = vpack.c.b16 %v2804, %v2800
    %v2849 = vpack.c.b16 %v2805, %v2801
    %v2850 = vpack.c.b16 %v2806, %v2802
    %v2851 = vpack.c.b16 %v2811, %v2807
    %v2852 = vpack.c.b16 %v2812, %v2808
    %v2853 = vpack.c.b16 %v2813, %v2809
    %v2854 = vpack.c.b16 %v2814, %v2810
    %v2855 = vpack.c.b16 %v2819, %v2815
    %v2856 = vpack.c.b16 %v2820, %v2816
    %v2857 = vpack.c.b16 %v2821, %v2817
    %v2858 = vpack.c.b16 %v2822, %v2818
    %v2859 = vpack.c.b16 %v2827, %v2823
    %v2860 = vpack.c.b16 %v2828, %v2824
    %v2861 = vpack.c.b16 %v2829, %v2825
    %v2862 = vpack.c.b16 %v2830, %v2826
    %2895 = vmatpush.bf16.msra.mxu0 %v2859
    %2896 = vmatpush.bf16.msra.mxu0 %v2855
    %2897 = vmatpush.bf16.msra.mxu0 %v2851
    %2898 = vmatpush.bf16.msra.mxu0 %v2847
    %2899 = vmatpush.bf16.msra.mxu0 %v2843
    %2900 = vmatpush.bf16.msra.mxu0 %v2839
    %2901 = vmatpush.bf16.msra.mxu0 %v2835
    %2902 = vmatpush.bf16.msra.mxu0 %v2831
    %2903 = vmatmul.bf16.gmra.mxu0 %v2690
    %v2904 = vpop.f32.mrf.mxu0
    %v2905 = vadd.f32 %v2727, %v2904
    %v2906 = vpop.f32.mrf.mxu0
    %v2907 = vadd.f32 %v2727, %v2906
    %2908 = vdwg.mxu0
    %2909 = vmatpush.bf16.msra.mxu0 %v2860
    %2910 = vmatpush.bf16.msra.mxu0 %v2856
    %2911 = vmatpush.bf16.msra.mxu0 %v2852
    %2912 = vmatpush.bf16.msra.mxu0 %v2848
    %2913 = vmatpush.bf16.msra.mxu0 %v2844
    %2914 = vmatpush.bf16.msra.mxu0 %v2840
    %2915 = vmatpush.bf16.msra.mxu0 %v2836
    %2916 = vmatpush.bf16.msra.mxu0 %v2832
    %2917 = vmatmul.bf16.gmra.mxu0 %v2690
    %v2918 = vpop.f32.mrf.mxu0
    %v2919 = vadd.f32 %v2728, %v2918
    %v2920 = vpop.f32.mrf.mxu0
    %v2921 = vadd.f32 %v2728, %v2920
    %2922 = vdwg.mxu0
    %2923 = vmatpush.bf16.msra.mxu0 %v2861
    %2924 = vmatpush.bf16.msra.mxu0 %v2857
    %2925 = vmatpush.bf16.msra.mxu0 %v2853
    %2926 = vmatpush.bf16.msra.mxu0 %v2849
    %2927 = vmatpush.bf16.msra.mxu0 %v2845
    %2928 = vmatpush.bf16.msra.mxu0 %v2841
    %2929 = vmatpush.bf16.msra.mxu0 %v2837
    %2930 = vmatpush.bf16.msra.mxu0 %v2833
    %2931 = vmatmul.bf16.gmra.mxu0 %v2690
    %v2932 = vpop.f32.mrf.mxu0
    %v2933 = vadd.f32 %v2729, %v2932
    %v2934 = vpop.f32.mrf.mxu0
    %v2935 = vadd.f32 %v2729, %v2934
    %2936 = vdwg.mxu0
    %2937 = vmatpush.bf16.msra.mxu0 %v2862
    %2938 = vmatpush.bf16.msra.mxu0 %v2858
    %2939 = vmatpush.bf16.msra.mxu0 %v2854
    %2940 = vmatpush.bf16.msra.mxu0 %v2850
    %2941 = vmatpush.bf16.msra.mxu0 %v2846
    %2942 = vmatpush.bf16.msra.mxu0 %v2842
    %2943 = vmatpush.bf16.msra.mxu0 %v2838
    %2944 = vmatpush.bf16.msra.mxu0 %v2834
    %2945 = vmatmul.bf16.gmra.mxu0 %v2690
    %v2946 = vpop.f32.mrf.mxu0
    %v2947 = vadd.f32 %v2730, %v2946
    %v2948 = vpop.f32.mrf.mxu0
    %v2949 = vadd.f32 %v2730, %v2948
    %2950 = vdwg.mxu0
    %v2951 = vmul.f32 %v2905, %v2905
    %v2952 = vmul.f32 %v2919, %v2919
    %v2953 = vmul.f32 %v2933, %v2933
    %v2954 = vmul.f32 %v2947, %v2947
    %v2955 = vmul.f32 %v2907, %v2907
    %v2956 = vmul.f32 %v2921, %v2921
    %v2957 = vmul.f32 %v2935, %v2935
    %v2958 = vmul.f32 %v2949, %v2949
    %v2959 = vmul.f32 %v2905, %v2951
    %v2960 = vmul.f32 %v2919, %v2952
    %v2961 = vmul.f32 %v2933, %v2953
    %v2962 = vmul.f32 %v2947, %v2954
    %v2963 = vmul.f32 %v2907, %v2955
    %v2964 = vmul.f32 %v2921, %v2956
    %v2965 = vmul.f32 %v2935, %v2957
    %v2966 = vmul.f32 %v2949, %v2958
    %v2967 = vmul.f32 %v2959, 0.044715
    %v2968 = vmul.f32 %v2960, 0.044715
    %v2969 = vmul.f32 %v2961, 0.044715
    %v2970 = vmul.f32 %v2962, 0.044715
    %v2971 = vmul.f32 %v2963, 0.044715
    %v2972 = vmul.f32 %v2964, 0.044715
    %v2973 = vmul.f32 %v2965, 0.044715
    %v2974 = vmul.f32 %v2966, 0.044715
    %v2975 = vadd.f32 %v2905, %v2967
    %v2976 = vadd.f32 %v2919, %v2968
    %v2977 = vadd.f32 %v2933, %v2969
    %v2978 = vadd.f32 %v2947, %v2970
    %v2979 = vadd.f32 %v2907, %v2971
    %v2980 = vadd.f32 %v2921, %v2972
    %v2981 = vadd.f32 %v2935, %v2973
    %v2982 = vadd.f32 %v2949, %v2974
    %v2983 = vmul.f32 %v2975, 0.7978846
    %v2984 = vmul.f32 %v2976, 0.7978846
    %v2985 = vmul.f32 %v2977, 0.7978846
    %v2986 = vmul.f32 %v2978, 0.7978846
    %v2987 = vmul.f32 %v2979, 0.7978846
    %v2988 = vmul.f32 %v2980, 0.7978846
    %v2989 = vmul.f32 %v2981, 0.7978846
    %v2990 = vmul.f32 %v2982, 0.7978846
    %v2991 = vtanh.pop %v2983
    %v2992 = vtanh.pop %v2984
    %v2993 = vtanh.pop %v2985
    %v2994 = vtanh.pop %v2986
    %v2995 = vtanh.pop %v2987
    %v2996 = vtanh.pop %v2988
    %v2997 = vtanh.pop %v2989
    %v2998 = vtanh.pop %v2990
    %v2999 = vadd.f32 %v2991, 1.0
    %v3000 = vadd.f32 %v2992, 1.0
    %v3001 = vadd.f32 %v2993, 1.0
    %v3002 = vadd.f32 %v2994, 1.0
    %v3003 = vadd.f32 %v2995, 1.0
    %v3004 = vadd.f32 %v2996, 1.0
    %v3005 = vadd.f32 %v2997, 1.0
    %v3006 = vadd.f32 %v2998, 1.0
    %v3007 = vmul.f32 %v2999, 0.5
    %v3008 = vmul.f32 %v3000, 0.5
    %v3009 = vmul.f32 %v3001, 0.5
    %v3010 = vmul.f32 %v3002, 0.5
    %v3011 = vmul.f32 %v3003, 0.5
    %v3012 = vmul.f32 %v3004, 0.5
    %v3013 = vmul.f32 %v3005, 0.5
    %v3014 = vmul.f32 %v3006, 0.5
    %v3015 = vmul.f32 %v2905, %v3007
    %v3016 = vmul.f32 %v2919, %v3008
    %v3017 = vmul.f32 %v2933, %v3009
    %v3018 = vmul.f32 %v2947, %v3010
    %v3019 = vmul.f32 %v2907, %v3011
    %v3020 = vmul.f32 %v2921, %v3012
    %v3021 = vmul.f32 %v2935, %v3013
    %v3022 = vmul.f32 %v2949, %v3014
    %v3023 = vpack.c.bf16 %v3019, %v3015
    %v3024 = vpack.c.bf16 %v3020, %v3016
    %v3025 = vpack.c.bf16 %v3021, %v3017
    %v3026 = vpack.c.bf16 %v3022, %v3018
    %s3027 = scalar_lea.vmem [#allocation18], 256
    %v3028 = vld [vmem:[%s3027] sm:$0xf]
    %v3029 = vld [vmem:[%s3027 + $0x4] sm:$0xf]
    %v3030 = vld [vmem:[%s3027 + $0x8] sm:$0xf]
    %v3031 = vld [vmem:[%s3027 + $0xc] sm:$0xf]
    %v3032 = vld [vmem:[%s3027 + $0x10] sm:$0xf]
    %v3033 = vld [vmem:[%s3027 + $0x14] sm:$0xf]
    %v3034 = vld [vmem:[%s3027 + $0x18] sm:$0xf]
    %v3035 = vld [vmem:[%s3027 + $0x1c] sm:$0xf]
    %v3036 = vld [vmem:[%s3027 + $0x20] sm:$0xf]
    %v3037 = vld [vmem:[%s3027 + $0x24] sm:$0xf]
    %v3038 = vld [vmem:[%s3027 + $0x28] sm:$0xf]
    %v3039 = vld [vmem:[%s3027 + $0x2c] sm:$0xf]
    %v3040 = vld [vmem:[%s3027 + $0x30] sm:$0xf]
    %v3041 = vld [vmem:[%s3027 + $0x34] sm:$0xf]
    %v3042 = vld [vmem:[%s3027 + $0x38] sm:$0xf]
    %v3043 = vld [vmem:[%s3027 + $0x3c] sm:$0xf]
    %v3044 = vld [vmem:[%s3027 + $0x40] sm:$0xf]
    %v3045 = vld [vmem:[%s3027 + $0x44] sm:$0xf]
    %v3046 = vld [vmem:[%s3027 + $0x48] sm:$0xf]
    %v3047 = vld [vmem:[%s3027 + $0x4c] sm:$0xf]
    %v3048 = vld [vmem:[%s3027 + $0x50] sm:$0xf]
    %v3049 = vld [vmem:[%s3027 + $0x54] sm:$0xf]
    %v3050 = vld [vmem:[%s3027 + $0x58] sm:$0xf]
    %v3051 = vld [vmem:[%s3027 + $0x5c] sm:$0xf]
    %v3052 = vld [vmem:[%s3027 + $0x60] sm:$0xf]
    %v3053 = vld [vmem:[%s3027 + $0x64] sm:$0xf]
    %v3054 = vld [vmem:[%s3027 + $0x68] sm:$0xf]
    %v3055 = vld [vmem:[%s3027 + $0x6c] sm:$0xf]
    %v3056 = vld [vmem:[%s3027 + $0x70] sm:$0xf]
    %v3057 = vld [vmem:[%s3027 + $0x74] sm:$0xf]
    %v3058 = vld [vmem:[%s3027 + $0x78] sm:$0xf]
    %v3059 = vld [vmem:[%s3027 + $0x7c] sm:$0xf]
    %v3060 = vld [vmem:[%s3027 + $0x80] sm:$0xf]
    %v3061 = vld [vmem:[%s3027 + $0x84] sm:$0xf]
    %v3062 = vld [vmem:[%s3027 + $0x88] sm:$0xf]
    %v3063 = vld [vmem:[%s3027 + $0x8c] sm:$0xf]
    %v3064 = vld [vmem:[%s3027 + $0x90] sm:$0xf]
    %v3065 = vld [vmem:[%s3027 + $0x94] sm:$0xf]
    %v3066 = vld [vmem:[%s3027 + $0x98] sm:$0xf]
    %v3067 = vld [vmem:[%s3027 + $0x9c] sm:$0xf]
    %v3068 = vld [vmem:[%s3027 + $0xa0] sm:$0xf]
    %v3069 = vld [vmem:[%s3027 + $0xa4] sm:$0xf]
    %v3070 = vld [vmem:[%s3027 + $0xa8] sm:$0xf]
    %v3071 = vld [vmem:[%s3027 + $0xac] sm:$0xf]
    %v3072 = vld [vmem:[%s3027 + $0xb0] sm:$0xf]
    %v3073 = vld [vmem:[%s3027 + $0xb4] sm:$0xf]
    %v3074 = vld [vmem:[%s3027 + $0xb8] sm:$0xf]
    %v3075 = vld [vmem:[%s3027 + $0xbc] sm:$0xf]
    %v3076 = vld [vmem:[%s3027 + $0xc0] sm:$0xf]
    %v3077 = vld [vmem:[%s3027 + $0xc4] sm:$0xf]
    %v3078 = vld [vmem:[%s3027 + $0xc8] sm:$0xf]
    %v3079 = vld [vmem:[%s3027 + $0xcc] sm:$0xf]
    %v3080 = vld [vmem:[%s3027 + $0xd0] sm:$0xf]
    %v3081 = vld [vmem:[%s3027 + $0xd4] sm:$0xf]
    %v3082 = vld [vmem:[%s3027 + $0xd8] sm:$0xf]
    %v3083 = vld [vmem:[%s3027 + $0xdc] sm:$0xf]
    %v3084 = vld [vmem:[%s3027 + $0xe0] sm:$0xf]
    %v3085 = vld [vmem:[%s3027 + $0xe4] sm:$0xf]
    %v3086 = vld [vmem:[%s3027 + $0xe8] sm:$0xf]
    %v3087 = vld [vmem:[%s3027 + $0xec] sm:$0xf]
    %v3088 = vld [vmem:[%s3027 + $0xf0] sm:$0xf]
    %v3089 = vld [vmem:[%s3027 + $0xf4] sm:$0xf]
    %v3090 = vld [vmem:[%s3027 + $0xf8] sm:$0xf]
    %v3091 = vld [vmem:[%s3027 + $0xfc] sm:$0xf]
    %s3092 = scalar_lea.vmem [#allocation19], 1
    %v3093 = vld [vmem:[%s3092] sm:$0x1]
    %v3095 = vperm.slane %v3093, 0
    %v3161 = vunpack.c.l.b16 %v3028
    %v3162 = vunpack.c.l.b16 %v3029
    %v3163 = vunpack.c.l.b16 %v3030
    %v3164 = vunpack.c.l.b16 %v3031
    %v3165 = vunpack.c.l.b16 %v3032
    %v3166 = vunpack.c.l.b16 %v3033
    %v3167 = vunpack.c.l.b16 %v3034
    %v3168 = vunpack.c.l.b16 %v3035
    %v3169 = vunpack.c.l.b16 %v3036
    %v3170 = vunpack.c.l.b16 %v3037
    %v3171 = vunpack.c.l.b16 %v3038
    %v3172 = vunpack.c.l.b16 %v3039
    %v3173 = vunpack.c.l.b16 %v3040
    %v3174 = vunpack.c.l.b16 %v3041
    %v3175 = vunpack.c.l.b16 %v3042
    %v3176 = vunpack.c.l.b16 %v3043
    %v3177 = vunpack.c.l.b16 %v3044
    %v3178 = vunpack.c.l.b16 %v3045
    %v3179 = vunpack.c.l.b16 %v3046
    %v3180 = vunpack.c.l.b16 %v3047
    %v3181 = vunpack.c.l.b16 %v3048
    %v3182 = vunpack.c.l.b16 %v3049
    %v3183 = vunpack.c.l.b16 %v3050
    %v3184 = vunpack.c.l.b16 %v3051
    %v3185 = vunpack.c.l.b16 %v3052
    %v3186 = vunpack.c.l.b16 %v3053
    %v3187 = vunpack.c.l.b16 %v3054
    %v3188 = vunpack.c.l.b16 %v3055
    %v3189 = vunpack.c.l.b16 %v3056
    %v3190 = vunpack.c.l.b16 %v3057
    %v3191 = vunpack.c.l.b16 %v3058
    %v3192 = vunpack.c.l.b16 %v3059
    %v3193 = vunpack.c.l.b16 %v3060
    %v3194 = vunpack.c.l.b16 %v3061
    %v3195 = vunpack.c.l.b16 %v3062
    %v3196 = vunpack.c.l.b16 %v3063
    %v3197 = vunpack.c.l.b16 %v3064
    %v3198 = vunpack.c.l.b16 %v3065
    %v3199 = vunpack.c.l.b16 %v3066
    %v3200 = vunpack.c.l.b16 %v3067
    %v3201 = vunpack.c.l.b16 %v3068
    %v3202 = vunpack.c.l.b16 %v3069
    %v3203 = vunpack.c.l.b16 %v3070
    %v3204 = vunpack.c.l.b16 %v3071
    %v3205 = vunpack.c.l.b16 %v3072
    %v3206 = vunpack.c.l.b16 %v3073
    %v3207 = vunpack.c.l.b16 %v3074
    %v3208 = vunpack.c.l.b16 %v3075
    %v3209 = vunpack.c.l.b16 %v3076
    %v3210 = vunpack.c.l.b16 %v3077
    %v3211 = vunpack.c.l.b16 %v3078
    %v3212 = vunpack.c.l.b16 %v3079
    %v3213 = vunpack.c.l.b16 %v3080
    %v3214 = vunpack.c.l.b16 %v3081
    %v3215 = vunpack.c.l.b16 %v3082
    %v3216 = vunpack.c.l.b16 %v3083
    %v3217 = vunpack.c.l.b16 %v3084
    %v3218 = vunpack.c.l.b16 %v3085
    %v3219 = vunpack.c.l.b16 %v3086
    %v3220 = vunpack.c.l.b16 %v3087
    %v3221 = vunpack.c.l.b16 %v3088
    %v3222 = vunpack.c.l.b16 %v3089
    %v3223 = vunpack.c.l.b16 %v3090
    %v3224 = vunpack.c.l.b16 %v3091
    %v3225 = vpack.c.b16 %v3162, %v3161
    %v3226 = vpack.c.b16 %v3164, %v3163
    %v3227 = vpack.c.b16 %v3166, %v3165
    %v3228 = vpack.c.b16 %v3168, %v3167
    %v3229 = vpack.c.b16 %v3170, %v3169
    %v3230 = vpack.c.b16 %v3172, %v3171
    %v3231 = vpack.c.b16 %v3174, %v3173
    %v3232 = vpack.c.b16 %v3176, %v3175
    %v3233 = vpack.c.b16 %v3178, %v3177
    %v3234 = vpack.c.b16 %v3180, %v3179
    %v3235 = vpack.c.b16 %v3182, %v3181
    %v3236 = vpack.c.b16 %v3184, %v3183
    %v3237 = vpack.c.b16 %v3186, %v3185
    %v3238 = vpack.c.b16 %v3188, %v3187
    %v3239 = vpack.c.b16 %v3190, %v3189
    %v3240 = vpack.c.b16 %v3192, %v3191
    %v3241 = vpack.c.b16 %v3194, %v3193
    %v3242 = vpack.c.b16 %v3196, %v3195
    %v3243 = vpack.c.b16 %v3198, %v3197
    %v3244 = vpack.c.b16 %v3200, %v3199
    %v3245 = vpack.c.b16 %v3202, %v3201
    %v3246 = vpack.c.b16 %v3204, %v3203
    %v3247 = vpack.c.b16 %v3206, %v3205
    %v3248 = vpack.c.b16 %v3208, %v3207
    %v3249 = vpack.c.b16 %v3210, %v3209
    %v3250 = vpack.c.b16 %v3212, %v3211
    %v3251 = vpack.c.b16 %v3214, %v3213
    %v3252 = vpack.c.b16 %v3216, %v3215
    %v3253 = vpack.c.b16 %v3218, %v3217
    %v3254 = vpack.c.b16 %v3220, %v3219
    %v3255 = vpack.c.b16 %v3222, %v3221
    %v3256 = vpack.c.b16 %v3224, %v3223
    %3289 = vmatpush.bf16.msra.mxu0 %v3232
    %3290 = vmatpush.bf16.msra.mxu0 %v3231
    %3291 = vmatpush.bf16.msra.mxu0 %v3230
    %3292 = vmatpush.bf16.msra.mxu0 %v3229
    %3293 = vmatpush.bf16.msra.mxu0 %v3228
    %3294 = vmatpush.bf16.msra.mxu0 %v3227
    %3295 = vmatpush.bf16.msra.mxu0 %v3226
    %3296 = vmatpush.bf16.msra.mxu0 %v3225
    %3297 = vmatmul.bf16.gmra.mxu0 %v3023
    %v3298 = vpop.f32.mrf.mxu0
    %v3299 = vadd.f32 %v3095, %v3298
    %v3300 = vpop.f32.mrf.mxu0
    %v3301 = vadd.f32 %v3095, %v3300
    %3302 = vdwg.mxu0
    %3303 = vmatpush.bf16.msra.mxu0 %v3240
    %3304 = vmatpush.bf16.msra.mxu0 %v3239
    %3305 = vmatpush.bf16.msra.mxu0 %v3238
    %3306 = vmatpush.bf16.msra.mxu0 %v3237
    %3307 = vmatpush.bf16.msra.mxu0 %v3236
    %3308 = vmatpush.bf16.msra.mxu0 %v3235
    %3309 = vmatpush.bf16.msra.mxu0 %v3234
    %3310 = vmatpush.bf16.msra.mxu0 %v3233
    %3311 = vmatmul.bf16.gmra.mxu0 %v3024
    %v3312 = vpop.f32.mrf.mxu0
    %v3313 = vadd.f32 %v3299, %v3312
    %v3314 = vpop.f32.mrf.mxu0
    %v3315 = vadd.f32 %v3301, %v3314
    %3316 = vdwg.mxu0
    %3317 = vmatpush.bf16.msra.mxu0 %v3248
    %3318 = vmatpush.bf16.msra.mxu0 %v3247
    %3319 = vmatpush.bf16.msra.mxu0 %v3246
    %3320 = vmatpush.bf16.msra.mxu0 %v3245
    %3321 = vmatpush.bf16.msra.mxu0 %v3244
    %3322 = vmatpush.bf16.msra.mxu0 %v3243
    %3323 = vmatpush.bf16.msra.mxu0 %v3242
    %3324 = vmatpush.bf16.msra.mxu0 %v3241
    %3325 = vmatmul.bf16.gmra.mxu0 %v3025
    %v3326 = vpop.f32.mrf.mxu0
    %v3327 = vadd.f32 %v3313, %v3326
    %v3328 = vpop.f32.mrf.mxu0
    %v3329 = vadd.f32 %v3315, %v3328
    %3330 = vdwg.mxu0
    %3331 = vmatpush.bf16.msra.mxu0 %v3256
    %3332 = vmatpush.bf16.msra.mxu0 %v3255
    %3333 = vmatpush.bf16.msra.mxu0 %v3254
    %3334 = vmatpush.bf16.msra.mxu0 %v3253
    %3335 = vmatpush.bf16.msra.mxu0 %v3252
    %3336 = vmatpush.bf16.msra.mxu0 %v3251
    %3337 = vmatpush.bf16.msra.mxu0 %v3250
    %3338 = vmatpush.bf16.msra.mxu0 %v3249
    %3339 = vmatmul.bf16.gmra.mxu0 %v3026
    %v3340 = vpop.f32.mrf.mxu0
    %v3341 = vadd.f32 %v3327, %v3340
    %v3342 = vpop.f32.mrf.mxu0
    %v3343 = vadd.f32 %v3329, %v3342
    %3344 = vdwg.mxu0
    %s3345 = scalar_lea.vmem [#allocation21], 1
    %v3346 = vld [vmem:[%s3345] sm:$0x1]
    %v3348 = vperm.slane %v3346, 0
    %v3350 = vmul.f32 %v3348, %v3341
    %v3351 = vmul.f32 %v3348, %v3343
    %v3352 = vadd.f32 %v2634, %v3350
    %v3353 = vadd.f32 %v2635, %v3351
    %v3354 = vld [vmem:[%s19] sm:$0xff]
    %vm3355 = vcmask 130048
    %v3357 = vsel %vm3355, %v3354, 0
    %3359 = vmatpush.msra.mxu0 0.0
    %3360 = vmatpush.msra.mxu0 0.0
    %3361 = vmatpush.msra.mxu0 0.0
    %3362 = vmatpush.msra.mxu0 0.0
    %3363 = vmatpush.msra.mxu0 0.0
    %3364 = vmatpush.msra.mxu0 0.0
    %3365 = vmatpush.msra.mxu0 0.0
    %3366 = vmatpush.msra.mxu0 0.0
    %3367 = vmatpush.msra.mxu0 0.0
    %3368 = vmatpush.msra.mxu0 0.0
    %3369 = vmatpush.msra.mxu0 0.0
    %3370 = vmatpush.msra.mxu0 0.0
    %3371 = vmatpush.msra.mxu0 0.0
    %3372 = vmatpush.msra.mxu0 0.0
    %3373 = vmatpush.msra.mxu0 %v3353
    %3374 = vmatpush.msra.mxu0 %v3352
    %3375 = vmatmul.f32.gmra.mxu0 %v3357
    %v3376 = vpop.f32.mrf.mxu0
    %v3377 = vadd.f32 0.0, %v3376
    %3378 = vdwg.mxu0
    %v3379 = vld [vmem:[#allocation22] sm:$0x1]
    %v3380 = vld [vmem:[#allocation24] sm:$0x1]
    %3381 = vadd.xlane.f32.xlu0 %v3377
    %v3382 = vpop.xlane.xlu0 %3381
    %v3383 = vmul.f32 %v3382, %v562
    %v3384 = vsub.f32 %v3377, %v3383
    %v3385 = vmul.f32 %v3384, %v3384
    %3386 = vadd.xlane.f32.xlu0 %v3385
    %v3387 = vpop.xlane.xlu0 %3386
    %v3388 = vmul.f32 %v3387, %v562
    %v3389 = vadd.f32 %v3388, 1e-06
    %v3390 = vrsqrt.pop %v3389
    %v3391 = vmul.f32 %v3390, %v3389
    %v3392 = vmul.f32 %v3391, %v3390
    %v3393 = vmul.f32 0.5, %v3392
    %v3394 = vsub.f32 1.5, %v3393
    %v3395 = vmul.f32 %v3390, %v3394
    %vm3396 = vweird.f32 %v3389
    %vm3397 = vweird.f32 %v3390
    %vm3398 = vmor %vm3396, %vm3397
    %v3399 = vsel %vm3398, %v3390, %v3395
    %v3400 = vmul.f32 %v3384, %v3399
    %v3402 = vperm.slane %v3379, 0
    %v3404 = vmul.f32 %v3400, %v3402
    %v3406 = vperm.slane %v3380, 0
    %v3408 = vadd.f32 %v3404, %v3406
    %v3409 = vpack.c.bf16 %v3408, %v3408
    %v3410 = vld [vmem:[#allocation25] sm:$0xff]
    %v3411 = vld [vmem:[#allocation25 + $0x8] sm:$0xff]
    %v3412 = vld [vmem:[#allocation25 + $0x10] sm:$0xff]
    %v3413 = vld [vmem:[#allocation25 + $0x18] sm:$0xff]
    %v3414 = vld [vmem:[#allocation25 + $0x20] sm:$0xff]
    %v3415 = vld [vmem:[#allocation25 + $0x28] sm:$0xff]
    %v3416 = vld [vmem:[#allocation25 + $0x30] sm:$0xff]
    %v3417 = vld [vmem:[#allocation25 + $0x38] sm:$0xff]
    %v3418 = vld [vmem:[#allocation25 + $0x40] sm:$0xff]
    %v3419 = vld [vmem:[#allocation25 + $0x48] sm:$0xff]
    %v3420 = vld [vmem:[#allocation25 + $0x50] sm:$0xff]
    %v3421 = vld [vmem:[#allocation25 + $0x58] sm:$0xff]
    %v3422 = vld [vmem:[#allocation25 + $0x60] sm:$0xff]
    %v3423 = vld [vmem:[#allocation25 + $0x68] sm:$0xff]
    %v3424 = vld [vmem:[#allocation25 + $0x70] sm:$0xff]
    %v3425 = vld [vmem:[#allocation25 + $0x78] sm:$0xff]
    %v3426 = vld [vmem:[#allocation27] sm:$0x3]
    %v3428 = vperm.slane %v3426, 0
    %v3429 = vperm.slane %v3426, 1
    %v3448 = vunpack.c.l.b16 %v3410
    %v3449 = vunpack.c.h.b16 %v3410
    %v3450 = vunpack.c.l.b16 %v3411
    %v3451 = vunpack.c.h.b16 %v3411
    %v3452 = vunpack.c.l.b16 %v3412
    %v3453 = vunpack.c.h.b16 %v3412
    %v3454 = vunpack.c.l.b16 %v3413
    %v3455 = vunpack.c.h.b16 %v3413
    %v3456 = vunpack.c.l.b16 %v3414
    %v3457 = vunpack.c.h.b16 %v3414
    %v3458 = vunpack.c.l.b16 %v3415
    %v3459 = vunpack.c.h.b16 %v3415
    %v3460 = vunpack.c.l.b16 %v3416
    %v3461 = vunpack.c.h.b16 %v3416
    %v3462 = vunpack.c.l.b16 %v3417
    %v3463 = vunpack.c.h.b16 %v3417
    %v3464 = vunpack.c.l.b16 %v3418
    %v3465 = vunpack.c.h.b16 %v3418
    %v3466 = vunpack.c.l.b16 %v3419
    %v3467 = vunpack.c.h.b16 %v3419
    %v3468 = vunpack.c.l.b16 %v3420
    %v3469 = vunpack.c.h.b16 %v3420
    %v3470 = vunpack.c.l.b16 %v3421
    %v3471 = vunpack.c.h.b16 %v3421
    %v3472 = vunpack.c.l.b16 %v3422
    %v3473 = vunpack.c.h.b16 %v3422
    %v3474 = vunpack.c.l.b16 %v3423
    %v3475 = vunpack.c.h.b16 %v3423
    %v3476 = vunpack.c.l.b16 %v3424
    %v3477 = vunpack.c.h.b16 %v3424
    %v3478 = vunpack.c.l.b16 %v3425
    %v3479 = vunpack.c.h.b16 %v3425
    %v3480 = vpack.c.b16 %v3450, %v3448
    %v3481 = vpack.c.b16 %v3451, %v3449
    %v3482 = vpack.c.b16 %v3454, %v3452
    %v3483 = vpack.c.b16 %v3455, %v3453
    %v3484 = vpack.c.b16 %v3458, %v3456
    %v3485 = vpack.c.b16 %v3459, %v3457
    %v3486 = vpack.c.b16 %v3462, %v3460
    %v3487 = vpack.c.b16 %v3463, %v3461
    %v3488 = vpack.c.b16 %v3466, %v3464
    %v3489 = vpack.c.b16 %v3467, %v3465
    %v3490 = vpack.c.b16 %v3470, %v3468
    %v3491 = vpack.c.b16 %v3471, %v3469
    %v3492 = vpack.c.b16 %v3474, %v3472
    %v3493 = vpack.c.b16 %v3475, %v3473
    %v3494 = vpack.c.b16 %v3478, %v3476
    %v3495 = vpack.c.b16 %v3479, %v3477
    %3512 = vmatpush.bf16.msra.mxu0 %v3494
    %3513 = vmatpush.bf16.msra.mxu0 %v3492
    %3514 = vmatpush.bf16.msra.mxu0 %v3490
    %3515 = vmatpush.bf16.msra.mxu0 %v3488
    %3516 = vmatpush.bf16.msra.mxu0 %v3486
    %3517 = vmatpush.bf16.msra.mxu0 %v3484
    %3518 = vmatpush.bf16.msra.mxu0 %v3482
    %3519 = vmatpush.bf16.msra.mxu0 %v3480
    %3520 = vmatmul.bf16.gmra.mxu0 %v3409
    %v3521 = vpop.f32.mrf.mxu0
    %v3522 = vadd.f32 %v3428, %v3521
    %v3523 = vpop.f32.mrf.mxu0
    %3524 = vdwg.mxu0
    %3525 = vmatpush.bf16.msra.mxu0 %v3495
    %3526 = vmatpush.bf16.msra.mxu0 %v3493
    %3527 = vmatpush.bf16.msra.mxu0 %v3491
    %3528 = vmatpush.bf16.msra.mxu0 %v3489
    %3529 = vmatpush.bf16.msra.mxu0 %v3487
    %3530 = vmatpush.bf16.msra.mxu0 %v3485
    %3531 = vmatpush.bf16.msra.mxu0 %v3483
    %3532 = vmatpush.bf16.msra.mxu0 %v3481
    %3533 = vmatmul.bf16.gmra.mxu0 %v3409
    %v3534 = vpop.f32.mrf.mxu0
    %v3535 = vadd.f32 %v3429, %v3534
    %v3536 = vpop.f32.mrf.mxu0
    %3537 = vdwg.mxu0
    %3538 = vst [vmem:[%s24] sm:$0xff] %v3522
    %3539 = vst [vmem:[%s24 + $0x8] sm:$0xff] %v3535
    // Predicated region
    $region166: #{beit_forward.1} parent=1 // pred_check
      _
    $region167: #{beit_forward.1} parent=1 // pred_check_branch
      %3541 = sbr.rel (0) target = $region169
    $region168: #{beit_forward.1} parent=1 // pred_region
      _
    $region169: #{beit_forward.1} parent=1 // pred_fallthru
      _
    // Predicated region
    $region170: #{beit_forward.1} parent=1 // pred_check
      _
    $region171: #{beit_forward.1} parent=1 // pred_check_branch
      %3543 = sbr.rel (0) target = $region173
    $region172: #{beit_forward.1} parent=1 // pred_region
      _
    $region173: #{beit_forward.1} parent=1 // pred_fallthru
      _
    %3544 = vsyncpa [#allocation3], 1
    %3545 = vsyncpa [#allocation5], 1
    %3546 = vsyncpa [#allocation8], 1
    %3547 = vsyncpa [#allocation11], 1
    %3548 = vsyncpa [#allocation14], 1
    %3549 = vsyncpa [#allocation17], 1
    %3550 = vsyncpa [#allocation20], 1
    %3551 = vsyncpa [#allocation23], 1
    %3552 = vsyncpa [#allocation26], 1

</llo_original>
